<compile_context>
chip_gen: v6e
topology: v6e:2x2x1
jax: 0.10.0
libtpu: 0.0.40
codegen_flags: <defaults>
</compile_context>

<pallas_src>
import functools

import jax
import jax.numpy as jnp
from jax.experimental import pallas as pl
from jax.experimental.pallas import tpu as pltpu

_COMPUTE_DTYPE = jnp.bfloat16        # MXU operand dtype (accumulation stays f32)


# ---------------------------------------------------------------------------
# Small helpers
# ---------------------------------------------------------------------------

def _round_up(x, m):
    return ((x + m - 1) // m) * m


def _sublane(dtype):
    """Sublane granule for a dtype: 8 rows for f32, 16 for bf16."""
    return 8 * (4 // jnp.dtype(dtype).itemsize)


def _pick_tile_m(m128):
    """Tile of the flattened-pixel axis.  Largest tile <= 1024 amortizes the
    ~0.35us/grid-step overhead; layer 1 (m=2048) becomes exactly 2 tiles, i.e.
    one per TensorCore on v7x while staying trivially inside VMEM budgets."""
    return m128 if m128 <= 1024 else 1024


# ---------------------------------------------------------------------------
# Pallas kernels
# ---------------------------------------------------------------------------

def _gated_conv_kernel(w_ref, x_ref, o_ref, *, cout):
    """Fused gated conv tile: P = [Wt; Wg] @ X^T, out = P[:C] * P[C:].

    w_ref: (2*Cout, k_pad) bf16  fused transform+gate weights (grid-resident).
    x_ref: (k_pad, tile_m) bf16  im2col'd input block, pixels on lanes.
    o_ref: (Cout, tile_m)  f32   gated output (lane-dense store).

    MXU accumulates in f32; the gating multiply and the store stay f32.
    """
    p = jnp.dot(w_ref[...], x_ref[...], preferred_element_type=jnp.float32)
    o_ref[...] = (p[:cout, :] * p[cout:, :]).astype(o_ref.dtype)


def _fc_tail_kernel(x_ref, w1_ref, w2_ref, wh_ref, o_ref, *, c1, c2):
    """gatedfc1 -> gatedfc2 -> fused [fc3 | value_fc] heads in ONE kernel.

    x_ref : (Bp, F)       bf16 flattened features.
    w1_ref: (F, 2*c1)     bf16 fused [fc1_t, fc1_g].
    w2_ref: (c1, 2*c2)    bf16 fused [fc2_t, fc2_g].
    wh_ref: (c2, Hpad)    bf16 fused [fc3_w, value_w] padded to 128 lanes.
    o_ref : (Bp, Hpad)    f32  heads output (lane-dense store).
    """
    h1 = jnp.dot(x_ref[...], w1_ref[...], preferred_element_type=jnp.float32)
    h1 = h1[:, :c1] * h1[:, c1:]                       # gate in f32
    h2 = jnp.dot(h1.astype(w2_ref.dtype), w2_ref[...],
                 preferred_element_type=jnp.float32)
    h2 = h2[:, :c2] * h2[:, c2:]                       # gate in f32
    o_ref[...] = jnp.dot(h2.astype(wh_ref.dtype), wh_ref[...],
                         preferred_element_type=jnp.float32).astype(o_ref.dtype)


# ---------------------------------------------------------------------------
# Wrappers (XLA glue + pallas_call plumbing)
# ---------------------------------------------------------------------------

def bilinear_gated_conv2d(x_cnhw, w_cat, *, ksize, padding):
    """BilinearGatedActivation2D.forward (stride 1, bias-free).

    x_cnhw: (Cin, N, H, W) float32 activations in channel-major layout (so the
            transposed im2col slab is a contiguous view, never a transpose).
    w_cat : (2*Cout, k_pad) bf16 fused weights from prepare_params.
    Returns (Cout, N, Ho, Wo) float32.
    """
    Cin, N, H, W = x_cnhw.shape
    Cout = w_cat.shape[0] // 2
    k_pad = w_cat.shape[1]
    KH = KW = ksize
    K = KH * KW * Cin
    assert K <= k_pad and Cout % 8 == 0, "sublane split must be 8-aligned"

    Ho = H + 2 * padding - KH + 1
    Wo = W + 2 * padding - KW + 1
    M = N * Ho * Wo

    # --- XLA glue: cast (small) -> pad -> im2col already transposed -------
    xp = jnp.pad(x_cnhw.astype(w_cat.dtype),
                 ((0, 0), (0, 0), (padding, padding), (padding, padding)))
    cols = [jax.lax.slice(xp, (0, 0, i, j), (Cin, N, i + Ho, j + Wo))
            for i in range(KH) for j in range(KW)]
    # (KH*KW, Cin, N, Ho, Wo) -> (K, M): tap-major, Cin-minor; contiguous view.
    patches = jnp.stack(cols, axis=0).reshape(K, M)

    m128 = _round_up(M, 128)
    tile_m = _pick_tile_m(m128)
    m_pad = _round_up(m128, tile_m)
    patches = jnp.pad(patches, ((0, k_pad - K), (0, m_pad - M)))

    flops = 2 * (2 * Cout) * k_pad * m_pad + Cout * m_pad
    bytes_accessed = (patches.size * patches.dtype.itemsize
                      + w_cat.size * w_cat.dtype.itemsize
                      + Cout * m_pad * 4)

    out = pl.pallas_call(
        functools.partial(_gated_conv_kernel, cout=Cout),
        out_shape=jax.ShapeDtypeStruct((Cout, m_pad), jnp.float32),
        grid=(m_pad // tile_m,),
        in_specs=[
            pl.BlockSpec((2 * Cout, k_pad), lambda m: (0, 0)),   # weights resident
            pl.BlockSpec((k_pad, tile_m), lambda m: (0, m)),
        ],
        out_specs=pl.BlockSpec((Cout, tile_m), lambda m: (0, m)),
        compiler_params=pltpu.CompilerParams(
            dimension_semantics=("parallel",)),
        cost_estimate=pl.CostEstimate(flops=flops, transcendentals=0,
                                      bytes_accessed=bytes_accessed),
    )(w_cat, patches)

    return out[:, :M].reshape(Cout, N, Ho, Wo)


def fc_tail(x, fc_params):
    """gatedfc1 -> gatedfc2 -> fused fc3/value heads as one pallas_call."""
    w1, w2, wh = fc_params["w1"], fc_params["w2"], fc_params["wh"]
    B, F = x.shape
    c1 = w1.shape[1] // 2
    c2 = w2.shape[1] // 2
    hout = wh.shape[1]
    assert F == w1.shape[0] and c1 == w2.shape[0] and c2 == wh.shape[0]
    assert c1 % 128 == 0 and c2 % 128 == 0, "gate lane-split must be 128-aligned"
    assert hout % 128 == 0, "head output must be lane-dense (pre-padded)"

    Bp = _round_up(B, 8)
    xp = jnp.pad(x, ((0, Bp - B), (0, 0))).astype(w1.dtype)

    flops = 2 * Bp * (F * 2 * c1 + c1 * 2 * c2 + c2 * hout)
    bytes_accessed = ((xp.size + w1.size + w2.size + wh.size)
                      * jnp.dtype(w1.dtype).itemsize + Bp * hout * 4)

    out = pl.pallas_call(
        functools.partial(_fc_tail_kernel, c1=c1, c2=c2),
        out_shape=jax.ShapeDtypeStruct((Bp, hout), jnp.float32),
        grid=(1,),
        in_specs=[
            pl.BlockSpec((Bp, F), lambda i: (0, 0)),
            pl.BlockSpec(w1.shape, lambda i: (0, 0)),
            pl.BlockSpec(w2.shape, lambda i: (0, 0)),
            pl.BlockSpec(wh.shape, lambda i: (0, 0)),
        ],
        out_specs=pl.BlockSpec((Bp, hout), lambda i: (0, 0)),
        cost_estimate=pl.CostEstimate(flops=flops, transcendentals=0,
                                      bytes_accessed=bytes_accessed),
    )(xp, w1, w2, wh)
    return out[:B]


def avg_pool_2x2(x):
    """nn.AvgPool2d(kernel_size=2, stride=2) over the trailing two dims
    (layout agnostic: works for both NCHW and CNHW).  XLA glue."""
    *lead, H, W = x.shape
    assert H % 2 == 0 and W % 2 == 0
    return x.reshape(*lead, H // 2, 2, W // 2, 2).mean(axis=(-3, -1))


# ---------------------------------------------------------------------------
# Parameter preparation (once, outside the jitted forward)
# ---------------------------------------------------------------------------

def prepare_params(params, compute_dtype=_COMPUTE_DTYPE):
    """Re-layout PyTorch-style parameters into kernel-ready fused operands.

      * conv: [Wt; Wg] fused along rows -> (2*Cout, KH*KW*Cin), K zero-padded
        only to the sublane granule (16 for bf16), cast to bf16.
      * fc:   [Wt, Wg] fused along columns; fc3_w / value_w fused into one
        head matrix zero-padded to 128 lanes (unmasked store).
    Doing this outside jit makes the runtime weight concatenation zero-cost.
    """
    gran = _sublane(compute_dtype)

    def conv_pack(wt, wg):
        cout, cin, kh, kw = wt.shape
        K = kh * kw * cin
        k_pad = _round_up(K, gran)

        def flat(w):  # OIHW -> (Cout, KH*KW*Cin): tap-major, Cin-minor
            return jnp.transpose(w, (0, 2, 3, 1)).reshape(cout, K)

        w = jnp.concatenate([flat(wt), flat(wg)], axis=0)
        return jnp.pad(w, ((0, 0), (0, k_pad - K))).astype(compute_dtype)

    w1 = jnp.concatenate([params["fc1_t"], params["fc1_g"]], axis=1)
    w2 = jnp.concatenate([params["fc2_t"], params["fc2_g"]], axis=1)
    heads = jnp.concatenate([params["fc3_w"], params["value_w"]], axis=1)
    heads = jnp.pad(heads, ((0, 0), (0, _round_up(heads.shape[1], 128)
                                     - heads.shape[1])))

    return {
        "l1a": conv_pack(params["l1a_t"], params["l1a_g"]),
        "l2a": conv_pack(params["l2a_t"], params["l2a_g"]),
        "l2b": conv_pack(params["l2b_t"], params["l2b_g"]),
        "l3a": conv_pack(params["l3a_t"], params["l3a_g"]),
        "l4a": conv_pack(params["l4a_t"], params["l4a_g"]),
        "fc": {"w1": w1.astype(compute_dtype),
               "w2": w2.astype(compute_dtype),
               "wh": heads.astype(compute_dtype)},
    }


# ---------------------------------------------------------------------------
# Forward pass
# ---------------------------------------------------------------------------

def bilinear_cnn_forward(obs, kparams, *, num_outputs):
    """bilinearCNN.forward.  Returns (logits, value).

    Activations stay in channel-major (C, N, H, W) layout through the whole
    conv stack, so no full-size activation transpose is ever materialized.
    """
    # TODO(synk): torch.distributions.Categorical has no Pallas equivalent;
    # we return the raw logits that would parameterize it.
    x = obs.astype(jnp.float32) / 255.0
    x = jnp.transpose(x, (3, 0, 1, 2))                    # NHWC -> CNHW (tiny)

    x = bilinear_gated_conv2d(x, kparams["l1a"], ksize=7, padding=3)
    x = avg_pool_2x2(x)
    x = bilinear_gated_conv2d(x, kparams["l2a"], ksize=5, padding=2)
    x = bilinear_gated_conv2d(x, kparams["l2b"], ksize=5, padding=2)
    x = avg_pool_2x2(x)
    x = bilinear_gated_conv2d(x, kparams["l3a"], ksize=5, padding=2)
    x = avg_pool_2x2(x)
    x = bilinear_gated_conv2d(x, kparams["l4a"], ksize=5, padding=2)
    x = avg_pool_2x2(x)

    # CNHW -> NCHW flatten (matches torch.flatten(x, 1)); final map is tiny.
    x = jnp.transpose(x, (1, 0, 2, 3)).reshape(x.shape[1], -1)

    heads = fc_tail(x, kparams["fc"])
    logits = heads[:, :num_outputs]
    value = heads[:, num_outputs:num_outputs + 1]
    return logits, value


# ---------------------------------------------------------------------------
# Pure-JAX references (for correctness verification)
# ---------------------------------------------------------------------------

def _ref_forward(obs, p, *, quantize):
    """Pure-JAX reference.

    quantize=True mirrors the kernel's bf16-operand / f32-accumulate policy
    exactly (isolates kernel/layout bugs from the deliberate precision policy).
    quantize=False is the full-f32, HIGHEST-precision PyTorch-equivalent path.
    """
    cdt = _COMPUTE_DTYPE if quantize else jnp.float32
    prec = None if quantize else jax.lax.Precision.HIGHEST

    def conv(x, w, pad):
        dn = jax.lax.conv_dimension_numbers(x.shape, w.shape,
                                            ("NCHW", "OIHW", "NCHW"))
        return jax.lax.conv_general_dilated(
            x.astype(cdt), w.astype(cdt), (1, 1), [(pad, pad), (pad, pad)],
            dimension_numbers=dn, precision=prec,
            preferred_element_type=jnp.float32)

    def dot(a, b):
        return jnp.dot(a.astype(cdt), b.astype(cdt), precision=prec,
                       preferred_element_type=jnp.float32)

    x = obs.astype(jnp.float32) / 255.0
    x = jnp.transpose(x, (0, 3, 1, 2))
    x = conv(x, p["l1a_t"], 3) * conv(x, p["l1a_g"], 3)
    x = avg_pool_2x2(x)
    x = conv(x, p["l2a_t"], 2) * conv(x, p["l2a_g"], 2)
    x = conv(x, p["l2b_t"], 2) * conv(x, p["l2b_g"], 2)
    x = avg_pool_2x2(x)
    x = conv(x, p["l3a_t"], 2) * conv(x, p["l3a_g"], 2)
    x = avg_pool_2x2(x)
    x = conv(x, p["l4a_t"], 2) * conv(x, p["l4a_g"], 2)
    x = avg_pool_2x2(x)
    x = x.reshape(x.shape[0], -1)
    x = dot(x, p["fc1_t"]) * dot(x, p["fc1_g"])
    x = dot(x, p["fc2_t"]) * dot(x, p["fc2_g"])
    return dot(x, p["fc3_w"]), dot(x, p["value_w"])


def _make_params(key, h, w, c, num_outputs):
    # Deterministic weights; a small gain keeps the gated (squaring) stack in
    # a numerically safe float32 range end to end.
    gain = 2.0

    def conv_w(k, cout, cin, ksize):
        bound = (3.0 * gain / (cin * ksize * ksize)) ** 0.5
        return jax.random.uniform(k, (cout, cin, ksize, ksize),
                                  jnp.float32, -bound, bound)

    def fc_w(k, cin, cout):
        bound = (3.0 * gain / cin) ** 0.5
        return jax.random.uniform(k, (cin, cout), jnp.float32, -bound, bound)

    flat = (h // 16) * (w // 16) * 32        # after four 2x2 avg-pools
    ks = jax.random.split(key, 16)
    return {
        "l1a_t": conv_w(ks[0], 16, c, 7),   "l1a_g": conv_w(ks[1], 16, c, 7),
        "l2a_t": conv_w(ks[2], 32, 16, 5),  "l2a_g": conv_w(ks[3], 32, 16, 5),
        "l2b_t": conv_w(ks[4], 32, 32, 5),  "l2b_g": conv_w(ks[5], 32, 32, 5),
        "l3a_t": conv_w(ks[6], 32, 32, 5),  "l3a_g": conv_w(ks[7], 32, 32, 5),
        "l4a_t": conv_w(ks[8], 32, 32, 5),  "l4a_g": conv_w(ks[9], 32, 32, 5),
        "fc1_t": fc_w(ks[10], flat, 256),   "fc1_g": fc_w(ks[11], flat, 256),
        "fc2_t": fc_w(ks[12], 256, 512),    "fc2_g": fc_w(ks[13], 256, 512),
        "fc3_w": fc_w(ks[14], 512, num_outputs),
        "value_w": fc_w(ks[15], 512, 1),
    }


if __name__ == "__main__":
    N, H, W, C = 2, 32, 32, 3      # obs_space (h, w, c) = (32, 32, 3), batch 2
    num_outputs = 6

    key = jax.random.PRNGKey(0)
    k_obs, k_par = jax.random.split(key)
    params = _make_params(k_par, H, W, C, num_outputs)
    obs = jax.random.uniform(k_obs, (N, H, W, C), jnp.float32, 0.0, 255.0)

    kparams = prepare_params(params)          # one-time weight re-layout
    fwd = jax.jit(bilinear_cnn_forward, static_argnames=("num_outputs",))
    logits, value = jax.block_until_ready(
        fwd(obs, kparams, num_outputs=num_outputs))

    assert logits.shape == (N, num_outputs) and value.shape == (N, 1)

    def rel_err(a, b):
        return float(jnp.max(jnp.abs(a - b)) / (jnp.max(jnp.abs(b)) + 1e-30))

    # (1) Tight check against a reference that mirrors the kernel's
    #     bf16-operand / f32-accumulate policy: validates im2col layout,
    #     padding, weight fusion and the gating math.
    q_logits, q_value = _ref_forward(obs, params, quantize=True)
    assert rel_err(logits, q_logits) < 2e-2, "logits mismatch vs bf16-policy reference"
    assert rel_err(value, q_value) < 2e-2, "value mismatch vs bf16-policy reference"

    # (2) Sanity bound against the full-f32 reference: seven stacked gated
    #     (squaring) layers amplify the bf16 operand quantization by roughly
    #     sqrt(2) per layer, so a few percent of drift vs f32 is the expected
    #     cost of the deliberate bf16 policy.
    f_logits, f_value = _ref_forward(obs, params, quantize=False)
    drift_l, drift_v = rel_err(logits, f_logits), rel_err(value, f_value)
    assert drift_l < 0.3 and drift_v < 0.3, "unexpectedly large drift vs f32 reference"
    print(f"# bf16-policy err: logits={rel_err(logits, q_logits):.2e} "
          f"value={rel_err(value, q_value):.2e}; "
          f"f32 drift: logits={drift_l:.2e} value={drift_v:.2e}")

    print("KERNEL_OK")
</pallas_src>

<mosaic_0001>
module attributes {stable_mosaic.version = 11 : i64} {
  func.func @_gated_conv_kernel(%arg0: i32, %arg1: memref<32x160xbf16, #tpu.memory_space<vmem>>, %arg2: memref<160x1024xbf16, #tpu.memory_space<vmem>>, %arg3: memref<16x1024xf32, #tpu.memory_space<vmem>>) attributes {dimension_semantics = [#tpu.dimension_semantics<parallel>], iteration_bounds = array<i64: 2>, scalar_prefetch = 0 : i64, scratch_operands = 0 : i64, tpu.core_type = #tpu.core_type<tc>, window_params = [{pipeline_mode = #tpu.pipeline_mode<synchronous>, transform_indices = @transform_0, window_bounds = array<i64: 32, 160>}, {transform_indices = @transform_1, window_bounds = array<i64: 160, 1024>}, {transform_indices = @transform_2, window_bounds = array<i64: 16, 1024>}]} {
    %c0 = arith.constant 0 : index
    %c0_0 = arith.constant 0 : index
    %0 = vector.load %arg1[%c0, %c0_0] : memref<32x160xbf16, #tpu.memory_space<vmem>>, vector<32x160xbf16>
    %c0_1 = arith.constant 0 : index
    %c0_2 = arith.constant 0 : index
    %1 = vector.load %arg2[%c0_1, %c0_2] : memref<160x1024xbf16, #tpu.memory_space<vmem>>, vector<160x1024xbf16>
    %cst = arith.constant dense<0.000000e+00> : vector<32x1024xf32>
    %2 = tpu.matmul %0, %1, %cst {dimension_numbers = #tpu.dot_dimension_numbers<[1], [0], [0], [1], [0, 0, 1, 1], [], []>} : vector<32x160xbf16>, vector<160x1024xbf16>, vector<32x1024xf32> -> vector<32x1024xf32>
    %3 = vector.extract_strided_slice %2 {offsets = [0, 0], sizes = [16, 1024], strides = [1, 1]} : vector<32x1024xf32> to vector<16x1024xf32>
    %4 = vector.extract_strided_slice %2 {offsets = [16, 0], sizes = [16, 1024], strides = [1, 1]} : vector<32x1024xf32> to vector<16x1024xf32>
    %5 = arith.mulf %3, %4 : vector<16x1024xf32>
    %c0_3 = arith.constant 0 : index
    %c0_4 = arith.constant 0 : index
    %6 = vector.load %arg3[%c0_3, %c0_4] : memref<16x1024xf32, #tpu.memory_space<vmem>>, vector<16x1024xf32>
    tpu.vector_store %arg3[%c0_3, %c0_4], %5 {strides = array<i32>} : memref<16x1024xf32, #tpu.memory_space<vmem>>, vector<16x1024xf32>,
    return
  }
  func.func @transform_0(%arg0: i32) -> (i32, i32) {
    %c0_i32 = arith.constant 0 : i32
    %c0_i32_0 = arith.constant 0 : i32
    %c0_i32_1 = arith.constant 0 : i32
    return %c0_i32, %c0_i32_0 : i32, i32
  }
  func.func @transform_1(%arg0: i32) -> (i32, i32) {
    %c0_i32 = arith.constant 0 : i32
    %c0_i32_0 = arith.constant 0 : i32
    return %c0_i32, %arg0 : i32, i32
  }
  func.func @transform_2(%arg0: i32) -> (i32, i32) {
    %c0_i32 = arith.constant 0 : i32
    %c0_i32_0 = arith.constant 0 : i32
    return %c0_i32, %arg0 : i32, i32
  }
}

module attributes {stable_mosaic.version = 11 : i64} {
  func.func @_gated_conv_kernel(%arg0: i32, %arg1: memref<64x400xbf16, #tpu.memory_space<vmem>>, %arg2: memref<400x512xbf16, #tpu.memory_space<vmem>>, %arg3: memref<32x512xf32, #tpu.memory_space<vmem>>) attributes {dimension_semantics = [#tpu.dimension_semantics<parallel>], iteration_bounds = array<i64: 1>, scalar_prefetch = 0 : i64, scratch_operands = 0 : i64, tpu.core_type = #tpu.core_type<tc>, window_params = [{pipeline_mode = #tpu.pipeline_mode<synchronous>, transform_indices = @transform_0, window_bounds = array<i64: 64, 400>}, {transform_indices = @transform_1, window_bounds = array<i64: 400, 512>}, {transform_indices = @transform_2, window_bounds = array<i64: 32, 512>}]} {
    %c0 = arith.constant 0 : index
    %c0_0 = arith.constant 0 : index
    %0 = vector.load %arg1[%c0, %c0_0] : memref<64x400xbf16, #tpu.memory_space<vmem>>, vector<64x400xbf16>
    %c0_1 = arith.constant 0 : index
    %c0_2 = arith.constant 0 : index
    %1 = vector.load %arg2[%c0_1, %c0_2] : memref<400x512xbf16, #tpu.memory_space<vmem>>, vector<400x512xbf16>
    %cst = arith.constant dense<0.000000e+00> : vector<64x512xf32>
    %2 = tpu.matmul %0, %1, %cst {dimension_numbers = #tpu.dot_dimension_numbers<[1], [0], [0], [1], [0, 0, 1, 1], [], []>} : vector<64x400xbf16>, vector<400x512xbf16>, vector<64x512xf32> -> vector<64x512xf32>
    %3 = vector.extract_strided_slice %2 {offsets = [0, 0], sizes = [32, 512], strides = [1, 1]} : vector<64x512xf32> to vector<32x512xf32>
    %4 = vector.extract_strided_slice %2 {offsets = [32, 0], sizes = [32, 512], strides = [1, 1]} : vector<64x512xf32> to vector<32x512xf32>
    %5 = arith.mulf %3, %4 : vector<32x512xf32>
    %c0_3 = arith.constant 0 : index
    %c0_4 = arith.constant 0 : index
    %6 = vector.load %arg3[%c0_3, %c0_4] : memref<32x512xf32, #tpu.memory_space<vmem>>, vector<32x512xf32>
    tpu.vector_store %arg3[%c0_3, %c0_4], %5 {strides = array<i32>} : memref<32x512xf32, #tpu.memory_space<vmem>>, vector<32x512xf32>,
    return
  }
  func.func @transform_0(%arg0: i32) -> (i32, i32) {
    %c0_i32 = arith.constant 0 : i32
    %c0_i32_0 = arith.constant 0 : i32
    %c0_i32_1 = arith.constant 0 : i32
    return %c0_i32, %c0_i32_0 : i32, i32
  }
  func.func @transform_1(%arg0: i32) -> (i32, i32) {
    %c0_i32 = arith.constant 0 : i32
    %c0_i32_0 = arith.constant 0 : i32
    return %c0_i32, %arg0 : i32, i32
  }
  func.func @transform_2(%arg0: i32) -> (i32, i32) {
    %c0_i32 = arith.constant 0 : i32
    %c0_i32_0 = arith.constant 0 : i32
    return %c0_i32, %arg0 : i32, i32
  }
}

module attributes {stable_mosaic.version = 11 : i64} {
  func.func @_gated_conv_kernel(%arg0: i32, %arg1: memref<64x800xbf16, #tpu.memory_space<vmem>>, %arg2: memref<800x512xbf16, #tpu.memory_space<vmem>>, %arg3: memref<32x512xf32, #tpu.memory_space<vmem>>) attributes {dimension_semantics = [#tpu.dimension_semantics<parallel>], iteration_bounds = array<i64: 1>, scalar_prefetch = 0 : i64, scratch_operands = 0 : i64, tpu.core_type = #tpu.core_type<tc>, window_params = [{pipeline_mode = #tpu.pipeline_mode<synchronous>, transform_indices = @transform_0, window_bounds = array<i64: 64, 800>}, {transform_indices = @transform_1, window_bounds = array<i64: 800, 512>}, {transform_indices = @transform_2, window_bounds = array<i64: 32, 512>}]} {
    %c0 = arith.constant 0 : index
    %c0_0 = arith.constant 0 : index
    %0 = vector.load %arg1[%c0, %c0_0] : memref<64x800xbf16, #tpu.memory_space<vmem>>, vector<64x800xbf16>
    %c0_1 = arith.constant 0 : index
    %c0_2 = arith.constant 0 : index
    %1 = vector.load %arg2[%c0_1, %c0_2] : memref<800x512xbf16, #tpu.memory_space<vmem>>, vector<800x512xbf16>
    %cst = arith.constant dense<0.000000e+00> : vector<64x512xf32>
    %2 = tpu.matmul %0, %1, %cst {dimension_numbers = #tpu.dot_dimension_numbers<[1], [0], [0], [1], [0, 0, 1, 1], [], []>} : vector<64x800xbf16>, vector<800x512xbf16>, vector<64x512xf32> -> vector<64x512xf32>
    %3 = vector.extract_strided_slice %2 {offsets = [0, 0], sizes = [32, 512], strides = [1, 1]} : vector<64x512xf32> to vector<32x512xf32>
    %4 = vector.extract_strided_slice %2 {offsets = [32, 0], sizes = [32, 512], strides = [1, 1]} : vector<64x512xf32> to vector<32x512xf32>
    %5 = arith.mulf %3, %4 : vector<32x512xf32>
    %c0_3 = arith.constant 0 : index
    %c0_4 = arith.constant 0 : index
    %6 = vector.load %arg3[%c0_3, %c0_4] : memref<32x512xf32, #tpu.memory_space<vmem>>, vector<32x512xf32>
    tpu.vector_store %arg3[%c0_3, %c0_4], %5 {strides = array<i32>} : memref<32x512xf32, #tpu.memory_space<vmem>>, vector<32x512xf32>,
    return
  }
  func.func @transform_0(%arg0: i32) -> (i32, i32) {
    %c0_i32 = arith.constant 0 : i32
    %c0_i32_0 = arith.constant 0 : i32
    %c0_i32_1 = arith.constant 0 : i32
    return %c0_i32, %c0_i32_0 : i32, i32
  }
  func.func @transform_1(%arg0: i32) -> (i32, i32) {
    %c0_i32 = arith.constant 0 : i32
    %c0_i32_0 = arith.constant 0 : i32
    return %c0_i32, %arg0 : i32, i32
  }
  func.func @transform_2(%arg0: i32) -> (i32, i32) {
    %c0_i32 = arith.constant 0 : i32
    %c0_i32_0 = arith.constant 0 : i32
    return %c0_i32, %arg0 : i32, i32
  }
}

module attributes {stable_mosaic.version = 11 : i64} {
  func.func @_gated_conv_kernel(%arg0: i32, %arg1: memref<64x800xbf16, #tpu.memory_space<vmem>>, %arg2: memref<800x128xbf16, #tpu.memory_space<vmem>>, %arg3: memref<32x128xf32, #tpu.memory_space<vmem>>) attributes {dimension_semantics = [#tpu.dimension_semantics<parallel>], iteration_bounds = array<i64: 1>, scalar_prefetch = 0 : i64, scratch_operands = 0 : i64, tpu.core_type = #tpu.core_type<tc>, window_params = [{pipeline_mode = #tpu.pipeline_mode<synchronous>, transform_indices = @transform_0, window_bounds = array<i64: 64, 800>}, {transform_indices = @transform_1, window_bounds = array<i64: 800, 128>}, {transform_indices = @transform_2, window_bounds = array<i64: 32, 128>}]} {
    %c0 = arith.constant 0 : index
    %c0_0 = arith.constant 0 : index
    %0 = vector.load %arg1[%c0, %c0_0] : memref<64x800xbf16, #tpu.memory_space<vmem>>, vector<64x800xbf16>
    %c0_1 = arith.constant 0 : index
    %c0_2 = arith.constant 0 : index
    %1 = vector.load %arg2[%c0_1, %c0_2] : memref<800x128xbf16, #tpu.memory_space<vmem>>, vector<800x128xbf16>
    %cst = arith.constant dense<0.000000e+00> : vector<64x128xf32>
    %2 = tpu.matmul %0, %1, %cst {dimension_numbers = #tpu.dot_dimension_numbers<[1], [0], [0], [1], [0, 0, 1, 1], [], []>} : vector<64x800xbf16>, vector<800x128xbf16>, vector<64x128xf32> -> vector<64x128xf32>
    %3 = vector.extract_strided_slice %2 {offsets = [0, 0], sizes = [32, 128], strides = [1, 1]} : vector<64x128xf32> to vector<32x128xf32>
    %4 = vector.extract_strided_slice %2 {offsets = [32, 0], sizes = [32, 128], strides = [1, 1]} : vector<64x128xf32> to vector<32x128xf32>
    %5 = arith.mulf %3, %4 : vector<32x128xf32>
    %c0_3 = arith.constant 0 : index
    %c0_4 = arith.constant 0 : index
    %6 = vector.load %arg3[%c0_3, %c0_4] : memref<32x128xf32, #tpu.memory_space<vmem>>, vector<32x128xf32>
    tpu.vector_store %arg3[%c0_3, %c0_4], %5 {strides = array<i32>} : memref<32x128xf32, #tpu.memory_space<vmem>>, vector<32x128xf32>,
    return
  }
  func.func @transform_0(%arg0: i32) -> (i32, i32) {
    %c0_i32 = arith.constant 0 : i32
    %c0_i32_0 = arith.constant 0 : i32
    %c0_i32_1 = arith.constant 0 : i32
    return %c0_i32, %c0_i32_0 : i32, i32
  }
  func.func @transform_1(%arg0: i32) -> (i32, i32) {
    %c0_i32 = arith.constant 0 : i32
    %c0_i32_0 = arith.constant 0 : i32
    return %c0_i32, %arg0 : i32, i32
  }
  func.func @transform_2(%arg0: i32) -> (i32, i32) {
    %c0_i32 = arith.constant 0 : i32
    %c0_i32_0 = arith.constant 0 : i32
    return %c0_i32, %arg0 : i32, i32
  }
}

module attributes {stable_mosaic.version = 11 : i64} {
  func.func @_fc_tail_kernel(%arg0: i32, %arg1: memref<8x128xbf16, #tpu.memory_space<vmem>>, %arg2: memref<128x512xbf16, #tpu.memory_space<vmem>>, %arg3: memref<256x1024xbf16, #tpu.memory_space<vmem>>, %arg4: memref<512x128xbf16, #tpu.memory_space<vmem>>, %arg5: memref<8x128xf32, #tpu.memory_space<vmem>>) attributes {dimension_semantics = [#tpu.dimension_semantics<arbitrary>], iteration_bounds = array<i64: 1>, scalar_prefetch = 0 : i64, scratch_operands = 0 : i64, tpu.core_type = #tpu.core_type<tc>, window_params = [{pipeline_mode = #tpu.pipeline_mode<synchronous>, transform_indices = @transform_0, window_bounds = array<i64: 8, 128>}, {pipeline_mode = #tpu.pipeline_mode<synchronous>, transform_indices = @transform_1, window_bounds = array<i64: 128, 512>}, {pipeline_mode = #tpu.pipeline_mode<synchronous>, transform_indices = @transform_2, window_bounds = array<i64: 256, 1024>}, {pipeline_mode = #tpu.pipeline_mode<synchronous>, transform_indices = @transform_3, window_bounds = array<i64: 512, 128>}, {pipeline_mode = #tpu.pipeline_mode<synchronous>, transform_indices = @transform_4, window_bounds = array<i64: 8, 128>}]} {
    %c0 = arith.constant 0 : index
    %c0_0 = arith.constant 0 : index
    %0 = vector.load %arg1[%c0, %c0_0] : memref<8x128xbf16, #tpu.memory_space<vmem>>, vector<8x128xbf16>
    %c0_1 = arith.constant 0 : index
    %c0_2 = arith.constant 0 : index
    %1 = vector.load %arg2[%c0_1, %c0_2] : memref<128x512xbf16, #tpu.memory_space<vmem>>, vector<128x512xbf16>
    %cst = arith.constant dense<0.000000e+00> : vector<8x512xf32>
    %2 = tpu.matmul %0, %1, %cst {dimension_numbers = #tpu.dot_dimension_numbers<[1], [0], [0], [1], [0, 0, 1, 1], [], []>} : vector<8x128xbf16>, vector<128x512xbf16>, vector<8x512xf32> -> vector<8x512xf32>
    %3 = vector.extract_strided_slice %2 {offsets = [0, 0], sizes = [8, 256], strides = [1, 1]} : vector<8x512xf32> to vector<8x256xf32>
    %4 = vector.extract_strided_slice %2 {offsets = [0, 256], sizes = [8, 256], strides = [1, 1]} : vector<8x512xf32> to vector<8x256xf32>
    %5 = arith.mulf %3, %4 : vector<8x256xf32>
    %6 = arith.truncf %5 : vector<8x256xf32> to vector<8x256xbf16>
    %c0_3 = arith.constant 0 : index
    %c0_4 = arith.constant 0 : index
    %7 = vector.load %arg3[%c0_3, %c0_4] : memref<256x1024xbf16, #tpu.memory_space<vmem>>, vector<256x1024xbf16>
    %cst_5 = arith.constant dense<0.000000e+00> : vector<8x1024xf32>
    %8 = tpu.matmul %6, %7, %cst_5 {dimension_numbers = #tpu.dot_dimension_numbers<[1], [0], [0], [1], [0, 0, 1, 1], [], []>} : vector<8x256xbf16>, vector<256x1024xbf16>, vector<8x1024xf32> -> vector<8x1024xf32>
    %9 = vector.extract_strided_slice %8 {offsets = [0, 0], sizes = [8, 512], strides = [1, 1]} : vector<8x1024xf32> to vector<8x512xf32>
    %10 = vector.extract_strided_slice %8 {offsets = [0, 512], sizes = [8, 512], strides = [1, 1]} : vector<8x1024xf32> to vector<8x512xf32>
    %11 = arith.mulf %9, %10 : vector<8x512xf32>
    %12 = arith.truncf %11 : vector<8x512xf32> to vector<8x512xbf16>
    %c0_6 = arith.constant 0 : index
    %c0_7 = arith.constant 0 : index
    %13 = vector.load %arg4[%c0_6, %c0_7] : memref<512x128xbf16, #tpu.memory_space<vmem>>, vector<512x128xbf16>
    %cst_8 = arith.constant dense<0.000000e+00> : vector<8x128xf32>
    %14 = tpu.matmul %12, %13, %cst_8 {dimension_numbers = #tpu.dot_dimension_numbers<[1], [0], [0], [1], [0, 0, 1, 1], [], []>} : vector<8x512xbf16>, vector<512x128xbf16>, vector<8x128xf32> -> vector<8x128xf32>
    %c0_9 = arith.constant 0 : index
    %c0_10 = arith.constant 0 : index
    %15 = vector.load %arg5[%c0_9, %c0_10] : memref<8x128xf32, #tpu.memory_space<vmem>>, vector<8x128xf32>
    tpu.vector_store %arg5[%c0_9, %c0_10], %14 {strides = array<i32>} : memref<8x128xf32, #tpu.memory_space<vmem>>, vector<8x128xf32>,
    return
  }
  func.func @transform_0(%arg0: i32) -> (i32, i32) {
    %c0_i32 = arith.constant 0 : i32
    %c0_i32_0 = arith.constant 0 : i32
    %c0_i32_1 = arith.constant 0 : i32
    return %c0_i32, %c0_i32_0 : i32, i32
  }
  func.func @transform_1(%arg0: i32) -> (i32, i32) {
    %c0_i32 = arith.constant 0 : i32
    %c0_i32_0 = arith.constant 0 : i32
    %c0_i32_1 = arith.constant 0 : i32
    return %c0_i32, %c0_i32_0 : i32, i32
  }
  func.func @transform_2(%arg0: i32) -> (i32, i32) {
    %c0_i32 = arith.constant 0 : i32
    %c0_i32_0 = arith.constant 0 : i32
    %c0_i32_1 = arith.constant 0 : i32
    return %c0_i32, %c0_i32_0 : i32, i32
  }
  func.func @transform_3(%arg0: i32) -> (i32, i32) {
    %c0_i32 = arith.constant 0 : i32
    %c0_i32_0 = arith.constant 0 : i32
    %c0_i32_1 = arith.constant 0 : i32
    return %c0_i32, %c0_i32_0 : i32, i32
  }
  func.func @transform_4(%arg0: i32) -> (i32, i32) {
    %c0_i32 = arith.constant 0 : i32
    %c0_i32_0 = arith.constant 0 : i32
    %c0_i32_1 = arith.constant 0 : i32
    return %c0_i32, %c0_i32_0 : i32, i32
  }
}

</mosaic_0001>

<llo_original>
// kernel: bilinear_cnn_forward.6
$region0: #{bilinear_cnn_forward.6}
  #allocation0 [shape = 'u32[]', space=smem, size = 0x4, offset = 0x4, fixed_abs, tag = 'smem constant byte address 0x4 - core index']
  #allocation1 [shape = 'u32[144,128]{1,0:T(1,128)}', space=vmem, size = 0x12000, scoped, tag = 'internal scratch']
  %s0 = inlined_call_operand.vmem [shape: bf16[32,160], index: 0, kind: input, shape index: {}]
  %s1 = inlined_call_operand.vmem [shape: bf16[160,2048], index: 1, kind: input, shape index: {}]
  %s2 = inlined_call_operand.vmem [shape: f32[16,2048], index: 2, kind: output, shape index: {}]
  %s3 = sld [smem:[#allocation0]]
  $region83: #{bilinear_cnn_forward.6} parent=0
    _
  %s5 = ssub.s32 1, %s3
  %s6 = scalar_select 0, %s5, %s3
  $region1: #{bilinear_cnn_forward.6} parent=0
    #allocation2 [shape = 'u8[655360]{0}', space=vmem, size = 0xa0000, scoped, tag = 'input window, operand 1']
    #allocation3 [shape = 'u8[131072]{0}', space=vmem, size = 0x20000, scoped, tag = 'output window, operand 0']
    loop: start=0, step=1, limit=4
    $region2: #{bilinear_cnn_forward.6} parent=1 // loop_pre_header
      _
    $region3: #{bilinear_cnn_forward.6} parent=1 // loop_header
      %s8 = sphi 0, %s12
      %p9 = scmp.ge.s32.totalorder %s8, 4
      %s16 = sphi 0, %s16
      %s18 = sphi 0, %s16
      %s19 = sphi 0, %s18
      %s33 = sphi 0, %s19
      %s39 = sphi 0, %s41
      %s42 = sphi 0, %s39
      %s43 = sphi 0, %s42
      %s59 = sphi 0, %s43
      %s65 = sphi 0, %s67
      %s68 = sphi 0, %s65
      %s69 = sphi 0, %s68
      %s85 = sphi 0, %s69
    $region4: #{bilinear_cnn_forward.6} parent=1 // loop_header_branch
      %11 = sbr.rel (%p9) target = $region8
    $region5: #{bilinear_cnn_forward.6} parent=1 // loop_body
      %s13 = ssub.s32 %s8, 1
      %s14 = ssub.s32 %s8, 2
      %s15 = sadd.s32 %s8, 1
      %s17 = sadd.s32 %s16, 1
      %p20 = scmp.eq.s32.totalorder %s8, 1
      %p21 = scmp.ne.s32.totalorder %s16, %s18
      %p22 = scmp.eq.s32.totalorder %s8, 0
      %p23 = por %p21, %p22
      %p24 = scmp.ne.s32.totalorder %s16, %s18
      %p25 = scmp.eq.s32.totalorder %s13, 1
      %p26 = por %p24, %p25
      %p27 = scmp.ne.s32.totalorder %s18, %s19
      %p28 = scmp.eq.s32.totalorder %s13, 0
      %p29 = por %p27, %p28
      %p30 = scmp.ne.s32.totalorder %s18, %s19
      %p31 = scmp.eq.s32.totalorder %s14, 1
      %p32 = por %p30, %p31
      %p34 = scmp.ne.s32.totalorder %s19, %s33
      %p35 = scmp.eq.s32.totalorder %s14, 0
      %p36 = por %p34, %p35
      %s37 = ssub.s32 %s8, %s15
      %p38 = scmp.eq.s32.totalorder %s37, 0
      %s40 = sadd.s32 %s39, 1
      %s41 = scalar_select %p38, %s39, %s40
      %p44 = pneg %p38
      %p45 = scmp.eq.s32.totalorder %s8, 1
      %p46 = por %p44, %p45
      %p47 = scmp.ne.s32.totalorder %s39, %s42
      %p48 = scmp.eq.s32.totalorder %s8, 0
      %p49 = por %p47, %p48
      %p50 = scmp.ne.s32.totalorder %s39, %s42
      %p51 = scmp.eq.s32.totalorder %s13, 1
      %p52 = por %p50, %p51
      %p53 = scmp.ne.s32.totalorder %s42, %s43
      %p54 = scmp.eq.s32.totalorder %s13, 0
      %p55 = por %p53, %p54
      %p56 = scmp.ne.s32.totalorder %s42, %s43
      %p57 = scmp.eq.s32.totalorder %s14, 1
      %p58 = por %p56, %p57
      %p60 = scmp.ne.s32.totalorder %s43, %s59
      %p61 = scmp.eq.s32.totalorder %s14, 0
      %p62 = por %p60, %p61
      %s63 = ssub.s32 %s8, %s15
      %p64 = scmp.eq.s32.totalorder %s63, 0
      %s66 = sadd.s32 %s65, 1
      %s67 = scalar_select %p64, %s65, %s66
      %p70 = pneg %p64
      %p71 = scmp.eq.s32.totalorder %s8, 1
      %p72 = por %p70, %p71
      %p73 = scmp.ne.s32.totalorder %s65, %s68
      %p74 = scmp.eq.s32.totalorder %s8, 0
      %p75 = por %p73, %p74
      %p76 = scmp.ne.s32.totalorder %s65, %s68
      %p77 = scmp.eq.s32.totalorder %s13, 1
      %p78 = por %p76, %p77
      %p79 = scmp.ne.s32.totalorder %s68, %s69
      %p80 = scmp.eq.s32.totalorder %s13, 0
      %p81 = por %p79, %p80
      %p82 = scmp.ne.s32.totalorder %s68, %s69
      %p83 = scmp.eq.s32.totalorder %s14, 1
      %p84 = por %p82, %p83
      %p86 = scmp.ne.s32.totalorder %s69, %s85
      %p87 = scmp.eq.s32.totalorder %s14, 0
      %p88 = por %p86, %p87
      %p89 = scmp.le.s32.totalorder 1, %s8
      %p90 = scmp.lt.s32.totalorder %s8, 3
      %p91 = pnand %p89, %p90
      %p92 = pneg %p91
      // Predicated region
      $region9: #{bilinear_cnn_forward.6} parent=5 // pred_check
        _
      $region10: #{bilinear_cnn_forward.6} parent=5 // pred_check_branch
        %94 = sbr.rel (%p91) target = $region12
      $region11: #{bilinear_cnn_forward.6} parent=5 // pred_region
        %s95 = ssub.s32 %s8, 1
        // Predicated region
        $region13: #{bilinear_cnn_forward.6} parent=11 // pred_check
          %p96 = pneg %p29
        $region14: #{bilinear_cnn_forward.6} parent=11 // pred_check_branch
          %98 = sbr.rel (%p96) target = $region16
        $region15: #{bilinear_cnn_forward.6} parent=11 // pred_region
          _
        $region16: #{bilinear_cnn_forward.6} parent=11 // pred_fallthru
          _
      $region12: #{bilinear_cnn_forward.6} parent=5 // pred_fallthru
        _
      %p99 = scmp.lt.s32.totalorder %s8, 2
      // Predicated region
      $region17: #{bilinear_cnn_forward.6} parent=5 // pred_check
        %p100 = pneg %p99
      $region18: #{bilinear_cnn_forward.6} parent=5 // pred_check_branch
        %102 = sbr.rel (%p100) target = $region20
      $region19: #{bilinear_cnn_forward.6} parent=5 // pred_region
        // Predicated region
        $region21: #{bilinear_cnn_forward.6} parent=19 // pred_check
          %p103 = pneg %p49
        $region22: #{bilinear_cnn_forward.6} parent=19 // pred_check_branch
          %105 = sbr.rel (%p103) target = $region24
        $region23: #{bilinear_cnn_forward.6} parent=19 // pred_region
          %s106 = sand.u32 %s39, 1
          %s107 = sand.u32 %s39, 1
          %s108 = smul.addr %s107, 640
          %s109 = scalar_lea.vmem [#allocation2], %s108
          %s110 = smul.u32 8, %s8
          %s111 = smul.addr %s110, 4
          %s112 = scalar_lea.vmem %s1, %s111
          // Predicated region
          $region25: #{bilinear_cnn_forward.6} parent=23 // pred_check
            _
          $region26: #{bilinear_cnn_forward.6} parent=23 // pred_check_branch
            %114 = sbr.rel (0) target = $region28
          $region27: #{bilinear_cnn_forward.6} parent=23 // pred_region
            // Predicated region
            $region29: #{bilinear_cnn_forward.6} parent=27 // pred_check
              _
            $region30: #{bilinear_cnn_forward.6} parent=27 // pred_check_branch
              %116 = sbr.rel (0) target = $region32
            $region31: #{bilinear_cnn_forward.6} parent=27 // pred_region
              loop: start=0, step=1, limit=1
              $region33: #{bilinear_cnn_forward.6} parent=31 // loop_pre_header
                _
              $region34: #{bilinear_cnn_forward.6} parent=31 // loop_header
                %s118 = sphi 0, %s122
                %p119 = scmp.ge.s32.totalorder %s118, 1
                %s123 = sphi %s112, %s112
                %s124 = sphi %s109, %s109
              $region35: #{bilinear_cnn_forward.6} parent=31 // loop_header_branch
                %121 = sbr.rel (%p119) target = $region39
              $region36: #{bilinear_cnn_forward.6} parent=31 // loop_body
                %v125 = vld [vmem:[%s123] sm:$0xff]
                %126 = vst [vmem:[%s124] sm:$0xff] %v125
                %v127 = vld [vmem:[%s123 + $0x8] sm:$0xff]
                %128 = vst [vmem:[%s124 + $0x8] sm:$0xff] %v127
                %v129 = vld [vmem:[%s123 + $0x10] sm:$0xff]
                %130 = vst [vmem:[%s124 + $0x10] sm:$0xff] %v129
                %v131 = vld [vmem:[%s123 + $0x18] sm:$0xff]
                %132 = vst [vmem:[%s124 + $0x18] sm:$0xff] %v131
                %v133 = vld [vmem:[%s123 + $0x40] sm:$0xff]
                %134 = vst [vmem:[%s124 + $0x20] sm:$0xff] %v133
                %v135 = vld [vmem:[%s123 + $0x48] sm:$0xff]
                %136 = vst [vmem:[%s124 + $0x28] sm:$0xff] %v135
                %v137 = vld [vmem:[%s123 + $0x50] sm:$0xff]
                %138 = vst [vmem:[%s124 + $0x30] sm:$0xff] %v137
                %v139 = vld [vmem:[%s123 + $0x58] sm:$0xff]
                %140 = vst [vmem:[%s124 + $0x38] sm:$0xff] %v139
                %v141 = vld [vmem:[%s123 + $0x80] sm:$0xff]
                %142 = vst [vmem:[%s124 + $0x40] sm:$0xff] %v141
                %v143 = vld [vmem:[%s123 + $0x88] sm:$0xff]
                %144 = vst [vmem:[%s124 + $0x48] sm:$0xff] %v143
                %v145 = vld [vmem:[%s123 + $0x90] sm:$0xff]
                %146 = vst [vmem:[%s124 + $0x50] sm:$0xff] %v145
                %v147 = vld [vmem:[%s123 + $0x98] sm:$0xff]
                %148 = vst [vmem:[%s124 + $0x58] sm:$0xff] %v147
                %v149 = vld [vmem:[%s123 + $0xc0] sm:$0xff]
                %150 = vst [vmem:[%s124 + $0x60] sm:$0xff] %v149
                %v151 = vld [vmem:[%s123 + $0xc8] sm:$0xff]
                %152 = vst [vmem:[%s124 + $0x68] sm:$0xff] %v151
                %v153 = vld [vmem:[%s123 + $0xd0] sm:$0xff]
                %154 = vst [vmem:[%s124 + $0x70] sm:$0xff] %v153
                %v155 = vld [vmem:[%s123 + $0xd8] sm:$0xff]
                %156 = vst [vmem:[%s124 + $0x78] sm:$0xff] %v155
                %v157 = vld [vmem:[%s123 + $0x100] sm:$0xff]
                %158 = vst [vmem:[%s124 + $0x80] sm:$0xff] %v157
                %v159 = vld [vmem:[%s123 + $0x108] sm:$0xff]
                %160 = vst [vmem:[%s124 + $0x88] sm:$0xff] %v159
                %v161 = vld [vmem:[%s123 + $0x110] sm:$0xff]
                %162 = vst [vmem:[%s124 + $0x90] sm:$0xff] %v161
                %v163 = vld [vmem:[%s123 + $0x118] sm:$0xff]
                %164 = vst [vmem:[%s124 + $0x98] sm:$0xff] %v163
                %v165 = vld [vmem:[%s123 + $0x140] sm:$0xff]
                %166 = vst [vmem:[%s124 + $0xa0] sm:$0xff] %v165
                %v167 = vld [vmem:[%s123 + $0x148] sm:$0xff]
                %168 = vst [vmem:[%s124 + $0xa8] sm:$0xff] %v167
                %v169 = vld [vmem:[%s123 + $0x150] sm:$0xff]
                %170 = vst [vmem:[%s124 + $0xb0] sm:$0xff] %v169
                %v171 = vld [vmem:[%s123 + $0x158] sm:$0xff]
                %172 = vst [vmem:[%s124 + $0xb8] sm:$0xff] %v171
                %v173 = vld [vmem:[%s123 + $0x180] sm:$0xff]
                %174 = vst [vmem:[%s124 + $0xc0] sm:$0xff] %v173
                %v175 = vld [vmem:[%s123 + $0x188] sm:$0xff]
                %176 = vst [vmem:[%s124 + $0xc8] sm:$0xff] %v175
                %v177 = vld [vmem:[%s123 + $0x190] sm:$0xff]
                %178 = vst [vmem:[%s124 + $0xd0] sm:$0xff] %v177
                %v179 = vld [vmem:[%s123 + $0x198] sm:$0xff]
                %180 = vst [vmem:[%s124 + $0xd8] sm:$0xff] %v179
                %v181 = vld [vmem:[%s123 + $0x1c0] sm:$0xff]
                %182 = vst [vmem:[%s124 + $0xe0] sm:$0xff] %v181
                %v183 = vld [vmem:[%s123 + $0x1c8] sm:$0xff]
                %184 = vst [vmem:[%s124 + $0xe8] sm:$0xff] %v183
                %v185 = vld [vmem:[%s123 + $0x1d0] sm:$0xff]
                %186 = vst [vmem:[%s124 + $0xf0] sm:$0xff] %v185
                %v187 = vld [vmem:[%s123 + $0x1d8] sm:$0xff]
                %188 = vst [vmem:[%s124 + $0xf8] sm:$0xff] %v187
                %v189 = vld [vmem:[%s123 + $0x200] sm:$0xff]
                %190 = vst [vmem:[%s124 + $0x100] sm:$0xff] %v189
                %v191 = vld [vmem:[%s123 + $0x208] sm:$0xff]
                %192 = vst [vmem:[%s124 + $0x108] sm:$0xff] %v191
                %v193 = vld [vmem:[%s123 + $0x210] sm:$0xff]
                %194 = vst [vmem:[%s124 + $0x110] sm:$0xff] %v193
                %v195 = vld [vmem:[%s123 + $0x218] sm:$0xff]
                %196 = vst [vmem:[%s124 + $0x118] sm:$0xff] %v195
                %v197 = vld [vmem:[%s123 + $0x240] sm:$0xff]
                %198 = vst [vmem:[%s124 + $0x120] sm:$0xff] %v197
                %v199 = vld [vmem:[%s123 + $0x248] sm:$0xff]
                %200 = vst [vmem:[%s124 + $0x128] sm:$0xff] %v199
                %v201 = vld [vmem:[%s123 + $0x250] sm:$0xff]
                %202 = vst [vmem:[%s124 + $0x130] sm:$0xff] %v201
                %v203 = vld [vmem:[%s123 + $0x258] sm:$0xff]
                %204 = vst [vmem:[%s124 + $0x138] sm:$0xff] %v203
                %v205 = vld [vmem:[%s123 + $0x280] sm:$0xff]
                %206 = vst [vmem:[%s124 + $0x140] sm:$0xff] %v205
                %v207 = vld [vmem:[%s123 + $0x288] sm:$0xff]
                %208 = vst [vmem:[%s124 + $0x148] sm:$0xff] %v207
                %v209 = vld [vmem:[%s123 + $0x290] sm:$0xff]
                %210 = vst [vmem:[%s124 + $0x150] sm:$0xff] %v209
                %v211 = vld [vmem:[%s123 + $0x298] sm:$0xff]
                %212 = vst [vmem:[%s124 + $0x158] sm:$0xff] %v211
                %v213 = vld [vmem:[%s123 + $0x2c0] sm:$0xff]
                %214 = vst [vmem:[%s124 + $0x160] sm:$0xff] %v213
                %v215 = vld [vmem:[%s123 + $0x2c8] sm:$0xff]
                %216 = vst [vmem:[%s124 + $0x168] sm:$0xff] %v215
                %v217 = vld [vmem:[%s123 + $0x2d0] sm:$0xff]
                %218 = vst [vmem:[%s124 + $0x170] sm:$0xff] %v217
                %v219 = vld [vmem:[%s123 + $0x2d8] sm:$0xff]
                %220 = vst [vmem:[%s124 + $0x178] sm:$0xff] %v219
                %v221 = vld [vmem:[%s123 + $0x300] sm:$0xff]
                %222 = vst [vmem:[%s124 + $0x180] sm:$0xff] %v221
                %v223 = vld [vmem:[%s123 + $0x308] sm:$0xff]
                %224 = vst [vmem:[%s124 + $0x188] sm:$0xff] %v223
                %v225 = vld [vmem:[%s123 + $0x310] sm:$0xff]
                %226 = vst [vmem:[%s124 + $0x190] sm:$0xff] %v225
                %v227 = vld [vmem:[%s123 + $0x318] sm:$0xff]
                %228 = vst [vmem:[%s124 + $0x198] sm:$0xff] %v227
                %v229 = vld [vmem:[%s123 + $0x340] sm:$0xff]
                %230 = vst [vmem:[%s124 + $0x1a0] sm:$0xff] %v229
                %v231 = vld [vmem:[%s123 + $0x348] sm:$0xff]
                %232 = vst [vmem:[%s124 + $0x1a8] sm:$0xff] %v231
                %v233 = vld [vmem:[%s123 + $0x350] sm:$0xff]
                %234 = vst [vmem:[%s124 + $0x1b0] sm:$0xff] %v233
                %v235 = vld [vmem:[%s123 + $0x358] sm:$0xff]
                %236 = vst [vmem:[%s124 + $0x1b8] sm:$0xff] %v235
                %v237 = vld [vmem:[%s123 + $0x380] sm:$0xff]
                %238 = vst [vmem:[%s124 + $0x1c0] sm:$0xff] %v237
                %v239 = vld [vmem:[%s123 + $0x388] sm:$0xff]
                %240 = vst [vmem:[%s124 + $0x1c8] sm:$0xff] %v239
                %v241 = vld [vmem:[%s123 + $0x390] sm:$0xff]
                %242 = vst [vmem:[%s124 + $0x1d0] sm:$0xff] %v241
                %v243 = vld [vmem:[%s123 + $0x398] sm:$0xff]
                %244 = vst [vmem:[%s124 + $0x1d8] sm:$0xff] %v243
                %v245 = vld [vmem:[%s123 + $0x3c0] sm:$0xff]
                %246 = vst [vmem:[%s124 + $0x1e0] sm:$0xff] %v245
                %v247 = vld [vmem:[%s123 + $0x3c8] sm:$0xff]
                %248 = vst [vmem:[%s124 + $0x1e8] sm:$0xff] %v247
                %v249 = vld [vmem:[%s123 + $0x3d0] sm:$0xff]
                %250 = vst [vmem:[%s124 + $0x1f0] sm:$0xff] %v249
                %v251 = vld [vmem:[%s123 + $0x3d8] sm:$0xff]
                %252 = vst [vmem:[%s124 + $0x1f8] sm:$0xff] %v251
                %v253 = vld [vmem:[%s123 + $0x400] sm:$0xff]
                %254 = vst [vmem:[%s124 + $0x200] sm:$0xff] %v253
                %v255 = vld [vmem:[%s123 + $0x408] sm:$0xff]
                %256 = vst [vmem:[%s124 + $0x208] sm:$0xff] %v255
                %v257 = vld [vmem:[%s123 + $0x410] sm:$0xff]
                %258 = vst [vmem:[%s124 + $0x210] sm:$0xff] %v257
                %v259 = vld [vmem:[%s123 + $0x418] sm:$0xff]
                %260 = vst [vmem:[%s124 + $0x218] sm:$0xff] %v259
                %v261 = vld [vmem:[%s123 + $0x440] sm:$0xff]
                %262 = vst [vmem:[%s124 + $0x220] sm:$0xff] %v261
                %v263 = vld [vmem:[%s123 + $0x448] sm:$0xff]
                %264 = vst [vmem:[%s124 + $0x228] sm:$0xff] %v263
                %v265 = vld [vmem:[%s123 + $0x450] sm:$0xff]
                %266 = vst [vmem:[%s124 + $0x230] sm:$0xff] %v265
                %v267 = vld [vmem:[%s123 + $0x458] sm:$0xff]
                %268 = vst [vmem:[%s124 + $0x238] sm:$0xff] %v267
                %v269 = vld [vmem:[%s123 + $0x480] sm:$0xff]
                %270 = vst [vmem:[%s124 + $0x240] sm:$0xff] %v269
                %v271 = vld [vmem:[%s123 + $0x488] sm:$0xff]
                %272 = vst [vmem:[%s124 + $0x248] sm:$0xff] %v271
                %v273 = vld [vmem:[%s123 + $0x490] sm:$0xff]
                %274 = vst [vmem:[%s124 + $0x250] sm:$0xff] %v273
                %v275 = vld [vmem:[%s123 + $0x498] sm:$0xff]
                %276 = vst [vmem:[%s124 + $0x258] sm:$0xff] %v275
                %v277 = vld [vmem:[%s123 + $0x4c0] sm:$0xff]
                %278 = vst [vmem:[%s124 + $0x260] sm:$0xff] %v277
                %v279 = vld [vmem:[%s123 + $0x4c8] sm:$0xff]
                %280 = vst [vmem:[%s124 + $0x268] sm:$0xff] %v279
                %v281 = vld [vmem:[%s123 + $0x4d0] sm:$0xff]
                %282 = vst [vmem:[%s124 + $0x270] sm:$0xff] %v281
                %v283 = vld [vmem:[%s123 + $0x4d8] sm:$0xff]
                %284 = vst [vmem:[%s124 + $0x278] sm:$0xff] %v283
              $region37: #{bilinear_cnn_forward.6} parent=31 // loop_footer
                %s122 = sadd.s32 1, %s118
              $region38: #{bilinear_cnn_forward.6} parent=31 // loop_footer_branch
                %117 = sbr.rel target = $region34
              $region39: #{bilinear_cnn_forward.6} parent=31 // loop_exit
                _
            $region32: #{bilinear_cnn_forward.6} parent=27 // pred_fallthru
              _
            // Predicated region
            $region40: #{bilinear_cnn_forward.6} parent=27 // pred_check
              _
            $region41: #{bilinear_cnn_forward.6} parent=27 // pred_check_branch
              %286 = sbr.rel target = $region43
            $region42: #{bilinear_cnn_forward.6} parent=27 // pred_region
              _
            $region43: #{bilinear_cnn_forward.6} parent=27 // pred_fallthru
              _
          $region28: #{bilinear_cnn_forward.6} parent=23 // pred_fallthru
            _
          %287 = vnop
        $region24: #{bilinear_cnn_forward.6} parent=19 // pred_fallthru
          _
      $region20: #{bilinear_cnn_forward.6} parent=5 // pred_fallthru
        _
      %p288 = scmp.le.s32.totalorder 1, %s8
      %p289 = scmp.lt.s32.totalorder %s8, 3
      %p290 = pnand %p288, %p289
      %p291 = pneg %p290
      // Predicated region
      $region44: #{bilinear_cnn_forward.6} parent=5 // pred_check
        _
      $region45: #{bilinear_cnn_forward.6} parent=5 // pred_check_branch
        %293 = sbr.rel (%p290) target = $region47
      $region46: #{bilinear_cnn_forward.6} parent=5 // pred_region
        %s294 = ssub.s32 %s8, 1
        %s295 = sand.u32 %s42, 1
        %s296 = sand.u32 %s42, 1
        %s297 = smul.addr %s296, 640
        %s298 = scalar_lea.vmem [#allocation2], %s297
        // Predicated region
        $region48: #{bilinear_cnn_forward.6} parent=46 // pred_check
          %p299 = pneg %p55
        $region49: #{bilinear_cnn_forward.6} parent=46 // pred_check_branch
          %301 = sbr.rel (%p299) target = $region51
        $region50: #{bilinear_cnn_forward.6} parent=46 // pred_region
          _
        $region51: #{bilinear_cnn_forward.6} parent=46 // pred_fallthru
          _
        %p302 = pneg %p29
        %p303 = pneg %p26
        %s304 = sand.u32 %s42, 1
        %s305 = sand.u32 %s42, 1
        %s306 = smul.addr %s305, 640
        %s307 = scalar_lea.vmem [#allocation2], %s306
        %p308 = pneg %p55
        %p309 = pneg %p52
        %p310 = pneg %p81
        %p311 = pneg %p78
        %s312 = sand.u32 %s68, 1
        %s313 = sand.u32 %s68, 1
        %s314 = smul.addr %s313, 128
        %s315 = scalar_lea.vmem [#allocation3], %s314
        %s316 = smul.u32 8, %s13
        %s317 = smul.u32 8, %s13
        %v319 = vld [vmem:[%s0] sm:$0xff]
        %v320 = vld [vmem:[%s0 + $0x8] sm:$0xff]
        %v321 = vld [vmem:[%s0 + $0x10] sm:$0xff]
        %v322 = vld [vmem:[%s0 + $0x18] sm:$0xff]
        %v323 = vld [vmem:[%s298] sm:$0xff]
        %v324 = vld [vmem:[%s298 + $0x8] sm:$0xff]
        %v325 = vld [vmem:[%s298 + $0x10] sm:$0xff]
        %v326 = vld [vmem:[%s298 + $0x18] sm:$0xff]
        %v327 = vld [vmem:[%s298 + $0x20] sm:$0xff]
        %v328 = vld [vmem:[%s298 + $0x28] sm:$0xff]
        %v329 = vld [vmem:[%s298 + $0x30] sm:$0xff]
        %v330 = vld [vmem:[%s298 + $0x38] sm:$0xff]
        %v331 = vld [vmem:[%s298 + $0x40] sm:$0xff]
        %v332 = vld [vmem:[%s298 + $0x48] sm:$0xff]
        %v333 = vld [vmem:[%s298 + $0x50] sm:$0xff]
        %v334 = vld [vmem:[%s298 + $0x58] sm:$0xff]
        %v335 = vld [vmem:[%s298 + $0x60] sm:$0xff]
        %v336 = vld [vmem:[%s298 + $0x68] sm:$0xff]
        %v337 = vld [vmem:[%s298 + $0x70] sm:$0xff]
        %v338 = vld [vmem:[%s298 + $0x78] sm:$0xff]
        %v339 = vld [vmem:[%s298 + $0x80] sm:$0xff]
        %v340 = vld [vmem:[%s298 + $0x88] sm:$0xff]
        %v341 = vld [vmem:[%s298 + $0x90] sm:$0xff]
        %v342 = vld [vmem:[%s298 + $0x98] sm:$0xff]
        %v343 = vld [vmem:[%s298 + $0xa0] sm:$0xff]
        %v344 = vld [vmem:[%s298 + $0xa8] sm:$0xff]
        %v345 = vld [vmem:[%s298 + $0xb0] sm:$0xff]
        %v346 = vld [vmem:[%s298 + $0xb8] sm:$0xff]
        %v347 = vld [vmem:[%s298 + $0xc0] sm:$0xff]
        %v348 = vld [vmem:[%s298 + $0xc8] sm:$0xff]
        %v349 = vld [vmem:[%s298 + $0xd0] sm:$0xff]
        %v350 = vld [vmem:[%s298 + $0xd8] sm:$0xff]
        %v351 = vld [vmem:[%s298 + $0xe0] sm:$0xff]
        %v352 = vld [vmem:[%s298 + $0xe8] sm:$0xff]
        %v353 = vld [vmem:[%s298 + $0xf0] sm:$0xff]
        %v354 = vld [vmem:[%s298 + $0xf8] sm:$0xff]
        %v355 = vld [vmem:[%s298 + $0x100] sm:$0xff]
        %v356 = vld [vmem:[%s298 + $0x108] sm:$0xff]
        %v357 = vld [vmem:[%s298 + $0x110] sm:$0xff]
        %v358 = vld [vmem:[%s298 + $0x118] sm:$0xff]
        %v359 = vld [vmem:[%s298 + $0x120] sm:$0xff]
        %v360 = vld [vmem:[%s298 + $0x128] sm:$0xff]
        %v361 = vld [vmem:[%s298 + $0x130] sm:$0xff]
        %v362 = vld [vmem:[%s298 + $0x138] sm:$0xff]
        %v363 = vld [vmem:[%s298 + $0x140] sm:$0xff]
        %v364 = vld [vmem:[%s298 + $0x148] sm:$0xff]
        %v365 = vld [vmem:[%s298 + $0x150] sm:$0xff]
        %v366 = vld [vmem:[%s298 + $0x158] sm:$0xff]
        %v367 = vld [vmem:[%s298 + $0x160] sm:$0xff]
        %v368 = vld [vmem:[%s298 + $0x168] sm:$0xff]
        %v369 = vld [vmem:[%s298 + $0x170] sm:$0xff]
        %v370 = vld [vmem:[%s298 + $0x178] sm:$0xff]
        %v371 = vld [vmem:[%s298 + $0x180] sm:$0xff]
        %v372 = vld [vmem:[%s298 + $0x188] sm:$0xff]
        %v373 = vld [vmem:[%s298 + $0x190] sm:$0xff]
        %v374 = vld [vmem:[%s298 + $0x198] sm:$0xff]
        %v375 = vld [vmem:[%s298 + $0x1a0] sm:$0xff]
        %v376 = vld [vmem:[%s298 + $0x1a8] sm:$0xff]
        %v377 = vld [vmem:[%s298 + $0x1b0] sm:$0xff]
        %v378 = vld [vmem:[%s298 + $0x1b8] sm:$0xff]
        %v379 = vld [vmem:[%s298 + $0x1c0] sm:$0xff]
        %v380 = vld [vmem:[%s298 + $0x1c8] sm:$0xff]
        %v381 = vld [vmem:[%s298 + $0x1d0] sm:$0xff]
        %v382 = vld [vmem:[%s298 + $0x1d8] sm:$0xff]
        %v383 = vld [vmem:[%s298 + $0x1e0] sm:$0xff]
        %v384 = vld [vmem:[%s298 + $0x1e8] sm:$0xff]
        %v385 = vld [vmem:[%s298 + $0x1f0] sm:$0xff]
        %v386 = vld [vmem:[%s298 + $0x1f8] sm:$0xff]
        %v387 = vld [vmem:[%s298 + $0x200] sm:$0xff]
        %v388 = vld [vmem:[%s298 + $0x208] sm:$0xff]
        %v389 = vld [vmem:[%s298 + $0x210] sm:$0xff]
        %v390 = vld [vmem:[%s298 + $0x218] sm:$0xff]
        %v391 = vld [vmem:[%s298 + $0x220] sm:$0xff]
        %v392 = vld [vmem:[%s298 + $0x228] sm:$0xff]
        %v393 = vld [vmem:[%s298 + $0x230] sm:$0xff]
        %v394 = vld [vmem:[%s298 + $0x238] sm:$0xff]
        %v395 = vld [vmem:[%s298 + $0x240] sm:$0xff]
        %v396 = vld [vmem:[%s298 + $0x248] sm:$0xff]
        %v397 = vld [vmem:[%s298 + $0x250] sm:$0xff]
        %v398 = vld [vmem:[%s298 + $0x258] sm:$0xff]
        %v399 = vld [vmem:[%s298 + $0x260] sm:$0xff]
        %v400 = vld [vmem:[%s298 + $0x268] sm:$0xff]
        %v401 = vld [vmem:[%s298 + $0x270] sm:$0xff]
        %v402 = vld [vmem:[%s298 + $0x278] sm:$0xff]
        %v407 = vunpack.c.l.b16 %v319
        %v408 = vunpack.c.h.b16 %v319
        %v409 = vunpack.c.l.b16 %v320
        %v410 = vunpack.c.h.b16 %v320
        %v411 = vunpack.c.l.b16 %v321
        %v412 = vunpack.c.h.b16 %v321
        %v413 = vunpack.c.l.b16 %v322
        %v414 = vunpack.c.h.b16 %v322
        %v415 = vpack.c.b16 %v409, %v407
        %v416 = vpack.c.b16 %v410, %v408
        %v417 = vpack.c.b16 %v413, %v411
        %v418 = vpack.c.b16 %v414, %v412
        %v501 = vunpack.c.l.b16 %v323
        %v502 = vunpack.c.h.b16 %v323
        %v503 = vunpack.c.l.b16 %v324
        %v504 = vunpack.c.h.b16 %v324
        %v505 = vunpack.c.l.b16 %v325
        %v506 = vunpack.c.h.b16 %v325
        %v507 = vunpack.c.l.b16 %v326
        %v508 = vunpack.c.h.b16 %v326
        %v509 = vunpack.c.l.b16 %v327
        %v510 = vunpack.c.h.b16 %v327
        %v511 = vunpack.c.l.b16 %v328
        %v512 = vunpack.c.h.b16 %v328
        %v513 = vunpack.c.l.b16 %v329
        %v514 = vunpack.c.h.b16 %v329
        %v515 = vunpack.c.l.b16 %v330
        %v516 = vunpack.c.h.b16 %v330
        %v517 = vunpack.c.l.b16 %v331
        %v518 = vunpack.c.h.b16 %v331
        %v519 = vunpack.c.l.b16 %v332
        %v520 = vunpack.c.h.b16 %v332
        %v521 = vunpack.c.l.b16 %v333
        %v522 = vunpack.c.h.b16 %v333
        %v523 = vunpack.c.l.b16 %v334
        %v524 = vunpack.c.h.b16 %v334
        %v525 = vunpack.c.l.b16 %v335
        %v526 = vunpack.c.h.b16 %v335
        %v527 = vunpack.c.l.b16 %v336
        %v528 = vunpack.c.h.b16 %v336
        %v529 = vunpack.c.l.b16 %v337
        %v530 = vunpack.c.h.b16 %v337
        %v531 = vunpack.c.l.b16 %v338
        %v532 = vunpack.c.h.b16 %v338
        %v533 = vunpack.c.l.b16 %v339
        %v534 = vunpack.c.h.b16 %v339
        %v535 = vunpack.c.l.b16 %v340
        %v536 = vunpack.c.h.b16 %v340
        %v537 = vunpack.c.l.b16 %v341
        %v538 = vunpack.c.h.b16 %v341
        %v539 = vunpack.c.l.b16 %v342
        %v540 = vunpack.c.h.b16 %v342
        %v541 = vunpack.c.l.b16 %v343
        %v542 = vunpack.c.h.b16 %v343
        %v543 = vunpack.c.l.b16 %v344
        %v544 = vunpack.c.h.b16 %v344
        %v545 = vunpack.c.l.b16 %v345
        %v546 = vunpack.c.h.b16 %v345
        %v547 = vunpack.c.l.b16 %v346
        %v548 = vunpack.c.h.b16 %v346
        %v549 = vunpack.c.l.b16 %v347
        %v550 = vunpack.c.h.b16 %v347
        %v551 = vunpack.c.l.b16 %v348
        %v552 = vunpack.c.h.b16 %v348
        %v553 = vunpack.c.l.b16 %v349
        %v554 = vunpack.c.h.b16 %v349
        %v555 = vunpack.c.l.b16 %v350
        %v556 = vunpack.c.h.b16 %v350
        %v557 = vunpack.c.l.b16 %v351
        %v558 = vunpack.c.h.b16 %v351
        %v559 = vunpack.c.l.b16 %v352
        %v560 = vunpack.c.h.b16 %v352
        %v561 = vunpack.c.l.b16 %v353
        %v562 = vunpack.c.h.b16 %v353
        %v563 = vunpack.c.l.b16 %v354
        %v564 = vunpack.c.h.b16 %v354
        %v565 = vunpack.c.l.b16 %v355
        %v566 = vunpack.c.h.b16 %v355
        %v567 = vunpack.c.l.b16 %v356
        %v568 = vunpack.c.h.b16 %v356
        %v569 = vunpack.c.l.b16 %v357
        %v570 = vunpack.c.h.b16 %v357
        %v571 = vunpack.c.l.b16 %v358
        %v572 = vunpack.c.h.b16 %v358
        %v573 = vunpack.c.l.b16 %v359
        %v574 = vunpack.c.h.b16 %v359
        %v575 = vunpack.c.l.b16 %v360
        %v576 = vunpack.c.h.b16 %v360
        %v577 = vunpack.c.l.b16 %v361
        %v578 = vunpack.c.h.b16 %v361
        %v579 = vunpack.c.l.b16 %v362
        %v580 = vunpack.c.h.b16 %v362
        %v581 = vunpack.c.l.b16 %v363
        %v582 = vunpack.c.h.b16 %v363
        %v583 = vunpack.c.l.b16 %v364
        %v584 = vunpack.c.h.b16 %v364
        %v585 = vunpack.c.l.b16 %v365
        %v586 = vunpack.c.h.b16 %v365
        %v587 = vunpack.c.l.b16 %v366
        %v588 = vunpack.c.h.b16 %v366
        %v589 = vunpack.c.l.b16 %v367
        %v590 = vunpack.c.h.b16 %v367
        %v591 = vunpack.c.l.b16 %v368
        %v592 = vunpack.c.h.b16 %v368
        %v593 = vunpack.c.l.b16 %v369
        %v594 = vunpack.c.h.b16 %v369
        %v595 = vunpack.c.l.b16 %v370
        %v596 = vunpack.c.h.b16 %v370
        %v597 = vunpack.c.l.b16 %v371
        %v598 = vunpack.c.h.b16 %v371
        %v599 = vunpack.c.l.b16 %v372
        %v600 = vunpack.c.h.b16 %v372
        %v601 = vunpack.c.l.b16 %v373
        %v602 = vunpack.c.h.b16 %v373
        %v603 = vunpack.c.l.b16 %v374
        %v604 = vunpack.c.h.b16 %v374
        %v605 = vunpack.c.l.b16 %v375
        %v606 = vunpack.c.h.b16 %v375
        %v607 = vunpack.c.l.b16 %v376
        %v608 = vunpack.c.h.b16 %v376
        %v609 = vunpack.c.l.b16 %v377
        %v610 = vunpack.c.h.b16 %v377
        %v611 = vunpack.c.l.b16 %v378
        %v612 = vunpack.c.h.b16 %v378
        %v613 = vunpack.c.l.b16 %v379
        %v614 = vunpack.c.h.b16 %v379
        %v615 = vunpack.c.l.b16 %v380
        %v616 = vunpack.c.h.b16 %v380
        %v617 = vunpack.c.l.b16 %v381
        %v618 = vunpack.c.h.b16 %v381
        %v619 = vunpack.c.l.b16 %v382
        %v620 = vunpack.c.h.b16 %v382
        %v621 = vunpack.c.l.b16 %v383
        %v622 = vunpack.c.h.b16 %v383
        %v623 = vunpack.c.l.b16 %v384
        %v624 = vunpack.c.h.b16 %v384
        %v625 = vunpack.c.l.b16 %v385
        %v626 = vunpack.c.h.b16 %v385
        %v627 = vunpack.c.l.b16 %v386
        %v628 = vunpack.c.h.b16 %v386
        %v629 = vunpack.c.l.b16 %v387
        %v630 = vunpack.c.h.b16 %v387
        %v631 = vunpack.c.l.b16 %v388
        %v632 = vunpack.c.h.b16 %v388
        %v633 = vunpack.c.l.b16 %v389
        %v634 = vunpack.c.h.b16 %v389
        %v635 = vunpack.c.l.b16 %v390
        %v636 = vunpack.c.h.b16 %v390
        %v637 = vunpack.c.l.b16 %v391
        %v638 = vunpack.c.h.b16 %v391
        %v639 = vunpack.c.l.b16 %v392
        %v640 = vunpack.c.h.b16 %v392
        %v641 = vunpack.c.l.b16 %v393
        %v642 = vunpack.c.h.b16 %v393
        %v643 = vunpack.c.l.b16 %v394
        %v644 = vunpack.c.h.b16 %v394
        %v645 = vunpack.c.l.b16 %v395
        %v646 = vunpack.c.h.b16 %v395
        %v647 = vunpack.c.l.b16 %v396
        %v648 = vunpack.c.h.b16 %v396
        %v649 = vunpack.c.l.b16 %v397
        %v650 = vunpack.c.h.b16 %v397
        %v651 = vunpack.c.l.b16 %v398
        %v652 = vunpack.c.h.b16 %v398
        %v653 = vunpack.c.l.b16 %v399
        %v654 = vunpack.c.h.b16 %v399
        %v655 = vunpack.c.l.b16 %v400
        %v656 = vunpack.c.h.b16 %v400
        %v657 = vunpack.c.l.b16 %v401
        %v658 = vunpack.c.h.b16 %v401
        %v659 = vunpack.c.l.b16 %v402
        %v660 = vunpack.c.h.b16 %v402
        %v661 = vpack.c.b16 %v509, %v501
        %v662 = vpack.c.b16 %v510, %v502
        %v663 = vpack.c.b16 %v511, %v503
        %v664 = vpack.c.b16 %v512, %v504
        %v665 = vpack.c.b16 %v513, %v505
        %v666 = vpack.c.b16 %v514, %v506
        %v667 = vpack.c.b16 %v515, %v507
        %v668 = vpack.c.b16 %v516, %v508
        %v669 = vpack.c.b16 %v525, %v517
        %v670 = vpack.c.b16 %v526, %v518
        %v671 = vpack.c.b16 %v527, %v519
        %v672 = vpack.c.b16 %v528, %v520
        %v673 = vpack.c.b16 %v529, %v521
        %v674 = vpack.c.b16 %v530, %v522
        %v675 = vpack.c.b16 %v531, %v523
        %v676 = vpack.c.b16 %v532, %v524
        %v677 = vpack.c.b16 %v541, %v533
        %v678 = vpack.c.b16 %v542, %v534
        %v679 = vpack.c.b16 %v543, %v535
        %v680 = vpack.c.b16 %v544, %v536
        %v681 = vpack.c.b16 %v545, %v537
        %v682 = vpack.c.b16 %v546, %v538
        %v683 = vpack.c.b16 %v547, %v539
        %v684 = vpack.c.b16 %v548, %v540
        %v685 = vpack.c.b16 %v557, %v549
        %v686 = vpack.c.b16 %v558, %v550
        %v687 = vpack.c.b16 %v559, %v551
        %v688 = vpack.c.b16 %v560, %v552
        %v689 = vpack.c.b16 %v561, %v553
        %v690 = vpack.c.b16 %v562, %v554
        %v691 = vpack.c.b16 %v563, %v555
        %v692 = vpack.c.b16 %v564, %v556
        %v693 = vpack.c.b16 %v573, %v565
        %v694 = vpack.c.b16 %v574, %v566
        %v695 = vpack.c.b16 %v575, %v567
        %v696 = vpack.c.b16 %v576, %v568
        %v697 = vpack.c.b16 %v577, %v569
        %v698 = vpack.c.b16 %v578, %v570
        %v699 = vpack.c.b16 %v579, %v571
        %v700 = vpack.c.b16 %v580, %v572
        %v701 = vpack.c.b16 %v589, %v581
        %v702 = vpack.c.b16 %v590, %v582
        %v703 = vpack.c.b16 %v591, %v583
        %v704 = vpack.c.b16 %v592, %v584
        %v705 = vpack.c.b16 %v593, %v585
        %v706 = vpack.c.b16 %v594, %v586
        %v707 = vpack.c.b16 %v595, %v587
        %v708 = vpack.c.b16 %v596, %v588
        %v709 = vpack.c.b16 %v605, %v597
        %v710 = vpack.c.b16 %v606, %v598
        %v711 = vpack.c.b16 %v607, %v599
        %v712 = vpack.c.b16 %v608, %v600
        %v713 = vpack.c.b16 %v609, %v601
        %v714 = vpack.c.b16 %v610, %v602
        %v715 = vpack.c.b16 %v611, %v603
        %v716 = vpack.c.b16 %v612, %v604
        %v717 = vpack.c.b16 %v621, %v613
        %v718 = vpack.c.b16 %v622, %v614
        %v719 = vpack.c.b16 %v623, %v615
        %v720 = vpack.c.b16 %v624, %v616
        %v721 = vpack.c.b16 %v625, %v617
        %v722 = vpack.c.b16 %v626, %v618
        %v723 = vpack.c.b16 %v627, %v619
        %v724 = vpack.c.b16 %v628, %v620
        %v725 = vpack.c.b16 %v637, %v629
        %v726 = vpack.c.b16 %v638, %v630
        %v727 = vpack.c.b16 %v639, %v631
        %v728 = vpack.c.b16 %v640, %v632
        %v729 = vpack.c.b16 %v641, %v633
        %v730 = vpack.c.b16 %v642, %v634
        %v731 = vpack.c.b16 %v643, %v635
        %v732 = vpack.c.b16 %v644, %v636
        %v733 = vpack.c.b16 %v653, %v645
        %v734 = vpack.c.b16 %v654, %v646
        %v735 = vpack.c.b16 %v655, %v647
        %v736 = vpack.c.b16 %v656, %v648
        %v737 = vpack.c.b16 %v657, %v649
        %v738 = vpack.c.b16 %v658, %v650
        %v739 = vpack.c.b16 %v659, %v651
        %v740 = vpack.c.b16 %v660, %v652
        %vm821 = vcmask 261120
        %v823 = vsel %vm821, %v416, 0
        %v826 = vsel %vm821, %v418, 0
        %828 = vmatprep.subr.bf16.mxu0 %v718
        %829 = vmatpush1.bf16.msra.mxu0 %v717
        %830 = vmatprep.subr.bf16.mxu0 %v710
        %831 = vmatpush1.bf16.msra.mxu0 %v709
        %832 = vmatprep.subr.bf16.mxu0 %v702
        %833 = vmatpush1.bf16.msra.mxu0 %v701
        %834 = vmatprep.subr.bf16.mxu0 %v694
        %835 = vmatpush1.bf16.msra.mxu0 %v693
        %836 = vmatprep.subr.bf16.mxu0 %v686
        %837 = vmatpush1.bf16.msra.mxu0 %v685
        %838 = vmatprep.subr.bf16.mxu0 %v678
        %839 = vmatpush1.bf16.msra.mxu0 %v677
        %840 = vmatprep.subr.bf16.mxu0 %v670
        %841 = vmatpush1.bf16.msra.mxu0 %v669
        %842 = vmatprep.subr.bf16.mxu0 %v662
        %843 = vmatpush1.bf16.msra.mxu0 %v661
        %844 = vmatprep.subr.bf16.mxu0 0
        %845 = vmatpush2.bf16.msra.mxu0 0
        %846 = vmatprep.subr.bf16.mxu0 0
        %847 = vmatpush2.bf16.msra.mxu0 0
        %848 = vmatprep.subr.bf16.mxu0 0
        %849 = vmatpush2.bf16.msra.mxu0 0
        %850 = vmatprep.subr.bf16.mxu0 0
        %851 = vmatpush2.bf16.msra.mxu0 0
        %852 = vmatprep.subr.bf16.mxu0 0
        %853 = vmatpush2.bf16.msra.mxu0 0
        %854 = vmatprep.subr.bf16.mxu0 0
        %855 = vmatpush2.bf16.msra.mxu0 0
        %856 = vmatprep.subr.bf16.mxu0 %v734
        %857 = vmatpush2.bf16.msra.mxu0 %v733
        %858 = vmatprep.subr.bf16.mxu0 %v726
        %859 = vmatpush2.bf16.msra.mxu0 %v725
        %860 = vmatprep.mubr.bf16.mxu0 %v823
        %861 = vmatmul.mubr.bf16.gmra.mxu0 %v415
        %v862 = vpop.f32.mrf.mxu0
        %v863 = vadd.f32 0.0, %v862
        %v864 = vpop.f32.mrf.mxu0
        %v865 = vadd.f32 0.0, %v864
        %v866 = vpop.f32.mrf.mxu0
        %v867 = vadd.f32 0.0, %v866
        %v868 = vpop.f32.mrf.mxu0
        %v869 = vadd.f32 0.0, %v868
        %870 = vmatprep.mubr.bf16.mxu0 %v826
        %871 = vmatmul.mubr.bf16.gmra.mxu0 %v417
        %v872 = vpop.f32.mrf.mxu0
        %v873 = vadd.f32 0.0, %v872
        %v874 = vpop.f32.mrf.mxu0
        %v875 = vadd.f32 0.0, %v874
        %v876 = vpop.f32.mrf.mxu0
        %v877 = vadd.f32 0.0, %v876
        %v878 = vpop.f32.mrf.mxu0
        %v879 = vadd.f32 0.0, %v878
        %880 = vdwg.mxu0
        %881 = vmatprep.subr.bf16.mxu0 %v720
        %882 = vmatpush1.bf16.msra.mxu0 %v719
        %883 = vmatprep.subr.bf16.mxu0 %v712
        %884 = vmatpush1.bf16.msra.mxu0 %v711
        %885 = vmatprep.subr.bf16.mxu0 %v704
        %886 = vmatpush1.bf16.msra.mxu0 %v703
        %887 = vmatprep.subr.bf16.mxu0 %v696
        %888 = vmatpush1.bf16.msra.mxu0 %v695
        %889 = vmatprep.subr.bf16.mxu0 %v688
        %890 = vmatpush1.bf16.msra.mxu0 %v687
        %891 = vmatprep.subr.bf16.mxu0 %v680
        %892 = vmatpush1.bf16.msra.mxu0 %v679
        %893 = vmatprep.subr.bf16.mxu0 %v672
        %894 = vmatpush1.bf16.msra.mxu0 %v671
        %895 = vmatprep.subr.bf16.mxu0 %v664
        %896 = vmatpush1.bf16.msra.mxu0 %v663
        %897 = vmatprep.subr.bf16.mxu0 0
        %898 = vmatpush2.bf16.msra.mxu0 0
        %899 = vmatprep.subr.bf16.mxu0 0
        %900 = vmatpush2.bf16.msra.mxu0 0
        %901 = vmatprep.subr.bf16.mxu0 0
        %902 = vmatpush2.bf16.msra.mxu0 0
        %903 = vmatprep.subr.bf16.mxu0 0
        %904 = vmatpush2.bf16.msra.mxu0 0
        %905 = vmatprep.subr.bf16.mxu0 0
        %906 = vmatpush2.bf16.msra.mxu0 0
        %907 = vmatprep.subr.bf16.mxu0 0
        %908 = vmatpush2.bf16.msra.mxu0 0
        %909 = vmatprep.subr.bf16.mxu0 %v736
        %910 = vmatpush2.bf16.msra.mxu0 %v735
        %911 = vmatprep.subr.bf16.mxu0 %v728
        %912 = vmatpush2.bf16.msra.mxu0 %v727
        %913 = vmatprep.mubr.bf16.mxu0 %v823
        %914 = vmatmul.mubr.bf16.gmra.mxu0 %v415
        %v915 = vpop.f32.mrf.mxu0
        %v916 = vadd.f32 0.0, %v915
        %v917 = vpop.f32.mrf.mxu0
        %v918 = vadd.f32 0.0, %v917
        %v919 = vpop.f32.mrf.mxu0
        %v920 = vadd.f32 0.0, %v919
        %v921 = vpop.f32.mrf.mxu0
        %v922 = vadd.f32 0.0, %v921
        %923 = vmatprep.mubr.bf16.mxu0 %v826
        %924 = vmatmul.mubr.bf16.gmra.mxu0 %v417
        %v925 = vpop.f32.mrf.mxu0
        %v926 = vadd.f32 0.0, %v925
        %v927 = vpop.f32.mrf.mxu0
        %v928 = vadd.f32 0.0, %v927
        %v929 = vpop.f32.mrf.mxu0
        %v930 = vadd.f32 0.0, %v929
        %v931 = vpop.f32.mrf.mxu0
        %v932 = vadd.f32 0.0, %v931
        %933 = vdwg.mxu0
        %934 = vmatprep.subr.bf16.mxu0 %v722
        %935 = vmatpush1.bf16.msra.mxu0 %v721
        %936 = vmatprep.subr.bf16.mxu0 %v714
        %937 = vmatpush1.bf16.msra.mxu0 %v713
        %938 = vmatprep.subr.bf16.mxu0 %v706
        %939 = vmatpush1.bf16.msra.mxu0 %v705
        %940 = vmatprep.subr.bf16.mxu0 %v698
        %941 = vmatpush1.bf16.msra.mxu0 %v697
        %942 = vmatprep.subr.bf16.mxu0 %v690
        %943 = vmatpush1.bf16.msra.mxu0 %v689
        %944 = vmatprep.subr.bf16.mxu0 %v682
        %945 = vmatpush1.bf16.msra.mxu0 %v681
        %946 = vmatprep.subr.bf16.mxu0 %v674
        %947 = vmatpush1.bf16.msra.mxu0 %v673
        %948 = vmatprep.subr.bf16.mxu0 %v666
        %949 = vmatpush1.bf16.msra.mxu0 %v665
        %950 = vmatprep.subr.bf16.mxu0 0
        %951 = vmatpush2.bf16.msra.mxu0 0
        %952 = vmatprep.subr.bf16.mxu0 0
        %953 = vmatpush2.bf16.msra.mxu0 0
        %954 = vmatprep.subr.bf16.mxu0 0
        %955 = vmatpush2.bf16.msra.mxu0 0
        %956 = vmatprep.subr.bf16.mxu0 0
        %957 = vmatpush2.bf16.msra.mxu0 0
        %958 = vmatprep.subr.bf16.mxu0 0
        %959 = vmatpush2.bf16.msra.mxu0 0
        %960 = vmatprep.subr.bf16.mxu0 0
        %961 = vmatpush2.bf16.msra.mxu0 0
        %962 = vmatprep.subr.bf16.mxu0 %v738
        %963 = vmatpush2.bf16.msra.mxu0 %v737
        %964 = vmatprep.subr.bf16.mxu0 %v730
        %965 = vmatpush2.bf16.msra.mxu0 %v729
        %966 = vmatprep.mubr.bf16.mxu0 %v823
        %967 = vmatmul.mubr.bf16.gmra.mxu0 %v415
        %v968 = vpop.f32.mrf.mxu0
        %v969 = vadd.f32 0.0, %v968
        %v970 = vpop.f32.mrf.mxu0
        %v971 = vadd.f32 0.0, %v970
        %v972 = vpop.f32.mrf.mxu0
        %v973 = vadd.f32 0.0, %v972
        %v974 = vpop.f32.mrf.mxu0
        %v975 = vadd.f32 0.0, %v974
        %976 = vmatprep.mubr.bf16.mxu0 %v826
        %977 = vmatmul.mubr.bf16.gmra.mxu0 %v417
        %v978 = vpop.f32.mrf.mxu0
        %v979 = vadd.f32 0.0, %v978
        %v980 = vpop.f32.mrf.mxu0
        %v981 = vadd.f32 0.0, %v980
        %v982 = vpop.f32.mrf.mxu0
        %v983 = vadd.f32 0.0, %v982
        %v984 = vpop.f32.mrf.mxu0
        %v985 = vadd.f32 0.0, %v984
        %986 = vdwg.mxu0
        %987 = vmatprep.subr.bf16.mxu0 %v724
        %988 = vmatpush1.bf16.msra.mxu0 %v723
        %989 = vmatprep.subr.bf16.mxu0 %v716
        %990 = vmatpush1.bf16.msra.mxu0 %v715
        %991 = vmatprep.subr.bf16.mxu0 %v708
        %992 = vmatpush1.bf16.msra.mxu0 %v707
        %993 = vmatprep.subr.bf16.mxu0 %v700
        %994 = vmatpush1.bf16.msra.mxu0 %v699
        %995 = vmatprep.subr.bf16.mxu0 %v692
        %996 = vmatpush1.bf16.msra.mxu0 %v691
        %997 = vmatprep.subr.bf16.mxu0 %v684
        %998 = vmatpush1.bf16.msra.mxu0 %v683
        %999 = vmatprep.subr.bf16.mxu0 %v676
        %1000 = vmatpush1.bf16.msra.mxu0 %v675
        %1001 = vmatprep.subr.bf16.mxu0 %v668
        %1002 = vmatpush1.bf16.msra.mxu0 %v667
        %1003 = vmatprep.subr.bf16.mxu0 0
        %1004 = vmatpush2.bf16.msra.mxu0 0
        %1005 = vmatprep.subr.bf16.mxu0 0
        %1006 = vmatpush2.bf16.msra.mxu0 0
        %1007 = vmatprep.subr.bf16.mxu0 0
        %1008 = vmatpush2.bf16.msra.mxu0 0
        %1009 = vmatprep.subr.bf16.mxu0 0
        %1010 = vmatpush2.bf16.msra.mxu0 0
        %1011 = vmatprep.subr.bf16.mxu0 0
        %1012 = vmatpush2.bf16.msra.mxu0 0
        %1013 = vmatprep.subr.bf16.mxu0 0
        %1014 = vmatpush2.bf16.msra.mxu0 0
        %1015 = vmatprep.subr.bf16.mxu0 %v740
        %1016 = vmatpush2.bf16.msra.mxu0 %v739
        %1017 = vmatprep.subr.bf16.mxu0 %v732
        %1018 = vmatpush2.bf16.msra.mxu0 %v731
        %1019 = vmatprep.mubr.bf16.mxu0 %v823
        %1020 = vmatmul.mubr.bf16.gmra.mxu0 %v415
        %v1021 = vpop.f32.mrf.mxu0
        %v1022 = vadd.f32 0.0, %v1021
        %v1023 = vpop.f32.mrf.mxu0
        %v1024 = vadd.f32 0.0, %v1023
        %v1025 = vpop.f32.mrf.mxu0
        %v1026 = vadd.f32 0.0, %v1025
        %v1027 = vpop.f32.mrf.mxu0
        %v1028 = vadd.f32 0.0, %v1027
        %1029 = vmatprep.mubr.bf16.mxu0 %v826
        %1030 = vmatmul.mubr.bf16.gmra.mxu0 %v417
        %v1031 = vpop.f32.mrf.mxu0
        %v1032 = vadd.f32 0.0, %v1031
        %v1033 = vpop.f32.mrf.mxu0
        %v1034 = vadd.f32 0.0, %v1033
        %v1035 = vpop.f32.mrf.mxu0
        %v1036 = vadd.f32 0.0, %v1035
        %v1037 = vpop.f32.mrf.mxu0
        %v1038 = vadd.f32 0.0, %v1037
        %1039 = vdwg.mxu0
        %v1040 = vmul.f32 %v863, %v873
        %v1041 = vmul.f32 %v865, %v875
        %v1042 = vmul.f32 %v916, %v926
        %v1043 = vmul.f32 %v918, %v928
        %v1044 = vmul.f32 %v969, %v979
        %v1045 = vmul.f32 %v971, %v981
        %v1046 = vmul.f32 %v1022, %v1032
        %v1047 = vmul.f32 %v1024, %v1034
        %v1048 = vmul.f32 %v867, %v877
        %v1049 = vmul.f32 %v869, %v879
        %v1050 = vmul.f32 %v920, %v930
        %v1051 = vmul.f32 %v922, %v932
        %v1052 = vmul.f32 %v973, %v983
        %v1053 = vmul.f32 %v975, %v985
        %v1054 = vmul.f32 %v1026, %v1036
        %v1055 = vmul.f32 %v1028, %v1038
        %1056 = vst [vmem:[%s315] sm:$0xff] %v1040
        %1057 = vst [vmem:[%s315 + $0x8] sm:$0xff] %v1041
        %1058 = vst [vmem:[%s315 + $0x10] sm:$0xff] %v1042
        %1059 = vst [vmem:[%s315 + $0x18] sm:$0xff] %v1043
        %1060 = vst [vmem:[%s315 + $0x20] sm:$0xff] %v1044
        %1061 = vst [vmem:[%s315 + $0x28] sm:$0xff] %v1045
        %1062 = vst [vmem:[%s315 + $0x30] sm:$0xff] %v1046
        %1063 = vst [vmem:[%s315 + $0x38] sm:$0xff] %v1047
        %1064 = vst [vmem:[%s315 + $0x40] sm:$0xff] %v1048
        %1065 = vst [vmem:[%s315 + $0x48] sm:$0xff] %v1049
        %1066 = vst [vmem:[%s315 + $0x50] sm:$0xff] %v1050
        %1067 = vst [vmem:[%s315 + $0x58] sm:$0xff] %v1051
        %1068 = vst [vmem:[%s315 + $0x60] sm:$0xff] %v1052
        %1069 = vst [vmem:[%s315 + $0x68] sm:$0xff] %v1053
        %1070 = vst [vmem:[%s315 + $0x70] sm:$0xff] %v1054
        %1071 = vst [vmem:[%s315 + $0x78] sm:$0xff] %v1055
        %s1072 = sand.u32 %s68, 1
        %s1073 = sand.u32 %s68, 1
        %s1074 = smul.addr %s1073, 128
        %s1075 = scalar_lea.vmem [#allocation3], %s1074
        // Predicated region
        $region52: #{bilinear_cnn_forward.6} parent=46 // pred_check
          %p1076 = pneg %p78
        $region53: #{bilinear_cnn_forward.6} parent=46 // pred_check_branch
          %1078 = sbr.rel (%p1076) target = $region55
        $region54: #{bilinear_cnn_forward.6} parent=46 // pred_region
          %s1079 = smul.u32 8, %s13
          %s1080 = smul.addr %s1079, 8
          %s1081 = scalar_lea.vmem %s2, %s1080
          // Predicated region
          $region56: #{bilinear_cnn_forward.6} parent=54 // pred_check
            _
          $region57: #{bilinear_cnn_forward.6} parent=54 // pred_check_branch
            %1083 = sbr.rel (0) target = $region59
          $region58: #{bilinear_cnn_forward.6} parent=54 // pred_region
            // Predicated region
            $region60: #{bilinear_cnn_forward.6} parent=58 // pred_check
              _
            $region61: #{bilinear_cnn_forward.6} parent=58 // pred_check_branch
              %1085 = sbr.rel (0) target = $region63
            $region62: #{bilinear_cnn_forward.6} parent=58 // pred_region
              loop: start=0, step=1, limit=1
              $region64: #{bilinear_cnn_forward.6} parent=62 // loop_pre_header
                _
              $region65: #{bilinear_cnn_forward.6} parent=62 // loop_header
                %s1087 = sphi 0, %s1091
                %p1088 = scmp.ge.s32.totalorder %s1087, 1
                %s1092 = sphi %s1075, %s1075
                %s1093 = sphi %s1081, %s1081
              $region66: #{bilinear_cnn_forward.6} parent=62 // loop_header_branch
                %1090 = sbr.rel (%p1088) target = $region70
              $region67: #{bilinear_cnn_forward.6} parent=62 // loop_body
                %v1094 = vld [vmem:[%s1092] sm:$0xff]
                %1095 = vst [vmem:[%s1093] sm:$0xff] %v1094
                %v1096 = vld [vmem:[%s1092 + $0x8] sm:$0xff]
                %1097 = vst [vmem:[%s1093 + $0x8] sm:$0xff] %v1096
                %v1098 = vld [vmem:[%s1092 + $0x10] sm:$0xff]
                %1099 = vst [vmem:[%s1093 + $0x10] sm:$0xff] %v1098
                %v1100 = vld [vmem:[%s1092 + $0x18] sm:$0xff]
                %1101 = vst [vmem:[%s1093 + $0x18] sm:$0xff] %v1100
                %v1102 = vld [vmem:[%s1092 + $0x20] sm:$0xff]
                %1103 = vst [vmem:[%s1093 + $0x20] sm:$0xff] %v1102
                %v1104 = vld [vmem:[%s1092 + $0x28] sm:$0xff]
                %1105 = vst [vmem:[%s1093 + $0x28] sm:$0xff] %v1104
                %v1106 = vld [vmem:[%s1092 + $0x30] sm:$0xff]
                %1107 = vst [vmem:[%s1093 + $0x30] sm:$0xff] %v1106
                %v1108 = vld [vmem:[%s1092 + $0x38] sm:$0xff]
                %1109 = vst [vmem:[%s1093 + $0x38] sm:$0xff] %v1108
                %v1110 = vld [vmem:[%s1092 + $0x40] sm:$0xff]
                %1111 = vst [vmem:[%s1093 + $0x80] sm:$0xff] %v1110
                %v1112 = vld [vmem:[%s1092 + $0x48] sm:$0xff]
                %1113 = vst [vmem:[%s1093 + $0x88] sm:$0xff] %v1112
                %v1114 = vld [vmem:[%s1092 + $0x50] sm:$0xff]
                %1115 = vst [vmem:[%s1093 + $0x90] sm:$0xff] %v1114
                %v1116 = vld [vmem:[%s1092 + $0x58] sm:$0xff]
                %1117 = vst [vmem:[%s1093 + $0x98] sm:$0xff] %v1116
                %v1118 = vld [vmem:[%s1092 + $0x60] sm:$0xff]
                %1119 = vst [vmem:[%s1093 + $0xa0] sm:$0xff] %v1118
                %v1120 = vld [vmem:[%s1092 + $0x68] sm:$0xff]
                %1121 = vst [vmem:[%s1093 + $0xa8] sm:$0xff] %v1120
                %v1122 = vld [vmem:[%s1092 + $0x70] sm:$0xff]
                %1123 = vst [vmem:[%s1093 + $0xb0] sm:$0xff] %v1122
                %v1124 = vld [vmem:[%s1092 + $0x78] sm:$0xff]
                %1125 = vst [vmem:[%s1093 + $0xb8] sm:$0xff] %v1124
              $region68: #{bilinear_cnn_forward.6} parent=62 // loop_footer
                %s1091 = sadd.s32 1, %s1087
              $region69: #{bilinear_cnn_forward.6} parent=62 // loop_footer_branch
                %1086 = sbr.rel target = $region65
              $region70: #{bilinear_cnn_forward.6} parent=62 // loop_exit
                _
            $region63: #{bilinear_cnn_forward.6} parent=58 // pred_fallthru
              _
            // Predicated region
            $region71: #{bilinear_cnn_forward.6} parent=58 // pred_check
              _
            $region72: #{bilinear_cnn_forward.6} parent=58 // pred_check_branch
              %1127 = sbr.rel target = $region74
            $region73: #{bilinear_cnn_forward.6} parent=58 // pred_region
              _
            $region74: #{bilinear_cnn_forward.6} parent=58 // pred_fallthru
              _
          $region59: #{bilinear_cnn_forward.6} parent=54 // pred_fallthru
            _
          %1128 = vnop
        $region55: #{bilinear_cnn_forward.6} parent=46 // pred_fallthru
          _
      $region47: #{bilinear_cnn_forward.6} parent=5 // pred_fallthru
        _
      %p1129 = scmp.le.s32.totalorder 2, %s8
      // Predicated region
      $region75: #{bilinear_cnn_forward.6} parent=5 // pred_check
        %p1130 = pneg %p1129
      $region76: #{bilinear_cnn_forward.6} parent=5 // pred_check_branch
        %1132 = sbr.rel (%p1130) target = $region78
      $region77: #{bilinear_cnn_forward.6} parent=5 // pred_region
        %s1133 = ssub.s32 %s8, 2
        // Predicated region
        $region79: #{bilinear_cnn_forward.6} parent=77 // pred_check
          %p1134 = pneg %p84
        $region80: #{bilinear_cnn_forward.6} parent=77 // pred_check_branch
          %1136 = sbr.rel (%p1134) target = $region82
        $region81: #{bilinear_cnn_forward.6} parent=77 // pred_region
          %s1137 = sand.u32 %s69, 1
          %s1138 = sand.u32 %s69, 1
          %s1139 = smul.addr %s1138, 128
          %s1140 = scalar_lea.vmem [#allocation3], %s1139
        $region82: #{bilinear_cnn_forward.6} parent=77 // pred_fallthru
          _
      $region78: #{bilinear_cnn_forward.6} parent=5 // pred_fallthru
        _
    $region6: #{bilinear_cnn_forward.6} parent=1 // loop_footer
      %s12 = sadd.s32 1, %s8
    $region7: #{bilinear_cnn_forward.6} parent=1 // loop_footer_branch
      %7 = sbr.rel target = $region3
    $region8: #{bilinear_cnn_forward.6} parent=1 // loop_exit
      _

// kernel: bilinear_cnn_forward.7
$region0: #{bilinear_cnn_forward.7}
  #allocation0 [shape = 'u32[]', space=smem, size = 0x4, offset = 0x4, fixed_abs, tag = 'smem constant byte address 0x4 - core index']
  #allocation1 [shape = 'u32[144,128]{1,0:T(1,128)}', space=vmem, size = 0x12000, scoped, tag = 'internal scratch']
  %s0 = inlined_call_operand.vmem [shape: bf16[64,400], index: 0, kind: input, shape index: {}]
  %s1 = inlined_call_operand.vmem [shape: bf16[400,512], index: 1, kind: input, shape index: {}]
  %s2 = inlined_call_operand.vmem [shape: f32[32,512], index: 2, kind: output, shape index: {}]
  %s3 = sld [smem:[#allocation0]]
  $region18: #{bilinear_cnn_forward.7} parent=0
    _
  %s5 = ssub.s32 1, %s3
  %s6 = scalar_select 0, %s5, %s3
  // Predicated region
  $region2: #{bilinear_cnn_forward.7} parent=0 // pred_check
    _
  $region3: #{bilinear_cnn_forward.7} parent=0 // pred_check_branch
    %8 = sbr.rel (0) target = $region5
  $region4: #{bilinear_cnn_forward.7} parent=0 // pred_region
    _
  $region5: #{bilinear_cnn_forward.7} parent=0 // pred_fallthru
    _
  // Predicated region
  $region6: #{bilinear_cnn_forward.7} parent=0 // pred_check
    _
  $region7: #{bilinear_cnn_forward.7} parent=0 // pred_check_branch
    %10 = sbr.rel (0) target = $region9
  $region8: #{bilinear_cnn_forward.7} parent=0 // pred_region
    _
  $region9: #{bilinear_cnn_forward.7} parent=0 // pred_fallthru
    _
  %v12 = vld [vmem:[%s0] sm:$0xff]
  %v13 = vld [vmem:[%s0 + $0x8] sm:$0xff]
  %v14 = vld [vmem:[%s0 + $0x10] sm:$0xff]
  %v15 = vld [vmem:[%s0 + $0x18] sm:$0xff]
  %v16 = vld [vmem:[%s0 + $0x20] sm:$0xff]
  %v17 = vld [vmem:[%s0 + $0x28] sm:$0xff]
  %v18 = vld [vmem:[%s0 + $0x30] sm:$0xff]
  %v19 = vld [vmem:[%s0 + $0x38] sm:$0xff]
  %v20 = vld [vmem:[%s0 + $0x40] sm:$0xff]
  %v21 = vld [vmem:[%s0 + $0x48] sm:$0xff]
  %v22 = vld [vmem:[%s0 + $0x50] sm:$0xff]
  %v23 = vld [vmem:[%s0 + $0x58] sm:$0xff]
  %v24 = vld [vmem:[%s0 + $0x60] sm:$0xff]
  %v25 = vld [vmem:[%s0 + $0x68] sm:$0xff]
  %v26 = vld [vmem:[%s0 + $0x70] sm:$0xff]
  %v27 = vld [vmem:[%s0 + $0x78] sm:$0xff]
  %v28 = vld [vmem:[%s1] sm:$0xff]
  %v29 = vld [vmem:[%s1 + $0x8] sm:$0xff]
  %v30 = vld [vmem:[%s1 + $0x10] sm:$0xff]
  %v31 = vld [vmem:[%s1 + $0x18] sm:$0xff]
  %v32 = vld [vmem:[%s1 + $0x20] sm:$0xff]
  %v33 = vld [vmem:[%s1 + $0x28] sm:$0xff]
  %v34 = vld [vmem:[%s1 + $0x30] sm:$0xff]
  %v35 = vld [vmem:[%s1 + $0x38] sm:$0xff]
  %v36 = vld [vmem:[%s1 + $0x40] sm:$0xff]
  %v37 = vld [vmem:[%s1 + $0x48] sm:$0xff]
  %v38 = vld [vmem:[%s1 + $0x50] sm:$0xff]
  %v39 = vld [vmem:[%s1 + $0x58] sm:$0xff]
  %v40 = vld [vmem:[%s1 + $0x60] sm:$0xff]
  %v41 = vld [vmem:[%s1 + $0x68] sm:$0xff]
  %v42 = vld [vmem:[%s1 + $0x70] sm:$0xff]
  %v43 = vld [vmem:[%s1 + $0x78] sm:$0xff]
  %v44 = vld [vmem:[%s1 + $0x80] sm:$0xff]
  %v45 = vld [vmem:[%s1 + $0x88] sm:$0xff]
  %v46 = vld [vmem:[%s1 + $0x90] sm:$0xff]
  %v47 = vld [vmem:[%s1 + $0x98] sm:$0xff]
  %v48 = vld [vmem:[%s1 + $0xa0] sm:$0xff]
  %v49 = vld [vmem:[%s1 + $0xa8] sm:$0xff]
  %v50 = vld [vmem:[%s1 + $0xb0] sm:$0xff]
  %v51 = vld [vmem:[%s1 + $0xb8] sm:$0xff]
  %v52 = vld [vmem:[%s1 + $0xc0] sm:$0xff]
  %v53 = vld [vmem:[%s1 + $0xc8] sm:$0xff]
  %v54 = vld [vmem:[%s1 + $0xd0] sm:$0xff]
  %v55 = vld [vmem:[%s1 + $0xd8] sm:$0xff]
  %v56 = vld [vmem:[%s1 + $0xe0] sm:$0xff]
  %v57 = vld [vmem:[%s1 + $0xe8] sm:$0xff]
  %v58 = vld [vmem:[%s1 + $0xf0] sm:$0xff]
  %v59 = vld [vmem:[%s1 + $0xf8] sm:$0xff]
  %v60 = vld [vmem:[%s1 + $0x100] sm:$0xff]
  %v61 = vld [vmem:[%s1 + $0x108] sm:$0xff]
  %v62 = vld [vmem:[%s1 + $0x110] sm:$0xff]
  %v63 = vld [vmem:[%s1 + $0x118] sm:$0xff]
  %v64 = vld [vmem:[%s1 + $0x120] sm:$0xff]
  %v65 = vld [vmem:[%s1 + $0x128] sm:$0xff]
  %v66 = vld [vmem:[%s1 + $0x130] sm:$0xff]
  %v67 = vld [vmem:[%s1 + $0x138] sm:$0xff]
  %v68 = vld [vmem:[%s1 + $0x140] sm:$0xff]
  %v69 = vld [vmem:[%s1 + $0x148] sm:$0xff]
  %v70 = vld [vmem:[%s1 + $0x150] sm:$0xff]
  %v71 = vld [vmem:[%s1 + $0x158] sm:$0xff]
  %v72 = vld [vmem:[%s1 + $0x160] sm:$0xff]
  %v73 = vld [vmem:[%s1 + $0x168] sm:$0xff]
  %v74 = vld [vmem:[%s1 + $0x170] sm:$0xff]
  %v75 = vld [vmem:[%s1 + $0x178] sm:$0xff]
  %v76 = vld [vmem:[%s1 + $0x180] sm:$0xff]
  %v77 = vld [vmem:[%s1 + $0x188] sm:$0xff]
  %v78 = vld [vmem:[%s1 + $0x190] sm:$0xff]
  %v79 = vld [vmem:[%s1 + $0x198] sm:$0xff]
  %v80 = vld [vmem:[%s1 + $0x1a0] sm:$0xff]
  %v81 = vld [vmem:[%s1 + $0x1a8] sm:$0xff]
  %v82 = vld [vmem:[%s1 + $0x1b0] sm:$0xff]
  %v83 = vld [vmem:[%s1 + $0x1b8] sm:$0xff]
  %v84 = vld [vmem:[%s1 + $0x1c0] sm:$0xff]
  %v85 = vld [vmem:[%s1 + $0x1c8] sm:$0xff]
  %v86 = vld [vmem:[%s1 + $0x1d0] sm:$0xff]
  %v87 = vld [vmem:[%s1 + $0x1d8] sm:$0xff]
  %v88 = vld [vmem:[%s1 + $0x1e0] sm:$0xff]
  %v89 = vld [vmem:[%s1 + $0x1e8] sm:$0xff]
  %v90 = vld [vmem:[%s1 + $0x1f0] sm:$0xff]
  %v91 = vld [vmem:[%s1 + $0x1f8] sm:$0xff]
  %v92 = vld [vmem:[%s1 + $0x200] sm:$0xff]
  %v93 = vld [vmem:[%s1 + $0x208] sm:$0xff]
  %v94 = vld [vmem:[%s1 + $0x210] sm:$0xff]
  %v95 = vld [vmem:[%s1 + $0x218] sm:$0xff]
  %v96 = vld [vmem:[%s1 + $0x220] sm:$0xff]
  %v97 = vld [vmem:[%s1 + $0x228] sm:$0xff]
  %v98 = vld [vmem:[%s1 + $0x230] sm:$0xff]
  %v99 = vld [vmem:[%s1 + $0x238] sm:$0xff]
  %v100 = vld [vmem:[%s1 + $0x240] sm:$0xff]
  %v101 = vld [vmem:[%s1 + $0x248] sm:$0xff]
  %v102 = vld [vmem:[%s1 + $0x250] sm:$0xff]
  %v103 = vld [vmem:[%s1 + $0x258] sm:$0xff]
  %v104 = vld [vmem:[%s1 + $0x260] sm:$0xff]
  %v105 = vld [vmem:[%s1 + $0x268] sm:$0xff]
  %v106 = vld [vmem:[%s1 + $0x270] sm:$0xff]
  %v107 = vld [vmem:[%s1 + $0x278] sm:$0xff]
  %v108 = vld [vmem:[%s1 + $0x280] sm:$0xff]
  %v109 = vld [vmem:[%s1 + $0x288] sm:$0xff]
  %v110 = vld [vmem:[%s1 + $0x290] sm:$0xff]
  %v111 = vld [vmem:[%s1 + $0x298] sm:$0xff]
  %v112 = vld [vmem:[%s1 + $0x2a0] sm:$0xff]
  %v113 = vld [vmem:[%s1 + $0x2a8] sm:$0xff]
  %v114 = vld [vmem:[%s1 + $0x2b0] sm:$0xff]
  %v115 = vld [vmem:[%s1 + $0x2b8] sm:$0xff]
  %v116 = vld [vmem:[%s1 + $0x2c0] sm:$0xff]
  %v117 = vld [vmem:[%s1 + $0x2c8] sm:$0xff]
  %v118 = vld [vmem:[%s1 + $0x2d0] sm:$0xff]
  %v119 = vld [vmem:[%s1 + $0x2d8] sm:$0xff]
  %v120 = vld [vmem:[%s1 + $0x2e0] sm:$0xff]
  %v121 = vld [vmem:[%s1 + $0x2e8] sm:$0xff]
  %v122 = vld [vmem:[%s1 + $0x2f0] sm:$0xff]
  %v123 = vld [vmem:[%s1 + $0x2f8] sm:$0xff]
  %v124 = vld [vmem:[%s1 + $0x300] sm:$0xff]
  %v125 = vld [vmem:[%s1 + $0x308] sm:$0xff]
  %v126 = vld [vmem:[%s1 + $0x310] sm:$0xff]
  %v127 = vld [vmem:[%s1 + $0x318] sm:$0xff]
  %v144 = vunpack.c.l.b16 %v12
  %v145 = vunpack.c.h.b16 %v12
  %v146 = vunpack.c.l.b16 %v13
  %v147 = vunpack.c.h.b16 %v13
  %v148 = vunpack.c.l.b16 %v14
  %v149 = vunpack.c.h.b16 %v14
  %v150 = vunpack.c.l.b16 %v15
  %v151 = vunpack.c.h.b16 %v15
  %v152 = vunpack.c.l.b16 %v16
  %v153 = vunpack.c.h.b16 %v16
  %v154 = vunpack.c.l.b16 %v17
  %v155 = vunpack.c.h.b16 %v17
  %v156 = vunpack.c.l.b16 %v18
  %v157 = vunpack.c.h.b16 %v18
  %v158 = vunpack.c.l.b16 %v19
  %v159 = vunpack.c.h.b16 %v19
  %v160 = vunpack.c.l.b16 %v20
  %v161 = vunpack.c.h.b16 %v20
  %v162 = vunpack.c.l.b16 %v21
  %v163 = vunpack.c.h.b16 %v21
  %v164 = vunpack.c.l.b16 %v22
  %v165 = vunpack.c.h.b16 %v22
  %v166 = vunpack.c.l.b16 %v23
  %v167 = vunpack.c.h.b16 %v23
  %v168 = vunpack.c.l.b16 %v24
  %v169 = vunpack.c.h.b16 %v24
  %v170 = vunpack.c.l.b16 %v25
  %v171 = vunpack.c.h.b16 %v25
  %v172 = vunpack.c.l.b16 %v26
  %v173 = vunpack.c.h.b16 %v26
  %v174 = vunpack.c.l.b16 %v27
  %v175 = vunpack.c.h.b16 %v27
  %v176 = vpack.c.b16 %v148, %v144
  %v177 = vpack.c.b16 %v149, %v145
  %v178 = vpack.c.b16 %v150, %v146
  %v179 = vpack.c.b16 %v151, %v147
  %v180 = vpack.c.b16 %v156, %v152
  %v181 = vpack.c.b16 %v157, %v153
  %v182 = vpack.c.b16 %v158, %v154
  %v183 = vpack.c.b16 %v159, %v155
  %v184 = vpack.c.b16 %v164, %v160
  %v185 = vpack.c.b16 %v165, %v161
  %v186 = vpack.c.b16 %v166, %v162
  %v187 = vpack.c.b16 %v167, %v163
  %v188 = vpack.c.b16 %v172, %v168
  %v189 = vpack.c.b16 %v173, %v169
  %v190 = vpack.c.b16 %v174, %v170
  %v191 = vpack.c.b16 %v175, %v171
  %v304 = vunpack.c.l.b16 %v28
  %v305 = vunpack.c.h.b16 %v28
  %v306 = vunpack.c.l.b16 %v29
  %v307 = vunpack.c.h.b16 %v29
  %v308 = vunpack.c.l.b16 %v30
  %v309 = vunpack.c.h.b16 %v30
  %v310 = vunpack.c.l.b16 %v31
  %v311 = vunpack.c.h.b16 %v31
  %v312 = vunpack.c.l.b16 %v32
  %v313 = vunpack.c.h.b16 %v32
  %v314 = vunpack.c.l.b16 %v33
  %v315 = vunpack.c.h.b16 %v33
  %v316 = vunpack.c.l.b16 %v34
  %v317 = vunpack.c.h.b16 %v34
  %v318 = vunpack.c.l.b16 %v35
  %v319 = vunpack.c.h.b16 %v35
  %v320 = vunpack.c.l.b16 %v36
  %v321 = vunpack.c.h.b16 %v36
  %v322 = vunpack.c.l.b16 %v37
  %v323 = vunpack.c.h.b16 %v37
  %v324 = vunpack.c.l.b16 %v38
  %v325 = vunpack.c.h.b16 %v38
  %v326 = vunpack.c.l.b16 %v39
  %v327 = vunpack.c.h.b16 %v39
  %v328 = vunpack.c.l.b16 %v40
  %v329 = vunpack.c.h.b16 %v40
  %v330 = vunpack.c.l.b16 %v41
  %v331 = vunpack.c.h.b16 %v41
  %v332 = vunpack.c.l.b16 %v42
  %v333 = vunpack.c.h.b16 %v42
  %v334 = vunpack.c.l.b16 %v43
  %v335 = vunpack.c.h.b16 %v43
  %v336 = vunpack.c.l.b16 %v44
  %v337 = vunpack.c.h.b16 %v44
  %v338 = vunpack.c.l.b16 %v45
  %v339 = vunpack.c.h.b16 %v45
  %v340 = vunpack.c.l.b16 %v46
  %v341 = vunpack.c.h.b16 %v46
  %v342 = vunpack.c.l.b16 %v47
  %v343 = vunpack.c.h.b16 %v47
  %v344 = vunpack.c.l.b16 %v48
  %v345 = vunpack.c.h.b16 %v48
  %v346 = vunpack.c.l.b16 %v49
  %v347 = vunpack.c.h.b16 %v49
  %v348 = vunpack.c.l.b16 %v50
  %v349 = vunpack.c.h.b16 %v50
  %v350 = vunpack.c.l.b16 %v51
  %v351 = vunpack.c.h.b16 %v51
  %v352 = vunpack.c.l.b16 %v52
  %v353 = vunpack.c.h.b16 %v52
  %v354 = vunpack.c.l.b16 %v53
  %v355 = vunpack.c.h.b16 %v53
  %v356 = vunpack.c.l.b16 %v54
  %v357 = vunpack.c.h.b16 %v54
  %v358 = vunpack.c.l.b16 %v55
  %v359 = vunpack.c.h.b16 %v55
  %v360 = vunpack.c.l.b16 %v56
  %v361 = vunpack.c.h.b16 %v56
  %v362 = vunpack.c.l.b16 %v57
  %v363 = vunpack.c.h.b16 %v57
  %v364 = vunpack.c.l.b16 %v58
  %v365 = vunpack.c.h.b16 %v58
  %v366 = vunpack.c.l.b16 %v59
  %v367 = vunpack.c.h.b16 %v59
  %v368 = vunpack.c.l.b16 %v60
  %v369 = vunpack.c.h.b16 %v60
  %v370 = vunpack.c.l.b16 %v61
  %v371 = vunpack.c.h.b16 %v61
  %v372 = vunpack.c.l.b16 %v62
  %v373 = vunpack.c.h.b16 %v62
  %v374 = vunpack.c.l.b16 %v63
  %v375 = vunpack.c.h.b16 %v63
  %v376 = vunpack.c.l.b16 %v64
  %v377 = vunpack.c.h.b16 %v64
  %v378 = vunpack.c.l.b16 %v65
  %v379 = vunpack.c.h.b16 %v65
  %v380 = vunpack.c.l.b16 %v66
  %v381 = vunpack.c.h.b16 %v66
  %v382 = vunpack.c.l.b16 %v67
  %v383 = vunpack.c.h.b16 %v67
  %v384 = vunpack.c.l.b16 %v68
  %v385 = vunpack.c.h.b16 %v68
  %v386 = vunpack.c.l.b16 %v69
  %v387 = vunpack.c.h.b16 %v69
  %v388 = vunpack.c.l.b16 %v70
  %v389 = vunpack.c.h.b16 %v70
  %v390 = vunpack.c.l.b16 %v71
  %v391 = vunpack.c.h.b16 %v71
  %v392 = vunpack.c.l.b16 %v72
  %v393 = vunpack.c.h.b16 %v72
  %v394 = vunpack.c.l.b16 %v73
  %v395 = vunpack.c.h.b16 %v73
  %v396 = vunpack.c.l.b16 %v74
  %v397 = vunpack.c.h.b16 %v74
  %v398 = vunpack.c.l.b16 %v75
  %v399 = vunpack.c.h.b16 %v75
  %v400 = vunpack.c.l.b16 %v76
  %v401 = vunpack.c.h.b16 %v76
  %v402 = vunpack.c.l.b16 %v77
  %v403 = vunpack.c.h.b16 %v77
  %v404 = vunpack.c.l.b16 %v78
  %v405 = vunpack.c.h.b16 %v78
  %v406 = vunpack.c.l.b16 %v79
  %v407 = vunpack.c.h.b16 %v79
  %v408 = vunpack.c.l.b16 %v80
  %v409 = vunpack.c.h.b16 %v80
  %v410 = vunpack.c.l.b16 %v81
  %v411 = vunpack.c.h.b16 %v81
  %v412 = vunpack.c.l.b16 %v82
  %v413 = vunpack.c.h.b16 %v82
  %v414 = vunpack.c.l.b16 %v83
  %v415 = vunpack.c.h.b16 %v83
  %v416 = vunpack.c.l.b16 %v84
  %v417 = vunpack.c.h.b16 %v84
  %v418 = vunpack.c.l.b16 %v85
  %v419 = vunpack.c.h.b16 %v85
  %v420 = vunpack.c.l.b16 %v86
  %v421 = vunpack.c.h.b16 %v86
  %v422 = vunpack.c.l.b16 %v87
  %v423 = vunpack.c.h.b16 %v87
  %v424 = vunpack.c.l.b16 %v88
  %v425 = vunpack.c.h.b16 %v88
  %v426 = vunpack.c.l.b16 %v89
  %v427 = vunpack.c.h.b16 %v89
  %v428 = vunpack.c.l.b16 %v90
  %v429 = vunpack.c.h.b16 %v90
  %v430 = vunpack.c.l.b16 %v91
  %v431 = vunpack.c.h.b16 %v91
  %v432 = vunpack.c.l.b16 %v92
  %v433 = vunpack.c.h.b16 %v92
  %v434 = vunpack.c.l.b16 %v93
  %v435 = vunpack.c.h.b16 %v93
  %v436 = vunpack.c.l.b16 %v94
  %v437 = vunpack.c.h.b16 %v94
  %v438 = vunpack.c.l.b16 %v95
  %v439 = vunpack.c.h.b16 %v95
  %v440 = vunpack.c.l.b16 %v96
  %v441 = vunpack.c.h.b16 %v96
  %v442 = vunpack.c.l.b16 %v97
  %v443 = vunpack.c.h.b16 %v97
  %v444 = vunpack.c.l.b16 %v98
  %v445 = vunpack.c.h.b16 %v98
  %v446 = vunpack.c.l.b16 %v99
  %v447 = vunpack.c.h.b16 %v99
  %v448 = vunpack.c.l.b16 %v100
  %v449 = vunpack.c.h.b16 %v100
  %v450 = vunpack.c.l.b16 %v101
  %v451 = vunpack.c.h.b16 %v101
  %v452 = vunpack.c.l.b16 %v102
  %v453 = vunpack.c.h.b16 %v102
  %v454 = vunpack.c.l.b16 %v103
  %v455 = vunpack.c.h.b16 %v103
  %v456 = vunpack.c.l.b16 %v104
  %v457 = vunpack.c.h.b16 %v104
  %v458 = vunpack.c.l.b16 %v105
  %v459 = vunpack.c.h.b16 %v105
  %v460 = vunpack.c.l.b16 %v106
  %v461 = vunpack.c.h.b16 %v106
  %v462 = vunpack.c.l.b16 %v107
  %v463 = vunpack.c.h.b16 %v107
  %v464 = vunpack.c.l.b16 %v108
  %v465 = vunpack.c.h.b16 %v108
  %v466 = vunpack.c.l.b16 %v109
  %v467 = vunpack.c.h.b16 %v109
  %v468 = vunpack.c.l.b16 %v110
  %v469 = vunpack.c.h.b16 %v110
  %v470 = vunpack.c.l.b16 %v111
  %v471 = vunpack.c.h.b16 %v111
  %v472 = vunpack.c.l.b16 %v112
  %v473 = vunpack.c.h.b16 %v112
  %v474 = vunpack.c.l.b16 %v113
  %v475 = vunpack.c.h.b16 %v113
  %v476 = vunpack.c.l.b16 %v114
  %v477 = vunpack.c.h.b16 %v114
  %v478 = vunpack.c.l.b16 %v115
  %v479 = vunpack.c.h.b16 %v115
  %v480 = vunpack.c.l.b16 %v116
  %v481 = vunpack.c.h.b16 %v116
  %v482 = vunpack.c.l.b16 %v117
  %v483 = vunpack.c.h.b16 %v117
  %v484 = vunpack.c.l.b16 %v118
  %v485 = vunpack.c.h.b16 %v118
  %v486 = vunpack.c.l.b16 %v119
  %v487 = vunpack.c.h.b16 %v119
  %v488 = vunpack.c.l.b16 %v120
  %v489 = vunpack.c.h.b16 %v120
  %v490 = vunpack.c.l.b16 %v121
  %v491 = vunpack.c.h.b16 %v121
  %v492 = vunpack.c.l.b16 %v122
  %v493 = vunpack.c.h.b16 %v122
  %v494 = vunpack.c.l.b16 %v123
  %v495 = vunpack.c.h.b16 %v123
  %v496 = vunpack.c.l.b16 %v124
  %v497 = vunpack.c.h.b16 %v124
  %v498 = vunpack.c.l.b16 %v125
  %v499 = vunpack.c.h.b16 %v125
  %v500 = vunpack.c.l.b16 %v126
  %v501 = vunpack.c.h.b16 %v126
  %v502 = vunpack.c.l.b16 %v127
  %v503 = vunpack.c.h.b16 %v127
  %v504 = vpack.c.b16 %v308, %v304
  %v505 = vpack.c.b16 %v309, %v305
  %v506 = vpack.c.b16 %v310, %v306
  %v507 = vpack.c.b16 %v311, %v307
  %v508 = vpack.c.b16 %v316, %v312
  %v509 = vpack.c.b16 %v317, %v313
  %v510 = vpack.c.b16 %v318, %v314
  %v511 = vpack.c.b16 %v319, %v315
  %v512 = vpack.c.b16 %v324, %v320
  %v513 = vpack.c.b16 %v325, %v321
  %v514 = vpack.c.b16 %v326, %v322
  %v515 = vpack.c.b16 %v327, %v323
  %v516 = vpack.c.b16 %v332, %v328
  %v517 = vpack.c.b16 %v333, %v329
  %v518 = vpack.c.b16 %v334, %v330
  %v519 = vpack.c.b16 %v335, %v331
  %v520 = vpack.c.b16 %v340, %v336
  %v521 = vpack.c.b16 %v341, %v337
  %v522 = vpack.c.b16 %v342, %v338
  %v523 = vpack.c.b16 %v343, %v339
  %v524 = vpack.c.b16 %v348, %v344
  %v525 = vpack.c.b16 %v349, %v345
  %v526 = vpack.c.b16 %v350, %v346
  %v527 = vpack.c.b16 %v351, %v347
  %v528 = vpack.c.b16 %v356, %v352
  %v529 = vpack.c.b16 %v357, %v353
  %v530 = vpack.c.b16 %v358, %v354
  %v531 = vpack.c.b16 %v359, %v355
  %v532 = vpack.c.b16 %v364, %v360
  %v533 = vpack.c.b16 %v365, %v361
  %v534 = vpack.c.b16 %v366, %v362
  %v535 = vpack.c.b16 %v367, %v363
  %v536 = vpack.c.b16 %v372, %v368
  %v537 = vpack.c.b16 %v373, %v369
  %v538 = vpack.c.b16 %v374, %v370
  %v539 = vpack.c.b16 %v375, %v371
  %v540 = vpack.c.b16 %v380, %v376
  %v541 = vpack.c.b16 %v381, %v377
  %v542 = vpack.c.b16 %v382, %v378
  %v543 = vpack.c.b16 %v383, %v379
  %v544 = vpack.c.b16 %v388, %v384
  %v545 = vpack.c.b16 %v389, %v385
  %v546 = vpack.c.b16 %v390, %v386
  %v547 = vpack.c.b16 %v391, %v387
  %v548 = vpack.c.b16 %v396, %v392
  %v549 = vpack.c.b16 %v397, %v393
  %v550 = vpack.c.b16 %v398, %v394
  %v551 = vpack.c.b16 %v399, %v395
  %v552 = vpack.c.b16 %v404, %v400
  %v553 = vpack.c.b16 %v405, %v401
  %v554 = vpack.c.b16 %v406, %v402
  %v555 = vpack.c.b16 %v407, %v403
  %v556 = vpack.c.b16 %v412, %v408
  %v557 = vpack.c.b16 %v413, %v409
  %v558 = vpack.c.b16 %v414, %v410
  %v559 = vpack.c.b16 %v415, %v411
  %v560 = vpack.c.b16 %v420, %v416
  %v561 = vpack.c.b16 %v421, %v417
  %v562 = vpack.c.b16 %v422, %v418
  %v563 = vpack.c.b16 %v423, %v419
  %v564 = vpack.c.b16 %v428, %v424
  %v565 = vpack.c.b16 %v429, %v425
  %v566 = vpack.c.b16 %v430, %v426
  %v567 = vpack.c.b16 %v431, %v427
  %v568 = vpack.c.b16 %v436, %v432
  %v569 = vpack.c.b16 %v437, %v433
  %v570 = vpack.c.b16 %v438, %v434
  %v571 = vpack.c.b16 %v439, %v435
  %v572 = vpack.c.b16 %v444, %v440
  %v573 = vpack.c.b16 %v445, %v441
  %v574 = vpack.c.b16 %v446, %v442
  %v575 = vpack.c.b16 %v447, %v443
  %v576 = vpack.c.b16 %v452, %v448
  %v577 = vpack.c.b16 %v453, %v449
  %v578 = vpack.c.b16 %v454, %v450
  %v579 = vpack.c.b16 %v455, %v451
  %v580 = vpack.c.b16 %v460, %v456
  %v581 = vpack.c.b16 %v461, %v457
  %v582 = vpack.c.b16 %v462, %v458
  %v583 = vpack.c.b16 %v463, %v459
  %v584 = vpack.c.b16 %v468, %v464
  %v585 = vpack.c.b16 %v469, %v465
  %v586 = vpack.c.b16 %v470, %v466
  %v587 = vpack.c.b16 %v471, %v467
  %v588 = vpack.c.b16 %v476, %v472
  %v589 = vpack.c.b16 %v477, %v473
  %v590 = vpack.c.b16 %v478, %v474
  %v591 = vpack.c.b16 %v479, %v475
  %v592 = vpack.c.b16 %v484, %v480
  %v593 = vpack.c.b16 %v485, %v481
  %v594 = vpack.c.b16 %v486, %v482
  %v595 = vpack.c.b16 %v487, %v483
  %v596 = vpack.c.b16 %v492, %v488
  %v597 = vpack.c.b16 %v493, %v489
  %v598 = vpack.c.b16 %v494, %v490
  %v599 = vpack.c.b16 %v495, %v491
  %v600 = vpack.c.b16 %v500, %v496
  %v601 = vpack.c.b16 %v501, %v497
  %v602 = vpack.c.b16 %v502, %v498
  %v603 = vpack.c.b16 %v503, %v499
  %vm704 = vcmask 130048
  %v706 = vsel %vm704, %v179, 0
  %v709 = vsel %vm704, %v183, 0
  %v712 = vsel %vm704, %v187, 0
  %v715 = vsel %vm704, %v191, 0
  %717 = vmatprep.subr.bf16.mxu0 %v533
  %718 = vmatpush1.bf16.msra.mxu0 %v532
  %719 = vmatprep.subr.bf16.mxu0 %v529
  %720 = vmatpush1.bf16.msra.mxu0 %v528
  %721 = vmatprep.subr.bf16.mxu0 %v525
  %722 = vmatpush1.bf16.msra.mxu0 %v524
  %723 = vmatprep.subr.bf16.mxu0 %v521
  %724 = vmatpush1.bf16.msra.mxu0 %v520
  %725 = vmatprep.subr.bf16.mxu0 %v517
  %726 = vmatpush1.bf16.msra.mxu0 %v516
  %727 = vmatprep.subr.bf16.mxu0 %v513
  %728 = vmatpush1.bf16.msra.mxu0 %v512
  %729 = vmatprep.subr.bf16.mxu0 %v509
  %730 = vmatpush1.bf16.msra.mxu0 %v508
  %731 = vmatprep.subr.bf16.mxu0 %v505
  %732 = vmatpush1.bf16.msra.mxu0 %v504
  %733 = vmatprep.subr.bf16.mxu0 %v565
  %734 = vmatpush2.bf16.msra.mxu0 %v564
  %735 = vmatprep.subr.bf16.mxu0 %v561
  %736 = vmatpush2.bf16.msra.mxu0 %v560
  %737 = vmatprep.subr.bf16.mxu0 %v557
  %738 = vmatpush2.bf16.msra.mxu0 %v556
  %739 = vmatprep.subr.bf16.mxu0 %v553
  %740 = vmatpush2.bf16.msra.mxu0 %v552
  %741 = vmatprep.subr.bf16.mxu0 %v549
  %742 = vmatpush2.bf16.msra.mxu0 %v548
  %743 = vmatprep.subr.bf16.mxu0 %v545
  %744 = vmatpush2.bf16.msra.mxu0 %v544
  %745 = vmatprep.subr.bf16.mxu0 %v541
  %746 = vmatpush2.bf16.msra.mxu0 %v540
  %747 = vmatprep.subr.bf16.mxu0 %v537
  %748 = vmatpush2.bf16.msra.mxu0 %v536
  %749 = vmatprep.mubr.bf16.mxu0 %v177
  %750 = vmatmul.mubr.bf16.gmra.mxu0 %v176
  %v751 = vpop.f32.mrf.mxu0
  %v752 = vadd.f32 0.0, %v751
  %v753 = vpop.f32.mrf.mxu0
  %v754 = vadd.f32 0.0, %v753
  %v755 = vpop.f32.mrf.mxu0
  %v756 = vadd.f32 0.0, %v755
  %v757 = vpop.f32.mrf.mxu0
  %v758 = vadd.f32 0.0, %v757
  %759 = vmatprep.mubr.bf16.mxu0 %v181
  %760 = vmatmul.mubr.bf16.gmra.mxu0 %v180
  %v761 = vpop.f32.mrf.mxu0
  %v762 = vadd.f32 0.0, %v761
  %v763 = vpop.f32.mrf.mxu0
  %v764 = vadd.f32 0.0, %v763
  %v765 = vpop.f32.mrf.mxu0
  %v766 = vadd.f32 0.0, %v765
  %v767 = vpop.f32.mrf.mxu0
  %v768 = vadd.f32 0.0, %v767
  %769 = vmatprep.mubr.bf16.mxu0 %v185
  %770 = vmatmul.mubr.bf16.gmra.mxu0 %v184
  %v771 = vpop.f32.mrf.mxu0
  %v772 = vadd.f32 0.0, %v771
  %v773 = vpop.f32.mrf.mxu0
  %v774 = vadd.f32 0.0, %v773
  %v775 = vpop.f32.mrf.mxu0
  %v776 = vadd.f32 0.0, %v775
  %v777 = vpop.f32.mrf.mxu0
  %v778 = vadd.f32 0.0, %v777
  %779 = vmatprep.mubr.bf16.mxu0 %v189
  %780 = vmatmul.mubr.bf16.gmra.mxu0 %v188
  %v781 = vpop.f32.mrf.mxu0
  %v782 = vadd.f32 0.0, %v781
  %v783 = vpop.f32.mrf.mxu0
  %v784 = vadd.f32 0.0, %v783
  %v785 = vpop.f32.mrf.mxu0
  %v786 = vadd.f32 0.0, %v785
  %v787 = vpop.f32.mrf.mxu0
  %v788 = vadd.f32 0.0, %v787
  %789 = vdwg.mxu0
  %790 = vmatprep.subr.bf16.mxu0 %v597
  %791 = vmatpush1.bf16.msra.mxu0 %v596
  %792 = vmatprep.subr.bf16.mxu0 %v593
  %793 = vmatpush1.bf16.msra.mxu0 %v592
  %794 = vmatprep.subr.bf16.mxu0 %v589
  %795 = vmatpush1.bf16.msra.mxu0 %v588
  %796 = vmatprep.subr.bf16.mxu0 %v585
  %797 = vmatpush1.bf16.msra.mxu0 %v584
  %798 = vmatprep.subr.bf16.mxu0 %v581
  %799 = vmatpush1.bf16.msra.mxu0 %v580
  %800 = vmatprep.subr.bf16.mxu0 %v577
  %801 = vmatpush1.bf16.msra.mxu0 %v576
  %802 = vmatprep.subr.bf16.mxu0 %v573
  %803 = vmatpush1.bf16.msra.mxu0 %v572
  %804 = vmatprep.subr.bf16.mxu0 %v569
  %805 = vmatpush1.bf16.msra.mxu0 %v568
  %806 = vmatprep.subr.bf16.mxu0 0
  %807 = vmatpush2.bf16.msra.mxu0 0
  %808 = vmatprep.subr.bf16.mxu0 0
  %809 = vmatpush2.bf16.msra.mxu0 0
  %810 = vmatprep.subr.bf16.mxu0 0
  %811 = vmatpush2.bf16.msra.mxu0 0
  %812 = vmatprep.subr.bf16.mxu0 0
  %813 = vmatpush2.bf16.msra.mxu0 0
  %814 = vmatprep.subr.bf16.mxu0 0
  %815 = vmatpush2.bf16.msra.mxu0 0
  %816 = vmatprep.subr.bf16.mxu0 0
  %817 = vmatpush2.bf16.msra.mxu0 0
  %818 = vmatprep.subr.bf16.mxu0 0
  %819 = vmatpush2.bf16.msra.mxu0 0
  %820 = vmatprep.subr.bf16.mxu0 %v601
  %821 = vmatpush2.bf16.msra.mxu0 %v600
  %822 = vmatprep.mubr.bf16.mxu0 %v706
  %823 = vmatmul.mubr.bf16.gmra.mxu0 %v178
  %v824 = vpop.f32.mrf.mxu0
  %v825 = vadd.f32 %v752, %v824
  %v826 = vpop.f32.mrf.mxu0
  %v827 = vadd.f32 %v754, %v826
  %v828 = vpop.f32.mrf.mxu0
  %v829 = vadd.f32 %v756, %v828
  %v830 = vpop.f32.mrf.mxu0
  %v831 = vadd.f32 %v758, %v830
  %832 = vmatprep.mubr.bf16.mxu0 %v709
  %833 = vmatmul.mubr.bf16.gmra.mxu0 %v182
  %v834 = vpop.f32.mrf.mxu0
  %v835 = vadd.f32 %v762, %v834
  %v836 = vpop.f32.mrf.mxu0
  %v837 = vadd.f32 %v764, %v836
  %v838 = vpop.f32.mrf.mxu0
  %v839 = vadd.f32 %v766, %v838
  %v840 = vpop.f32.mrf.mxu0
  %v841 = vadd.f32 %v768, %v840
  %842 = vmatprep.mubr.bf16.mxu0 %v712
  %843 = vmatmul.mubr.bf16.gmra.mxu0 %v186
  %v844 = vpop.f32.mrf.mxu0
  %v845 = vadd.f32 %v772, %v844
  %v846 = vpop.f32.mrf.mxu0
  %v847 = vadd.f32 %v774, %v846
  %v848 = vpop.f32.mrf.mxu0
  %v849 = vadd.f32 %v776, %v848
  %v850 = vpop.f32.mrf.mxu0
  %v851 = vadd.f32 %v778, %v850
  %852 = vmatprep.mubr.bf16.mxu0 %v715
  %853 = vmatmul.mubr.bf16.gmra.mxu0 %v190
  %v854 = vpop.f32.mrf.mxu0
  %v855 = vadd.f32 %v782, %v854
  %v856 = vpop.f32.mrf.mxu0
  %v857 = vadd.f32 %v784, %v856
  %v858 = vpop.f32.mrf.mxu0
  %v859 = vadd.f32 %v786, %v858
  %v860 = vpop.f32.mrf.mxu0
  %v861 = vadd.f32 %v788, %v860
  %862 = vdwg.mxu0
  %863 = vmatprep.subr.bf16.mxu0 %v535
  %864 = vmatpush1.bf16.msra.mxu0 %v534
  %865 = vmatprep.subr.bf16.mxu0 %v531
  %866 = vmatpush1.bf16.msra.mxu0 %v530
  %867 = vmatprep.subr.bf16.mxu0 %v527
  %868 = vmatpush1.bf16.msra.mxu0 %v526
  %869 = vmatprep.subr.bf16.mxu0 %v523
  %870 = vmatpush1.bf16.msra.mxu0 %v522
  %871 = vmatprep.subr.bf16.mxu0 %v519
  %872 = vmatpush1.bf16.msra.mxu0 %v518
  %873 = vmatprep.subr.bf16.mxu0 %v515
  %874 = vmatpush1.bf16.msra.mxu0 %v514
  %875 = vmatprep.subr.bf16.mxu0 %v511
  %876 = vmatpush1.bf16.msra.mxu0 %v510
  %877 = vmatprep.subr.bf16.mxu0 %v507
  %878 = vmatpush1.bf16.msra.mxu0 %v506
  %879 = vmatprep.subr.bf16.mxu0 %v567
  %880 = vmatpush2.bf16.msra.mxu0 %v566
  %881 = vmatprep.subr.bf16.mxu0 %v563
  %882 = vmatpush2.bf16.msra.mxu0 %v562
  %883 = vmatprep.subr.bf16.mxu0 %v559
  %884 = vmatpush2.bf16.msra.mxu0 %v558
  %885 = vmatprep.subr.bf16.mxu0 %v555
  %886 = vmatpush2.bf16.msra.mxu0 %v554
  %887 = vmatprep.subr.bf16.mxu0 %v551
  %888 = vmatpush2.bf16.msra.mxu0 %v550
  %889 = vmatprep.subr.bf16.mxu0 %v547
  %890 = vmatpush2.bf16.msra.mxu0 %v546
  %891 = vmatprep.subr.bf16.mxu0 %v543
  %892 = vmatpush2.bf16.msra.mxu0 %v542
  %893 = vmatprep.subr.bf16.mxu0 %v539
  %894 = vmatpush2.bf16.msra.mxu0 %v538
  %895 = vmatprep.mubr.bf16.mxu0 %v177
  %896 = vmatmul.mubr.bf16.gmra.mxu0 %v176
  %v897 = vpop.f32.mrf.mxu0
  %v898 = vadd.f32 0.0, %v897
  %v899 = vpop.f32.mrf.mxu0
  %v900 = vadd.f32 0.0, %v899
  %v901 = vpop.f32.mrf.mxu0
  %v902 = vadd.f32 0.0, %v901
  %v903 = vpop.f32.mrf.mxu0
  %v904 = vadd.f32 0.0, %v903
  %905 = vmatprep.mubr.bf16.mxu0 %v181
  %906 = vmatmul.mubr.bf16.gmra.mxu0 %v180
  %v907 = vpop.f32.mrf.mxu0
  %v908 = vadd.f32 0.0, %v907
  %v909 = vpop.f32.mrf.mxu0
  %v910 = vadd.f32 0.0, %v909
  %v911 = vpop.f32.mrf.mxu0
  %v912 = vadd.f32 0.0, %v911
  %v913 = vpop.f32.mrf.mxu0
  %v914 = vadd.f32 0.0, %v913
  %915 = vmatprep.mubr.bf16.mxu0 %v185
  %916 = vmatmul.mubr.bf16.gmra.mxu0 %v184
  %v917 = vpop.f32.mrf.mxu0
  %v918 = vadd.f32 0.0, %v917
  %v919 = vpop.f32.mrf.mxu0
  %v920 = vadd.f32 0.0, %v919
  %v921 = vpop.f32.mrf.mxu0
  %v922 = vadd.f32 0.0, %v921
  %v923 = vpop.f32.mrf.mxu0
  %v924 = vadd.f32 0.0, %v923
  %925 = vmatprep.mubr.bf16.mxu0 %v189
  %926 = vmatmul.mubr.bf16.gmra.mxu0 %v188
  %v927 = vpop.f32.mrf.mxu0
  %v928 = vadd.f32 0.0, %v927
  %v929 = vpop.f32.mrf.mxu0
  %v930 = vadd.f32 0.0, %v929
  %v931 = vpop.f32.mrf.mxu0
  %v932 = vadd.f32 0.0, %v931
  %v933 = vpop.f32.mrf.mxu0
  %v934 = vadd.f32 0.0, %v933
  %935 = vdwg.mxu0
  %936 = vmatprep.subr.bf16.mxu0 %v599
  %937 = vmatpush1.bf16.msra.mxu0 %v598
  %938 = vmatprep.subr.bf16.mxu0 %v595
  %939 = vmatpush1.bf16.msra.mxu0 %v594
  %940 = vmatprep.subr.bf16.mxu0 %v591
  %941 = vmatpush1.bf16.msra.mxu0 %v590
  %942 = vmatprep.subr.bf16.mxu0 %v587
  %943 = vmatpush1.bf16.msra.mxu0 %v586
  %944 = vmatprep.subr.bf16.mxu0 %v583
  %945 = vmatpush1.bf16.msra.mxu0 %v582
  %946 = vmatprep.subr.bf16.mxu0 %v579
  %947 = vmatpush1.bf16.msra.mxu0 %v578
  %948 = vmatprep.subr.bf16.mxu0 %v575
  %949 = vmatpush1.bf16.msra.mxu0 %v574
  %950 = vmatprep.subr.bf16.mxu0 %v571
  %951 = vmatpush1.bf16.msra.mxu0 %v570
  %952 = vmatprep.subr.bf16.mxu0 0
  %953 = vmatpush2.bf16.msra.mxu0 0
  %954 = vmatprep.subr.bf16.mxu0 0
  %955 = vmatpush2.bf16.msra.mxu0 0
  %956 = vmatprep.subr.bf16.mxu0 0
  %957 = vmatpush2.bf16.msra.mxu0 0
  %958 = vmatprep.subr.bf16.mxu0 0
  %959 = vmatpush2.bf16.msra.mxu0 0
  %960 = vmatprep.subr.bf16.mxu0 0
  %961 = vmatpush2.bf16.msra.mxu0 0
  %962 = vmatprep.subr.bf16.mxu0 0
  %963 = vmatpush2.bf16.msra.mxu0 0
  %964 = vmatprep.subr.bf16.mxu0 0
  %965 = vmatpush2.bf16.msra.mxu0 0
  %966 = vmatprep.subr.bf16.mxu0 %v603
  %967 = vmatpush2.bf16.msra.mxu0 %v602
  %968 = vmatprep.mubr.bf16.mxu0 %v706
  %969 = vmatmul.mubr.bf16.gmra.mxu0 %v178
  %v970 = vpop.f32.mrf.mxu0
  %v971 = vadd.f32 %v898, %v970
  %v972 = vpop.f32.mrf.mxu0
  %v973 = vadd.f32 %v900, %v972
  %v974 = vpop.f32.mrf.mxu0
  %v975 = vadd.f32 %v902, %v974
  %v976 = vpop.f32.mrf.mxu0
  %v977 = vadd.f32 %v904, %v976
  %978 = vmatprep.mubr.bf16.mxu0 %v709
  %979 = vmatmul.mubr.bf16.gmra.mxu0 %v182
  %v980 = vpop.f32.mrf.mxu0
  %v981 = vadd.f32 %v908, %v980
  %v982 = vpop.f32.mrf.mxu0
  %v983 = vadd.f32 %v910, %v982
  %v984 = vpop.f32.mrf.mxu0
  %v985 = vadd.f32 %v912, %v984
  %v986 = vpop.f32.mrf.mxu0
  %v987 = vadd.f32 %v914, %v986
  %988 = vmatprep.mubr.bf16.mxu0 %v712
  %989 = vmatmul.mubr.bf16.gmra.mxu0 %v186
  %v990 = vpop.f32.mrf.mxu0
  %v991 = vadd.f32 %v918, %v990
  %v992 = vpop.f32.mrf.mxu0
  %v993 = vadd.f32 %v920, %v992
  %v994 = vpop.f32.mrf.mxu0
  %v995 = vadd.f32 %v922, %v994
  %v996 = vpop.f32.mrf.mxu0
  %v997 = vadd.f32 %v924, %v996
  %998 = vmatprep.mubr.bf16.mxu0 %v715
  %999 = vmatmul.mubr.bf16.gmra.mxu0 %v190
  %v1000 = vpop.f32.mrf.mxu0
  %v1001 = vadd.f32 %v928, %v1000
  %v1002 = vpop.f32.mrf.mxu0
  %v1003 = vadd.f32 %v930, %v1002
  %v1004 = vpop.f32.mrf.mxu0
  %v1005 = vadd.f32 %v932, %v1004
  %v1006 = vpop.f32.mrf.mxu0
  %v1007 = vadd.f32 %v934, %v1006
  %1008 = vdwg.mxu0
  %v1009 = vmul.f32 %v825, %v845
  %v1010 = vmul.f32 %v827, %v847
  %v1011 = vmul.f32 %v971, %v991
  %v1012 = vmul.f32 %v973, %v993
  %v1013 = vmul.f32 %v829, %v849
  %v1014 = vmul.f32 %v831, %v851
  %v1015 = vmul.f32 %v975, %v995
  %v1016 = vmul.f32 %v977, %v997
  %v1017 = vmul.f32 %v835, %v855
  %v1018 = vmul.f32 %v837, %v857
  %v1019 = vmul.f32 %v981, %v1001
  %v1020 = vmul.f32 %v983, %v1003
  %v1021 = vmul.f32 %v839, %v859
  %v1022 = vmul.f32 %v841, %v861
  %v1023 = vmul.f32 %v985, %v1005
  %v1024 = vmul.f32 %v987, %v1007
  %1025 = vst [vmem:[%s2] sm:$0xff] %v1009
  %1026 = vst [vmem:[%s2 + $0x8] sm:$0xff] %v1010
  %1027 = vst [vmem:[%s2 + $0x10] sm:$0xff] %v1011
  %1028 = vst [vmem:[%s2 + $0x18] sm:$0xff] %v1012
  %1029 = vst [vmem:[%s2 + $0x20] sm:$0xff] %v1013
  %1030 = vst [vmem:[%s2 + $0x28] sm:$0xff] %v1014
  %1031 = vst [vmem:[%s2 + $0x30] sm:$0xff] %v1015
  %1032 = vst [vmem:[%s2 + $0x38] sm:$0xff] %v1016
  %1033 = vst [vmem:[%s2 + $0x40] sm:$0xff] %v1017
  %1034 = vst [vmem:[%s2 + $0x48] sm:$0xff] %v1018
  %1035 = vst [vmem:[%s2 + $0x50] sm:$0xff] %v1019
  %1036 = vst [vmem:[%s2 + $0x58] sm:$0xff] %v1020
  %1037 = vst [vmem:[%s2 + $0x60] sm:$0xff] %v1021
  %1038 = vst [vmem:[%s2 + $0x68] sm:$0xff] %v1022
  %1039 = vst [vmem:[%s2 + $0x70] sm:$0xff] %v1023
  %1040 = vst [vmem:[%s2 + $0x78] sm:$0xff] %v1024
  // Predicated region
  $region10: #{bilinear_cnn_forward.7} parent=0 // pred_check
    _
  $region11: #{bilinear_cnn_forward.7} parent=0 // pred_check_branch
    %1042 = sbr.rel (0) target = $region13
  $region12: #{bilinear_cnn_forward.7} parent=0 // pred_region
    _
  $region13: #{bilinear_cnn_forward.7} parent=0 // pred_fallthru
    _
  // Predicated region
  $region14: #{bilinear_cnn_forward.7} parent=0 // pred_check
    _
  $region15: #{bilinear_cnn_forward.7} parent=0 // pred_check_branch
    %1044 = sbr.rel (0) target = $region17
  $region16: #{bilinear_cnn_forward.7} parent=0 // pred_region
    _
  $region17: #{bilinear_cnn_forward.7} parent=0 // pred_fallthru
    _

// kernel: bilinear_cnn_forward.8
$region0: #{bilinear_cnn_forward.8}
  #allocation0 [shape = 'u32[]', space=smem, size = 0x4, offset = 0x4, fixed_abs, tag = 'smem constant byte address 0x4 - core index']
  #allocation1 [shape = 'u32[144,128]{1,0:T(1,128)}', space=vmem, size = 0x12000, scoped, tag = 'internal scratch']
  %s0 = inlined_call_operand.vmem [shape: bf16[64,800], index: 0, kind: input, shape index: {}]
  %s1 = inlined_call_operand.vmem [shape: bf16[800,512], index: 1, kind: input, shape index: {}]
  %s2 = inlined_call_operand.vmem [shape: f32[32,512], index: 2, kind: output, shape index: {}]
  %s3 = sld [smem:[#allocation0]]
  $region18: #{bilinear_cnn_forward.8} parent=0
    _
  %s5 = ssub.s32 1, %s3
  %s6 = scalar_select 0, %s5, %s3
  // Predicated region
  $region2: #{bilinear_cnn_forward.8} parent=0 // pred_check
    _
  $region3: #{bilinear_cnn_forward.8} parent=0 // pred_check_branch
    %8 = sbr.rel (0) target = $region5
  $region4: #{bilinear_cnn_forward.8} parent=0 // pred_region
    _
  $region5: #{bilinear_cnn_forward.8} parent=0 // pred_fallthru
    _
  // Predicated region
  $region6: #{bilinear_cnn_forward.8} parent=0 // pred_check
    _
  $region7: #{bilinear_cnn_forward.8} parent=0 // pred_check_branch
    %10 = sbr.rel (0) target = $region9
  $region8: #{bilinear_cnn_forward.8} parent=0 // pred_region
    _
  $region9: #{bilinear_cnn_forward.8} parent=0 // pred_fallthru
    _
  %v12 = vld [vmem:[%s0] sm:$0xff]
  %v13 = vld [vmem:[%s0 + $0x8] sm:$0xff]
  %v14 = vld [vmem:[%s0 + $0x10] sm:$0xff]
  %v15 = vld [vmem:[%s0 + $0x18] sm:$0xf]
  %v16 = vld [vmem:[%s0 + $0x1c] sm:$0xff]
  %v17 = vld [vmem:[%s0 + $0x24] sm:$0xff]
  %v18 = vld [vmem:[%s0 + $0x2c] sm:$0xff]
  %v19 = vld [vmem:[%s0 + $0x34] sm:$0xf]
  %v20 = vld [vmem:[%s0 + $0x38] sm:$0xff]
  %v21 = vld [vmem:[%s0 + $0x40] sm:$0xff]
  %v22 = vld [vmem:[%s0 + $0x48] sm:$0xff]
  %v23 = vld [vmem:[%s0 + $0x50] sm:$0xf]
  %v24 = vld [vmem:[%s0 + $0x54] sm:$0xff]
  %v25 = vld [vmem:[%s0 + $0x5c] sm:$0xff]
  %v26 = vld [vmem:[%s0 + $0x64] sm:$0xff]
  %v27 = vld [vmem:[%s0 + $0x6c] sm:$0xf]
  %v28 = vld [vmem:[%s0 + $0x70] sm:$0xff]
  %v29 = vld [vmem:[%s0 + $0x78] sm:$0xff]
  %v30 = vld [vmem:[%s0 + $0x80] sm:$0xff]
  %v31 = vld [vmem:[%s0 + $0x88] sm:$0xf]
  %v32 = vld [vmem:[%s0 + $0x8c] sm:$0xff]
  %v33 = vld [vmem:[%s0 + $0x94] sm:$0xff]
  %v34 = vld [vmem:[%s0 + $0x9c] sm:$0xff]
  %v35 = vld [vmem:[%s0 + $0xa4] sm:$0xf]
  %v36 = vld [vmem:[%s0 + $0xa8] sm:$0xff]
  %v37 = vld [vmem:[%s0 + $0xb0] sm:$0xff]
  %v38 = vld [vmem:[%s0 + $0xb8] sm:$0xff]
  %v39 = vld [vmem:[%s0 + $0xc0] sm:$0xf]
  %v40 = vld [vmem:[%s0 + $0xc4] sm:$0xff]
  %v41 = vld [vmem:[%s0 + $0xcc] sm:$0xff]
  %v42 = vld [vmem:[%s0 + $0xd4] sm:$0xff]
  %v43 = vld [vmem:[%s0 + $0xdc] sm:$0xf]
  %v44 = vld [vmem:[%s1] sm:$0xff]
  %v45 = vld [vmem:[%s1 + $0x8] sm:$0xff]
  %v46 = vld [vmem:[%s1 + $0x10] sm:$0xff]
  %v47 = vld [vmem:[%s1 + $0x18] sm:$0xff]
  %v48 = vld [vmem:[%s1 + $0x20] sm:$0xff]
  %v49 = vld [vmem:[%s1 + $0x28] sm:$0xff]
  %v50 = vld [vmem:[%s1 + $0x30] sm:$0xff]
  %v51 = vld [vmem:[%s1 + $0x38] sm:$0xff]
  %v52 = vld [vmem:[%s1 + $0x40] sm:$0xff]
  %v53 = vld [vmem:[%s1 + $0x48] sm:$0xff]
  %v54 = vld [vmem:[%s1 + $0x50] sm:$0xff]
  %v55 = vld [vmem:[%s1 + $0x58] sm:$0xff]
  %v56 = vld [vmem:[%s1 + $0x60] sm:$0xff]
  %v57 = vld [vmem:[%s1 + $0x68] sm:$0xff]
  %v58 = vld [vmem:[%s1 + $0x70] sm:$0xff]
  %v59 = vld [vmem:[%s1 + $0x78] sm:$0xff]
  %v60 = vld [vmem:[%s1 + $0x80] sm:$0xff]
  %v61 = vld [vmem:[%s1 + $0x88] sm:$0xff]
  %v62 = vld [vmem:[%s1 + $0x90] sm:$0xff]
  %v63 = vld [vmem:[%s1 + $0x98] sm:$0xff]
  %v64 = vld [vmem:[%s1 + $0xa0] sm:$0xff]
  %v65 = vld [vmem:[%s1 + $0xa8] sm:$0xff]
  %v66 = vld [vmem:[%s1 + $0xb0] sm:$0xff]
  %v67 = vld [vmem:[%s1 + $0xb8] sm:$0xff]
  %v68 = vld [vmem:[%s1 + $0xc0] sm:$0xff]
  %v69 = vld [vmem:[%s1 + $0xc8] sm:$0xff]
  %v70 = vld [vmem:[%s1 + $0xd0] sm:$0xff]
  %v71 = vld [vmem:[%s1 + $0xd8] sm:$0xff]
  %v72 = vld [vmem:[%s1 + $0xe0] sm:$0xff]
  %v73 = vld [vmem:[%s1 + $0xe8] sm:$0xff]
  %v74 = vld [vmem:[%s1 + $0xf0] sm:$0xff]
  %v75 = vld [vmem:[%s1 + $0xf8] sm:$0xff]
  %v76 = vld [vmem:[%s1 + $0x100] sm:$0xff]
  %v77 = vld [vmem:[%s1 + $0x108] sm:$0xff]
  %v78 = vld [vmem:[%s1 + $0x110] sm:$0xff]
  %v79 = vld [vmem:[%s1 + $0x118] sm:$0xff]
  %v80 = vld [vmem:[%s1 + $0x120] sm:$0xff]
  %v81 = vld [vmem:[%s1 + $0x128] sm:$0xff]
  %v82 = vld [vmem:[%s1 + $0x130] sm:$0xff]
  %v83 = vld [vmem:[%s1 + $0x138] sm:$0xff]
  %v84 = vld [vmem:[%s1 + $0x140] sm:$0xff]
  %v85 = vld [vmem:[%s1 + $0x148] sm:$0xff]
  %v86 = vld [vmem:[%s1 + $0x150] sm:$0xff]
  %v87 = vld [vmem:[%s1 + $0x158] sm:$0xff]
  %v88 = vld [vmem:[%s1 + $0x160] sm:$0xff]
  %v89 = vld [vmem:[%s1 + $0x168] sm:$0xff]
  %v90 = vld [vmem:[%s1 + $0x170] sm:$0xff]
  %v91 = vld [vmem:[%s1 + $0x178] sm:$0xff]
  %v92 = vld [vmem:[%s1 + $0x180] sm:$0xff]
  %v93 = vld [vmem:[%s1 + $0x188] sm:$0xff]
  %v94 = vld [vmem:[%s1 + $0x190] sm:$0xff]
  %v95 = vld [vmem:[%s1 + $0x198] sm:$0xff]
  %v96 = vld [vmem:[%s1 + $0x1a0] sm:$0xff]
  %v97 = vld [vmem:[%s1 + $0x1a8] sm:$0xff]
  %v98 = vld [vmem:[%s1 + $0x1b0] sm:$0xff]
  %v99 = vld [vmem:[%s1 + $0x1b8] sm:$0xff]
  %v100 = vld [vmem:[%s1 + $0x1c0] sm:$0xff]
  %v101 = vld [vmem:[%s1 + $0x1c8] sm:$0xff]
  %v102 = vld [vmem:[%s1 + $0x1d0] sm:$0xff]
  %v103 = vld [vmem:[%s1 + $0x1d8] sm:$0xff]
  %v104 = vld [vmem:[%s1 + $0x1e0] sm:$0xff]
  %v105 = vld [vmem:[%s1 + $0x1e8] sm:$0xff]
  %v106 = vld [vmem:[%s1 + $0x1f0] sm:$0xff]
  %v107 = vld [vmem:[%s1 + $0x1f8] sm:$0xff]
  %v108 = vld [vmem:[%s1 + $0x200] sm:$0xff]
  %v109 = vld [vmem:[%s1 + $0x208] sm:$0xff]
  %v110 = vld [vmem:[%s1 + $0x210] sm:$0xff]
  %v111 = vld [vmem:[%s1 + $0x218] sm:$0xff]
  %v112 = vld [vmem:[%s1 + $0x220] sm:$0xff]
  %v113 = vld [vmem:[%s1 + $0x228] sm:$0xff]
  %v114 = vld [vmem:[%s1 + $0x230] sm:$0xff]
  %v115 = vld [vmem:[%s1 + $0x238] sm:$0xff]
  %v116 = vld [vmem:[%s1 + $0x240] sm:$0xff]
  %v117 = vld [vmem:[%s1 + $0x248] sm:$0xff]
  %v118 = vld [vmem:[%s1 + $0x250] sm:$0xff]
  %v119 = vld [vmem:[%s1 + $0x258] sm:$0xff]
  %v120 = vld [vmem:[%s1 + $0x260] sm:$0xff]
  %v121 = vld [vmem:[%s1 + $0x268] sm:$0xff]
  %v122 = vld [vmem:[%s1 + $0x270] sm:$0xff]
  %v123 = vld [vmem:[%s1 + $0x278] sm:$0xff]
  %v124 = vld [vmem:[%s1 + $0x280] sm:$0xff]
  %v125 = vld [vmem:[%s1 + $0x288] sm:$0xff]
  %v126 = vld [vmem:[%s1 + $0x290] sm:$0xff]
  %v127 = vld [vmem:[%s1 + $0x298] sm:$0xff]
  %v128 = vld [vmem:[%s1 + $0x2a0] sm:$0xff]
  %v129 = vld [vmem:[%s1 + $0x2a8] sm:$0xff]
  %v130 = vld [vmem:[%s1 + $0x2b0] sm:$0xff]
  %v131 = vld [vmem:[%s1 + $0x2b8] sm:$0xff]
  %v132 = vld [vmem:[%s1 + $0x2c0] sm:$0xff]
  %v133 = vld [vmem:[%s1 + $0x2c8] sm:$0xff]
  %v134 = vld [vmem:[%s1 + $0x2d0] sm:$0xff]
  %v135 = vld [vmem:[%s1 + $0x2d8] sm:$0xff]
  %v136 = vld [vmem:[%s1 + $0x2e0] sm:$0xff]
  %v137 = vld [vmem:[%s1 + $0x2e8] sm:$0xff]
  %v138 = vld [vmem:[%s1 + $0x2f0] sm:$0xff]
  %v139 = vld [vmem:[%s1 + $0x2f8] sm:$0xff]
  %v140 = vld [vmem:[%s1 + $0x300] sm:$0xff]
  %v141 = vld [vmem:[%s1 + $0x308] sm:$0xff]
  %v142 = vld [vmem:[%s1 + $0x310] sm:$0xff]
  %v143 = vld [vmem:[%s1 + $0x318] sm:$0xff]
  %v144 = vld [vmem:[%s1 + $0x320] sm:$0xff]
  %v145 = vld [vmem:[%s1 + $0x328] sm:$0xff]
  %v146 = vld [vmem:[%s1 + $0x330] sm:$0xff]
  %v147 = vld [vmem:[%s1 + $0x338] sm:$0xff]
  %v148 = vld [vmem:[%s1 + $0x340] sm:$0xff]
  %v149 = vld [vmem:[%s1 + $0x348] sm:$0xff]
  %v150 = vld [vmem:[%s1 + $0x350] sm:$0xff]
  %v151 = vld [vmem:[%s1 + $0x358] sm:$0xff]
  %v152 = vld [vmem:[%s1 + $0x360] sm:$0xff]
  %v153 = vld [vmem:[%s1 + $0x368] sm:$0xff]
  %v154 = vld [vmem:[%s1 + $0x370] sm:$0xff]
  %v155 = vld [vmem:[%s1 + $0x378] sm:$0xff]
  %v156 = vld [vmem:[%s1 + $0x380] sm:$0xff]
  %v157 = vld [vmem:[%s1 + $0x388] sm:$0xff]
  %v158 = vld [vmem:[%s1 + $0x390] sm:$0xff]
  %v159 = vld [vmem:[%s1 + $0x398] sm:$0xff]
  %v160 = vld [vmem:[%s1 + $0x3a0] sm:$0xff]
  %v161 = vld [vmem:[%s1 + $0x3a8] sm:$0xff]
  %v162 = vld [vmem:[%s1 + $0x3b0] sm:$0xff]
  %v163 = vld [vmem:[%s1 + $0x3b8] sm:$0xff]
  %v164 = vld [vmem:[%s1 + $0x3c0] sm:$0xff]
  %v165 = vld [vmem:[%s1 + $0x3c8] sm:$0xff]
  %v166 = vld [vmem:[%s1 + $0x3d0] sm:$0xff]
  %v167 = vld [vmem:[%s1 + $0x3d8] sm:$0xff]
  %v168 = vld [vmem:[%s1 + $0x3e0] sm:$0xff]
  %v169 = vld [vmem:[%s1 + $0x3e8] sm:$0xff]
  %v170 = vld [vmem:[%s1 + $0x3f0] sm:$0xff]
  %v171 = vld [vmem:[%s1 + $0x3f8] sm:$0xff]
  %v172 = vld [vmem:[%s1 + $0x400] sm:$0xff]
  %v173 = vld [vmem:[%s1 + $0x408] sm:$0xff]
  %v174 = vld [vmem:[%s1 + $0x410] sm:$0xff]
  %v175 = vld [vmem:[%s1 + $0x418] sm:$0xff]
  %v176 = vld [vmem:[%s1 + $0x420] sm:$0xff]
  %v177 = vld [vmem:[%s1 + $0x428] sm:$0xff]
  %v178 = vld [vmem:[%s1 + $0x430] sm:$0xff]
  %v179 = vld [vmem:[%s1 + $0x438] sm:$0xff]
  %v180 = vld [vmem:[%s1 + $0x440] sm:$0xff]
  %v181 = vld [vmem:[%s1 + $0x448] sm:$0xff]
  %v182 = vld [vmem:[%s1 + $0x450] sm:$0xff]
  %v183 = vld [vmem:[%s1 + $0x458] sm:$0xff]
  %v184 = vld [vmem:[%s1 + $0x460] sm:$0xff]
  %v185 = vld [vmem:[%s1 + $0x468] sm:$0xff]
  %v186 = vld [vmem:[%s1 + $0x470] sm:$0xff]
  %v187 = vld [vmem:[%s1 + $0x478] sm:$0xff]
  %v188 = vld [vmem:[%s1 + $0x480] sm:$0xff]
  %v189 = vld [vmem:[%s1 + $0x488] sm:$0xff]
  %v190 = vld [vmem:[%s1 + $0x490] sm:$0xff]
  %v191 = vld [vmem:[%s1 + $0x498] sm:$0xff]
  %v192 = vld [vmem:[%s1 + $0x4a0] sm:$0xff]
  %v193 = vld [vmem:[%s1 + $0x4a8] sm:$0xff]
  %v194 = vld [vmem:[%s1 + $0x4b0] sm:$0xff]
  %v195 = vld [vmem:[%s1 + $0x4b8] sm:$0xff]
  %v196 = vld [vmem:[%s1 + $0x4c0] sm:$0xff]
  %v197 = vld [vmem:[%s1 + $0x4c8] sm:$0xff]
  %v198 = vld [vmem:[%s1 + $0x4d0] sm:$0xff]
  %v199 = vld [vmem:[%s1 + $0x4d8] sm:$0xff]
  %v200 = vld [vmem:[%s1 + $0x4e0] sm:$0xff]
  %v201 = vld [vmem:[%s1 + $0x4e8] sm:$0xff]
  %v202 = vld [vmem:[%s1 + $0x4f0] sm:$0xff]
  %v203 = vld [vmem:[%s1 + $0x4f8] sm:$0xff]
  %v204 = vld [vmem:[%s1 + $0x500] sm:$0xff]
  %v205 = vld [vmem:[%s1 + $0x508] sm:$0xff]
  %v206 = vld [vmem:[%s1 + $0x510] sm:$0xff]
  %v207 = vld [vmem:[%s1 + $0x518] sm:$0xff]
  %v208 = vld [vmem:[%s1 + $0x520] sm:$0xff]
  %v209 = vld [vmem:[%s1 + $0x528] sm:$0xff]
  %v210 = vld [vmem:[%s1 + $0x530] sm:$0xff]
  %v211 = vld [vmem:[%s1 + $0x538] sm:$0xff]
  %v212 = vld [vmem:[%s1 + $0x540] sm:$0xff]
  %v213 = vld [vmem:[%s1 + $0x548] sm:$0xff]
  %v214 = vld [vmem:[%s1 + $0x550] sm:$0xff]
  %v215 = vld [vmem:[%s1 + $0x558] sm:$0xff]
  %v216 = vld [vmem:[%s1 + $0x560] sm:$0xff]
  %v217 = vld [vmem:[%s1 + $0x568] sm:$0xff]
  %v218 = vld [vmem:[%s1 + $0x570] sm:$0xff]
  %v219 = vld [vmem:[%s1 + $0x578] sm:$0xff]
  %v220 = vld [vmem:[%s1 + $0x580] sm:$0xff]
  %v221 = vld [vmem:[%s1 + $0x588] sm:$0xff]
  %v222 = vld [vmem:[%s1 + $0x590] sm:$0xff]
  %v223 = vld [vmem:[%s1 + $0x598] sm:$0xff]
  %v224 = vld [vmem:[%s1 + $0x5a0] sm:$0xff]
  %v225 = vld [vmem:[%s1 + $0x5a8] sm:$0xff]
  %v226 = vld [vmem:[%s1 + $0x5b0] sm:$0xff]
  %v227 = vld [vmem:[%s1 + $0x5b8] sm:$0xff]
  %v228 = vld [vmem:[%s1 + $0x5c0] sm:$0xff]
  %v229 = vld [vmem:[%s1 + $0x5c8] sm:$0xff]
  %v230 = vld [vmem:[%s1 + $0x5d0] sm:$0xff]
  %v231 = vld [vmem:[%s1 + $0x5d8] sm:$0xff]
  %v232 = vld [vmem:[%s1 + $0x5e0] sm:$0xff]
  %v233 = vld [vmem:[%s1 + $0x5e8] sm:$0xff]
  %v234 = vld [vmem:[%s1 + $0x5f0] sm:$0xff]
  %v235 = vld [vmem:[%s1 + $0x5f8] sm:$0xff]
  %v236 = vld [vmem:[%s1 + $0x600] sm:$0xff]
  %v237 = vld [vmem:[%s1 + $0x608] sm:$0xff]
  %v238 = vld [vmem:[%s1 + $0x610] sm:$0xff]
  %v239 = vld [vmem:[%s1 + $0x618] sm:$0xff]
  %v240 = vld [vmem:[%s1 + $0x620] sm:$0xff]
  %v241 = vld [vmem:[%s1 + $0x628] sm:$0xff]
  %v242 = vld [vmem:[%s1 + $0x630] sm:$0xff]
  %v243 = vld [vmem:[%s1 + $0x638] sm:$0xff]
  %v276 = vunpack.c.l.b16 %v12
  %v277 = vunpack.c.h.b16 %v12
  %v278 = vunpack.c.l.b16 %v13
  %v279 = vunpack.c.h.b16 %v13
  %v280 = vunpack.c.l.b16 %v14
  %v281 = vunpack.c.h.b16 %v14
  %v282 = vunpack.c.l.b16 %v15
  %v283 = vunpack.c.l.b16 %v16
  %v284 = vunpack.c.h.b16 %v16
  %v285 = vunpack.c.l.b16 %v17
  %v286 = vunpack.c.h.b16 %v17
  %v287 = vunpack.c.l.b16 %v18
  %v288 = vunpack.c.h.b16 %v18
  %v289 = vunpack.c.l.b16 %v19
  %v290 = vunpack.c.l.b16 %v20
  %v291 = vunpack.c.h.b16 %v20
  %v292 = vunpack.c.l.b16 %v21
  %v293 = vunpack.c.h.b16 %v21
  %v294 = vunpack.c.l.b16 %v22
  %v295 = vunpack.c.h.b16 %v22
  %v296 = vunpack.c.l.b16 %v23
  %v297 = vunpack.c.l.b16 %v24
  %v298 = vunpack.c.h.b16 %v24
  %v299 = vunpack.c.l.b16 %v25
  %v300 = vunpack.c.h.b16 %v25
  %v301 = vunpack.c.l.b16 %v26
  %v302 = vunpack.c.h.b16 %v26
  %v303 = vunpack.c.l.b16 %v27
  %v304 = vunpack.c.l.b16 %v28
  %v305 = vunpack.c.h.b16 %v28
  %v306 = vunpack.c.l.b16 %v29
  %v307 = vunpack.c.h.b16 %v29
  %v308 = vunpack.c.l.b16 %v30
  %v309 = vunpack.c.h.b16 %v30
  %v310 = vunpack.c.l.b16 %v31
  %v311 = vunpack.c.l.b16 %v32
  %v312 = vunpack.c.h.b16 %v32
  %v313 = vunpack.c.l.b16 %v33
  %v314 = vunpack.c.h.b16 %v33
  %v315 = vunpack.c.l.b16 %v34
  %v316 = vunpack.c.h.b16 %v34
  %v317 = vunpack.c.l.b16 %v35
  %v318 = vunpack.c.l.b16 %v36
  %v319 = vunpack.c.h.b16 %v36
  %v320 = vunpack.c.l.b16 %v37
  %v321 = vunpack.c.h.b16 %v37
  %v322 = vunpack.c.l.b16 %v38
  %v323 = vunpack.c.h.b16 %v38
  %v324 = vunpack.c.l.b16 %v39
  %v325 = vunpack.c.l.b16 %v40
  %v326 = vunpack.c.h.b16 %v40
  %v327 = vunpack.c.l.b16 %v41
  %v328 = vunpack.c.h.b16 %v41
  %v329 = vunpack.c.l.b16 %v42
  %v330 = vunpack.c.h.b16 %v42
  %v331 = vunpack.c.l.b16 %v43
  %v332 = vpack.c.b16 %v283, %v276
  %v333 = vpack.c.b16 %v284, %v277
  %v334 = vpack.c.b16 %v285, %v278
  %v335 = vpack.c.b16 %v286, %v279
  %v336 = vpack.c.b16 %v287, %v280
  %v337 = vpack.c.b16 %v288, %v281
  %v338 = vpack.c.b16 %v289, %v282
  %v339 = vpack.c.b16 %v297, %v290
  %v340 = vpack.c.b16 %v298, %v291
  %v341 = vpack.c.b16 %v299, %v292
  %v342 = vpack.c.b16 %v300, %v293
  %v343 = vpack.c.b16 %v301, %v294
  %v344 = vpack.c.b16 %v302, %v295
  %v345 = vpack.c.b16 %v303, %v296
  %v346 = vpack.c.b16 %v311, %v304
  %v347 = vpack.c.b16 %v312, %v305
  %v348 = vpack.c.b16 %v313, %v306
  %v349 = vpack.c.b16 %v314, %v307
  %v350 = vpack.c.b16 %v315, %v308
  %v351 = vpack.c.b16 %v316, %v309
  %v352 = vpack.c.b16 %v317, %v310
  %v353 = vpack.c.b16 %v325, %v318
  %v354 = vpack.c.b16 %v326, %v319
  %v355 = vpack.c.b16 %v327, %v320
  %v356 = vpack.c.b16 %v328, %v321
  %v357 = vpack.c.b16 %v329, %v322
  %v358 = vpack.c.b16 %v330, %v323
  %v359 = vpack.c.b16 %v331, %v324
  %v584 = vunpack.c.l.b16 %v44
  %v585 = vunpack.c.h.b16 %v44
  %v586 = vunpack.c.l.b16 %v45
  %v587 = vunpack.c.h.b16 %v45
  %v588 = vunpack.c.l.b16 %v46
  %v589 = vunpack.c.h.b16 %v46
  %v590 = vunpack.c.l.b16 %v47
  %v591 = vunpack.c.h.b16 %v47
  %v592 = vunpack.c.l.b16 %v48
  %v593 = vunpack.c.h.b16 %v48
  %v594 = vunpack.c.l.b16 %v49
  %v595 = vunpack.c.h.b16 %v49
  %v596 = vunpack.c.l.b16 %v50
  %v597 = vunpack.c.h.b16 %v50
  %v598 = vunpack.c.l.b16 %v51
  %v599 = vunpack.c.h.b16 %v51
  %v600 = vunpack.c.l.b16 %v52
  %v601 = vunpack.c.h.b16 %v52
  %v602 = vunpack.c.l.b16 %v53
  %v603 = vunpack.c.h.b16 %v53
  %v604 = vunpack.c.l.b16 %v54
  %v605 = vunpack.c.h.b16 %v54
  %v606 = vunpack.c.l.b16 %v55
  %v607 = vunpack.c.h.b16 %v55
  %v608 = vunpack.c.l.b16 %v56
  %v609 = vunpack.c.h.b16 %v56
  %v610 = vunpack.c.l.b16 %v57
  %v611 = vunpack.c.h.b16 %v57
  %v612 = vunpack.c.l.b16 %v58
  %v613 = vunpack.c.h.b16 %v58
  %v614 = vunpack.c.l.b16 %v59
  %v615 = vunpack.c.h.b16 %v59
  %v616 = vunpack.c.l.b16 %v60
  %v617 = vunpack.c.h.b16 %v60
  %v618 = vunpack.c.l.b16 %v61
  %v619 = vunpack.c.h.b16 %v61
  %v620 = vunpack.c.l.b16 %v62
  %v621 = vunpack.c.h.b16 %v62
  %v622 = vunpack.c.l.b16 %v63
  %v623 = vunpack.c.h.b16 %v63
  %v624 = vunpack.c.l.b16 %v64
  %v625 = vunpack.c.h.b16 %v64
  %v626 = vunpack.c.l.b16 %v65
  %v627 = vunpack.c.h.b16 %v65
  %v628 = vunpack.c.l.b16 %v66
  %v629 = vunpack.c.h.b16 %v66
  %v630 = vunpack.c.l.b16 %v67
  %v631 = vunpack.c.h.b16 %v67
  %v632 = vunpack.c.l.b16 %v68
  %v633 = vunpack.c.h.b16 %v68
  %v634 = vunpack.c.l.b16 %v69
  %v635 = vunpack.c.h.b16 %v69
  %v636 = vunpack.c.l.b16 %v70
  %v637 = vunpack.c.h.b16 %v70
  %v638 = vunpack.c.l.b16 %v71
  %v639 = vunpack.c.h.b16 %v71
  %v640 = vunpack.c.l.b16 %v72
  %v641 = vunpack.c.h.b16 %v72
  %v642 = vunpack.c.l.b16 %v73
  %v643 = vunpack.c.h.b16 %v73
  %v644 = vunpack.c.l.b16 %v74
  %v645 = vunpack.c.h.b16 %v74
  %v646 = vunpack.c.l.b16 %v75
  %v647 = vunpack.c.h.b16 %v75
  %v648 = vunpack.c.l.b16 %v76
  %v649 = vunpack.c.h.b16 %v76
  %v650 = vunpack.c.l.b16 %v77
  %v651 = vunpack.c.h.b16 %v77
  %v652 = vunpack.c.l.b16 %v78
  %v653 = vunpack.c.h.b16 %v78
  %v654 = vunpack.c.l.b16 %v79
  %v655 = vunpack.c.h.b16 %v79
  %v656 = vunpack.c.l.b16 %v80
  %v657 = vunpack.c.h.b16 %v80
  %v658 = vunpack.c.l.b16 %v81
  %v659 = vunpack.c.h.b16 %v81
  %v660 = vunpack.c.l.b16 %v82
  %v661 = vunpack.c.h.b16 %v82
  %v662 = vunpack.c.l.b16 %v83
  %v663 = vunpack.c.h.b16 %v83
  %v664 = vunpack.c.l.b16 %v84
  %v665 = vunpack.c.h.b16 %v84
  %v666 = vunpack.c.l.b16 %v85
  %v667 = vunpack.c.h.b16 %v85
  %v668 = vunpack.c.l.b16 %v86
  %v669 = vunpack.c.h.b16 %v86
  %v670 = vunpack.c.l.b16 %v87
  %v671 = vunpack.c.h.b16 %v87
  %v672 = vunpack.c.l.b16 %v88
  %v673 = vunpack.c.h.b16 %v88
  %v674 = vunpack.c.l.b16 %v89
  %v675 = vunpack.c.h.b16 %v89
  %v676 = vunpack.c.l.b16 %v90
  %v677 = vunpack.c.h.b16 %v90
  %v678 = vunpack.c.l.b16 %v91
  %v679 = vunpack.c.h.b16 %v91
  %v680 = vunpack.c.l.b16 %v92
  %v681 = vunpack.c.h.b16 %v92
  %v682 = vunpack.c.l.b16 %v93
  %v683 = vunpack.c.h.b16 %v93
  %v684 = vunpack.c.l.b16 %v94
  %v685 = vunpack.c.h.b16 %v94
  %v686 = vunpack.c.l.b16 %v95
  %v687 = vunpack.c.h.b16 %v95
  %v688 = vunpack.c.l.b16 %v96
  %v689 = vunpack.c.h.b16 %v96
  %v690 = vunpack.c.l.b16 %v97
  %v691 = vunpack.c.h.b16 %v97
  %v692 = vunpack.c.l.b16 %v98
  %v693 = vunpack.c.h.b16 %v98
  %v694 = vunpack.c.l.b16 %v99
  %v695 = vunpack.c.h.b16 %v99
  %v696 = vunpack.c.l.b16 %v100
  %v697 = vunpack.c.h.b16 %v100
  %v698 = vunpack.c.l.b16 %v101
  %v699 = vunpack.c.h.b16 %v101
  %v700 = vunpack.c.l.b16 %v102
  %v701 = vunpack.c.h.b16 %v102
  %v702 = vunpack.c.l.b16 %v103
  %v703 = vunpack.c.h.b16 %v103
  %v704 = vunpack.c.l.b16 %v104
  %v705 = vunpack.c.h.b16 %v104
  %v706 = vunpack.c.l.b16 %v105
  %v707 = vunpack.c.h.b16 %v105
  %v708 = vunpack.c.l.b16 %v106
  %v709 = vunpack.c.h.b16 %v106
  %v710 = vunpack.c.l.b16 %v107
  %v711 = vunpack.c.h.b16 %v107
  %v712 = vunpack.c.l.b16 %v108
  %v713 = vunpack.c.h.b16 %v108
  %v714 = vunpack.c.l.b16 %v109
  %v715 = vunpack.c.h.b16 %v109
  %v716 = vunpack.c.l.b16 %v110
  %v717 = vunpack.c.h.b16 %v110
  %v718 = vunpack.c.l.b16 %v111
  %v719 = vunpack.c.h.b16 %v111
  %v720 = vunpack.c.l.b16 %v112
  %v721 = vunpack.c.h.b16 %v112
  %v722 = vunpack.c.l.b16 %v113
  %v723 = vunpack.c.h.b16 %v113
  %v724 = vunpack.c.l.b16 %v114
  %v725 = vunpack.c.h.b16 %v114
  %v726 = vunpack.c.l.b16 %v115
  %v727 = vunpack.c.h.b16 %v115
  %v728 = vunpack.c.l.b16 %v116
  %v729 = vunpack.c.h.b16 %v116
  %v730 = vunpack.c.l.b16 %v117
  %v731 = vunpack.c.h.b16 %v117
  %v732 = vunpack.c.l.b16 %v118
  %v733 = vunpack.c.h.b16 %v118
  %v734 = vunpack.c.l.b16 %v119
  %v735 = vunpack.c.h.b16 %v119
  %v736 = vunpack.c.l.b16 %v120
  %v737 = vunpack.c.h.b16 %v120
  %v738 = vunpack.c.l.b16 %v121
  %v739 = vunpack.c.h.b16 %v121
  %v740 = vunpack.c.l.b16 %v122
  %v741 = vunpack.c.h.b16 %v122
  %v742 = vunpack.c.l.b16 %v123
  %v743 = vunpack.c.h.b16 %v123
  %v744 = vunpack.c.l.b16 %v124
  %v745 = vunpack.c.h.b16 %v124
  %v746 = vunpack.c.l.b16 %v125
  %v747 = vunpack.c.h.b16 %v125
  %v748 = vunpack.c.l.b16 %v126
  %v749 = vunpack.c.h.b16 %v126
  %v750 = vunpack.c.l.b16 %v127
  %v751 = vunpack.c.h.b16 %v127
  %v752 = vunpack.c.l.b16 %v128
  %v753 = vunpack.c.h.b16 %v128
  %v754 = vunpack.c.l.b16 %v129
  %v755 = vunpack.c.h.b16 %v129
  %v756 = vunpack.c.l.b16 %v130
  %v757 = vunpack.c.h.b16 %v130
  %v758 = vunpack.c.l.b16 %v131
  %v759 = vunpack.c.h.b16 %v131
  %v760 = vunpack.c.l.b16 %v132
  %v761 = vunpack.c.h.b16 %v132
  %v762 = vunpack.c.l.b16 %v133
  %v763 = vunpack.c.h.b16 %v133
  %v764 = vunpack.c.l.b16 %v134
  %v765 = vunpack.c.h.b16 %v134
  %v766 = vunpack.c.l.b16 %v135
  %v767 = vunpack.c.h.b16 %v135
  %v768 = vunpack.c.l.b16 %v136
  %v769 = vunpack.c.h.b16 %v136
  %v770 = vunpack.c.l.b16 %v137
  %v771 = vunpack.c.h.b16 %v137
  %v772 = vunpack.c.l.b16 %v138
  %v773 = vunpack.c.h.b16 %v138
  %v774 = vunpack.c.l.b16 %v139
  %v775 = vunpack.c.h.b16 %v139
  %v776 = vunpack.c.l.b16 %v140
  %v777 = vunpack.c.h.b16 %v140
  %v778 = vunpack.c.l.b16 %v141
  %v779 = vunpack.c.h.b16 %v141
  %v780 = vunpack.c.l.b16 %v142
  %v781 = vunpack.c.h.b16 %v142
  %v782 = vunpack.c.l.b16 %v143
  %v783 = vunpack.c.h.b16 %v143
  %v784 = vunpack.c.l.b16 %v144
  %v785 = vunpack.c.h.b16 %v144
  %v786 = vunpack.c.l.b16 %v145
  %v787 = vunpack.c.h.b16 %v145
  %v788 = vunpack.c.l.b16 %v146
  %v789 = vunpack.c.h.b16 %v146
  %v790 = vunpack.c.l.b16 %v147
  %v791 = vunpack.c.h.b16 %v147
  %v792 = vunpack.c.l.b16 %v148
  %v793 = vunpack.c.h.b16 %v148
  %v794 = vunpack.c.l.b16 %v149
  %v795 = vunpack.c.h.b16 %v149
  %v796 = vunpack.c.l.b16 %v150
  %v797 = vunpack.c.h.b16 %v150
  %v798 = vunpack.c.l.b16 %v151
  %v799 = vunpack.c.h.b16 %v151
  %v800 = vunpack.c.l.b16 %v152
  %v801 = vunpack.c.h.b16 %v152
  %v802 = vunpack.c.l.b16 %v153
  %v803 = vunpack.c.h.b16 %v153
  %v804 = vunpack.c.l.b16 %v154
  %v805 = vunpack.c.h.b16 %v154
  %v806 = vunpack.c.l.b16 %v155
  %v807 = vunpack.c.h.b16 %v155
  %v808 = vunpack.c.l.b16 %v156
  %v809 = vunpack.c.h.b16 %v156
  %v810 = vunpack.c.l.b16 %v157
  %v811 = vunpack.c.h.b16 %v157
  %v812 = vunpack.c.l.b16 %v158
  %v813 = vunpack.c.h.b16 %v158
  %v814 = vunpack.c.l.b16 %v159
  %v815 = vunpack.c.h.b16 %v159
  %v816 = vunpack.c.l.b16 %v160
  %v817 = vunpack.c.h.b16 %v160
  %v818 = vunpack.c.l.b16 %v161
  %v819 = vunpack.c.h.b16 %v161
  %v820 = vunpack.c.l.b16 %v162
  %v821 = vunpack.c.h.b16 %v162
  %v822 = vunpack.c.l.b16 %v163
  %v823 = vunpack.c.h.b16 %v163
  %v824 = vunpack.c.l.b16 %v164
  %v825 = vunpack.c.h.b16 %v164
  %v826 = vunpack.c.l.b16 %v165
  %v827 = vunpack.c.h.b16 %v165
  %v828 = vunpack.c.l.b16 %v166
  %v829 = vunpack.c.h.b16 %v166
  %v830 = vunpack.c.l.b16 %v167
  %v831 = vunpack.c.h.b16 %v167
  %v832 = vunpack.c.l.b16 %v168
  %v833 = vunpack.c.h.b16 %v168
  %v834 = vunpack.c.l.b16 %v169
  %v835 = vunpack.c.h.b16 %v169
  %v836 = vunpack.c.l.b16 %v170
  %v837 = vunpack.c.h.b16 %v170
  %v838 = vunpack.c.l.b16 %v171
  %v839 = vunpack.c.h.b16 %v171
  %v840 = vunpack.c.l.b16 %v172
  %v841 = vunpack.c.h.b16 %v172
  %v842 = vunpack.c.l.b16 %v173
  %v843 = vunpack.c.h.b16 %v173
  %v844 = vunpack.c.l.b16 %v174
  %v845 = vunpack.c.h.b16 %v174
  %v846 = vunpack.c.l.b16 %v175
  %v847 = vunpack.c.h.b16 %v175
  %v848 = vunpack.c.l.b16 %v176
  %v849 = vunpack.c.h.b16 %v176
  %v850 = vunpack.c.l.b16 %v177
  %v851 = vunpack.c.h.b16 %v177
  %v852 = vunpack.c.l.b16 %v178
  %v853 = vunpack.c.h.b16 %v178
  %v854 = vunpack.c.l.b16 %v179
  %v855 = vunpack.c.h.b16 %v179
  %v856 = vunpack.c.l.b16 %v180
  %v857 = vunpack.c.h.b16 %v180
  %v858 = vunpack.c.l.b16 %v181
  %v859 = vunpack.c.h.b16 %v181
  %v860 = vunpack.c.l.b16 %v182
  %v861 = vunpack.c.h.b16 %v182
  %v862 = vunpack.c.l.b16 %v183
  %v863 = vunpack.c.h.b16 %v183
  %v864 = vunpack.c.l.b16 %v184
  %v865 = vunpack.c.h.b16 %v184
  %v866 = vunpack.c.l.b16 %v185
  %v867 = vunpack.c.h.b16 %v185
  %v868 = vunpack.c.l.b16 %v186
  %v869 = vunpack.c.h.b16 %v186
  %v870 = vunpack.c.l.b16 %v187
  %v871 = vunpack.c.h.b16 %v187
  %v872 = vunpack.c.l.b16 %v188
  %v873 = vunpack.c.h.b16 %v188
  %v874 = vunpack.c.l.b16 %v189
  %v875 = vunpack.c.h.b16 %v189
  %v876 = vunpack.c.l.b16 %v190
  %v877 = vunpack.c.h.b16 %v190
  %v878 = vunpack.c.l.b16 %v191
  %v879 = vunpack.c.h.b16 %v191
  %v880 = vunpack.c.l.b16 %v192
  %v881 = vunpack.c.h.b16 %v192
  %v882 = vunpack.c.l.b16 %v193
  %v883 = vunpack.c.h.b16 %v193
  %v884 = vunpack.c.l.b16 %v194
  %v885 = vunpack.c.h.b16 %v194
  %v886 = vunpack.c.l.b16 %v195
  %v887 = vunpack.c.h.b16 %v195
  %v888 = vunpack.c.l.b16 %v196
  %v889 = vunpack.c.h.b16 %v196
  %v890 = vunpack.c.l.b16 %v197
  %v891 = vunpack.c.h.b16 %v197
  %v892 = vunpack.c.l.b16 %v198
  %v893 = vunpack.c.h.b16 %v198
  %v894 = vunpack.c.l.b16 %v199
  %v895 = vunpack.c.h.b16 %v199
  %v896 = vunpack.c.l.b16 %v200
  %v897 = vunpack.c.h.b16 %v200
  %v898 = vunpack.c.l.b16 %v201
  %v899 = vunpack.c.h.b16 %v201
  %v900 = vunpack.c.l.b16 %v202
  %v901 = vunpack.c.h.b16 %v202
  %v902 = vunpack.c.l.b16 %v203
  %v903 = vunpack.c.h.b16 %v203
  %v904 = vunpack.c.l.b16 %v204
  %v905 = vunpack.c.h.b16 %v204
  %v906 = vunpack.c.l.b16 %v205
  %v907 = vunpack.c.h.b16 %v205
  %v908 = vunpack.c.l.b16 %v206
  %v909 = vunpack.c.h.b16 %v206
  %v910 = vunpack.c.l.b16 %v207
  %v911 = vunpack.c.h.b16 %v207
  %v912 = vunpack.c.l.b16 %v208
  %v913 = vunpack.c.h.b16 %v208
  %v914 = vunpack.c.l.b16 %v209
  %v915 = vunpack.c.h.b16 %v209
  %v916 = vunpack.c.l.b16 %v210
  %v917 = vunpack.c.h.b16 %v210
  %v918 = vunpack.c.l.b16 %v211
  %v919 = vunpack.c.h.b16 %v211
  %v920 = vunpack.c.l.b16 %v212
  %v921 = vunpack.c.h.b16 %v212
  %v922 = vunpack.c.l.b16 %v213
  %v923 = vunpack.c.h.b16 %v213
  %v924 = vunpack.c.l.b16 %v214
  %v925 = vunpack.c.h.b16 %v214
  %v926 = vunpack.c.l.b16 %v215
  %v927 = vunpack.c.h.b16 %v215
  %v928 = vunpack.c.l.b16 %v216
  %v929 = vunpack.c.h.b16 %v216
  %v930 = vunpack.c.l.b16 %v217
  %v931 = vunpack.c.h.b16 %v217
  %v932 = vunpack.c.l.b16 %v218
  %v933 = vunpack.c.h.b16 %v218
  %v934 = vunpack.c.l.b16 %v219
  %v935 = vunpack.c.h.b16 %v219
  %v936 = vunpack.c.l.b16 %v220
  %v937 = vunpack.c.h.b16 %v220
  %v938 = vunpack.c.l.b16 %v221
  %v939 = vunpack.c.h.b16 %v221
  %v940 = vunpack.c.l.b16 %v222
  %v941 = vunpack.c.h.b16 %v222
  %v942 = vunpack.c.l.b16 %v223
  %v943 = vunpack.c.h.b16 %v223
  %v944 = vunpack.c.l.b16 %v224
  %v945 = vunpack.c.h.b16 %v224
  %v946 = vunpack.c.l.b16 %v225
  %v947 = vunpack.c.h.b16 %v225
  %v948 = vunpack.c.l.b16 %v226
  %v949 = vunpack.c.h.b16 %v226
  %v950 = vunpack.c.l.b16 %v227
  %v951 = vunpack.c.h.b16 %v227
  %v952 = vunpack.c.l.b16 %v228
  %v953 = vunpack.c.h.b16 %v228
  %v954 = vunpack.c.l.b16 %v229
  %v955 = vunpack.c.h.b16 %v229
  %v956 = vunpack.c.l.b16 %v230
  %v957 = vunpack.c.h.b16 %v230
  %v958 = vunpack.c.l.b16 %v231
  %v959 = vunpack.c.h.b16 %v231
  %v960 = vunpack.c.l.b16 %v232
  %v961 = vunpack.c.h.b16 %v232
  %v962 = vunpack.c.l.b16 %v233
  %v963 = vunpack.c.h.b16 %v233
  %v964 = vunpack.c.l.b16 %v234
  %v965 = vunpack.c.h.b16 %v234
  %v966 = vunpack.c.l.b16 %v235
  %v967 = vunpack.c.h.b16 %v235
  %v968 = vunpack.c.l.b16 %v236
  %v969 = vunpack.c.h.b16 %v236
  %v970 = vunpack.c.l.b16 %v237
  %v971 = vunpack.c.h.b16 %v237
  %v972 = vunpack.c.l.b16 %v238
  %v973 = vunpack.c.h.b16 %v238
  %v974 = vunpack.c.l.b16 %v239
  %v975 = vunpack.c.h.b16 %v239
  %v976 = vunpack.c.l.b16 %v240
  %v977 = vunpack.c.h.b16 %v240
  %v978 = vunpack.c.l.b16 %v241
  %v979 = vunpack.c.h.b16 %v241
  %v980 = vunpack.c.l.b16 %v242
  %v981 = vunpack.c.h.b16 %v242
  %v982 = vunpack.c.l.b16 %v243
  %v983 = vunpack.c.h.b16 %v243
  %v984 = vpack.c.b16 %v588, %v584
  %v985 = vpack.c.b16 %v589, %v585
  %v986 = vpack.c.b16 %v590, %v586
  %v987 = vpack.c.b16 %v591, %v587
  %v988 = vpack.c.b16 %v596, %v592
  %v989 = vpack.c.b16 %v597, %v593
  %v990 = vpack.c.b16 %v598, %v594
  %v991 = vpack.c.b16 %v599, %v595
  %v992 = vpack.c.b16 %v604, %v600
  %v993 = vpack.c.b16 %v605, %v601
  %v994 = vpack.c.b16 %v606, %v602
  %v995 = vpack.c.b16 %v607, %v603
  %v996 = vpack.c.b16 %v612, %v608
  %v997 = vpack.c.b16 %v613, %v609
  %v998 = vpack.c.b16 %v614, %v610
  %v999 = vpack.c.b16 %v615, %v611
  %v1000 = vpack.c.b16 %v620, %v616
  %v1001 = vpack.c.b16 %v621, %v617
  %v1002 = vpack.c.b16 %v622, %v618
  %v1003 = vpack.c.b16 %v623, %v619
  %v1004 = vpack.c.b16 %v628, %v624
  %v1005 = vpack.c.b16 %v629, %v625
  %v1006 = vpack.c.b16 %v630, %v626
  %v1007 = vpack.c.b16 %v631, %v627
  %v1008 = vpack.c.b16 %v636, %v632
  %v1009 = vpack.c.b16 %v637, %v633
  %v1010 = vpack.c.b16 %v638, %v634
  %v1011 = vpack.c.b16 %v639, %v635
  %v1012 = vpack.c.b16 %v644, %v640
  %v1013 = vpack.c.b16 %v645, %v641
  %v1014 = vpack.c.b16 %v646, %v642
  %v1015 = vpack.c.b16 %v647, %v643
  %v1016 = vpack.c.b16 %v652, %v648
  %v1017 = vpack.c.b16 %v653, %v649
  %v1018 = vpack.c.b16 %v654, %v650
  %v1019 = vpack.c.b16 %v655, %v651
  %v1020 = vpack.c.b16 %v660, %v656
  %v1021 = vpack.c.b16 %v661, %v657
  %v1022 = vpack.c.b16 %v662, %v658
  %v1023 = vpack.c.b16 %v663, %v659
  %v1024 = vpack.c.b16 %v668, %v664
  %v1025 = vpack.c.b16 %v669, %v665
  %v1026 = vpack.c.b16 %v670, %v666
  %v1027 = vpack.c.b16 %v671, %v667
  %v1028 = vpack.c.b16 %v676, %v672
  %v1029 = vpack.c.b16 %v677, %v673
  %v1030 = vpack.c.b16 %v678, %v674
  %v1031 = vpack.c.b16 %v679, %v675
  %v1032 = vpack.c.b16 %v684, %v680
  %v1033 = vpack.c.b16 %v685, %v681
  %v1034 = vpack.c.b16 %v686, %v682
  %v1035 = vpack.c.b16 %v687, %v683
  %v1036 = vpack.c.b16 %v692, %v688
  %v1037 = vpack.c.b16 %v693, %v689
  %v1038 = vpack.c.b16 %v694, %v690
  %v1039 = vpack.c.b16 %v695, %v691
  %v1040 = vpack.c.b16 %v700, %v696
  %v1041 = vpack.c.b16 %v701, %v697
  %v1042 = vpack.c.b16 %v702, %v698
  %v1043 = vpack.c.b16 %v703, %v699
  %v1044 = vpack.c.b16 %v708, %v704
  %v1045 = vpack.c.b16 %v709, %v705
  %v1046 = vpack.c.b16 %v710, %v706
  %v1047 = vpack.c.b16 %v711, %v707
  %v1048 = vpack.c.b16 %v716, %v712
  %v1049 = vpack.c.b16 %v717, %v713
  %v1050 = vpack.c.b16 %v718, %v714
  %v1051 = vpack.c.b16 %v719, %v715
  %v1052 = vpack.c.b16 %v724, %v720
  %v1053 = vpack.c.b16 %v725, %v721
  %v1054 = vpack.c.b16 %v726, %v722
  %v1055 = vpack.c.b16 %v727, %v723
  %v1056 = vpack.c.b16 %v732, %v728
  %v1057 = vpack.c.b16 %v733, %v729
  %v1058 = vpack.c.b16 %v734, %v730
  %v1059 = vpack.c.b16 %v735, %v731
  %v1060 = vpack.c.b16 %v740, %v736
  %v1061 = vpack.c.b16 %v741, %v737
  %v1062 = vpack.c.b16 %v742, %v738
  %v1063 = vpack.c.b16 %v743, %v739
  %v1064 = vpack.c.b16 %v748, %v744
  %v1065 = vpack.c.b16 %v749, %v745
  %v1066 = vpack.c.b16 %v750, %v746
  %v1067 = vpack.c.b16 %v751, %v747
  %v1068 = vpack.c.b16 %v756, %v752
  %v1069 = vpack.c.b16 %v757, %v753
  %v1070 = vpack.c.b16 %v758, %v754
  %v1071 = vpack.c.b16 %v759, %v755
  %v1072 = vpack.c.b16 %v764, %v760
  %v1073 = vpack.c.b16 %v765, %v761
  %v1074 = vpack.c.b16 %v766, %v762
  %v1075 = vpack.c.b16 %v767, %v763
  %v1076 = vpack.c.b16 %v772, %v768
  %v1077 = vpack.c.b16 %v773, %v769
  %v1078 = vpack.c.b16 %v774, %v770
  %v1079 = vpack.c.b16 %v775, %v771
  %v1080 = vpack.c.b16 %v780, %v776
  %v1081 = vpack.c.b16 %v781, %v777
  %v1082 = vpack.c.b16 %v782, %v778
  %v1083 = vpack.c.b16 %v783, %v779
  %v1084 = vpack.c.b16 %v788, %v784
  %v1085 = vpack.c.b16 %v789, %v785
  %v1086 = vpack.c.b16 %v790, %v786
  %v1087 = vpack.c.b16 %v791, %v787
  %v1088 = vpack.c.b16 %v796, %v792
  %v1089 = vpack.c.b16 %v797, %v793
  %v1090 = vpack.c.b16 %v798, %v794
  %v1091 = vpack.c.b16 %v799, %v795
  %v1092 = vpack.c.b16 %v804, %v800
  %v1093 = vpack.c.b16 %v805, %v801
  %v1094 = vpack.c.b16 %v806, %v802
  %v1095 = vpack.c.b16 %v807, %v803
  %v1096 = vpack.c.b16 %v812, %v808
  %v1097 = vpack.c.b16 %v813, %v809
  %v1098 = vpack.c.b16 %v814, %v810
  %v1099 = vpack.c.b16 %v815, %v811
  %v1100 = vpack.c.b16 %v820, %v816
  %v1101 = vpack.c.b16 %v821, %v817
  %v1102 = vpack.c.b16 %v822, %v818
  %v1103 = vpack.c.b16 %v823, %v819
  %v1104 = vpack.c.b16 %v828, %v824
  %v1105 = vpack.c.b16 %v829, %v825
  %v1106 = vpack.c.b16 %v830, %v826
  %v1107 = vpack.c.b16 %v831, %v827
  %v1108 = vpack.c.b16 %v836, %v832
  %v1109 = vpack.c.b16 %v837, %v833
  %v1110 = vpack.c.b16 %v838, %v834
  %v1111 = vpack.c.b16 %v839, %v835
  %v1112 = vpack.c.b16 %v844, %v840
  %v1113 = vpack.c.b16 %v845, %v841
  %v1114 = vpack.c.b16 %v846, %v842
  %v1115 = vpack.c.b16 %v847, %v843
  %v1116 = vpack.c.b16 %v852, %v848
  %v1117 = vpack.c.b16 %v853, %v849
  %v1118 = vpack.c.b16 %v854, %v850
  %v1119 = vpack.c.b16 %v855, %v851
  %v1120 = vpack.c.b16 %v860, %v856
  %v1121 = vpack.c.b16 %v861, %v857
  %v1122 = vpack.c.b16 %v862, %v858
  %v1123 = vpack.c.b16 %v863, %v859
  %v1124 = vpack.c.b16 %v868, %v864
  %v1125 = vpack.c.b16 %v869, %v865
  %v1126 = vpack.c.b16 %v870, %v866
  %v1127 = vpack.c.b16 %v871, %v867
  %v1128 = vpack.c.b16 %v876, %v872
  %v1129 = vpack.c.b16 %v877, %v873
  %v1130 = vpack.c.b16 %v878, %v874
  %v1131 = vpack.c.b16 %v879, %v875
  %v1132 = vpack.c.b16 %v884, %v880
  %v1133 = vpack.c.b16 %v885, %v881
  %v1134 = vpack.c.b16 %v886, %v882
  %v1135 = vpack.c.b16 %v887, %v883
  %v1136 = vpack.c.b16 %v892, %v888
  %v1137 = vpack.c.b16 %v893, %v889
  %v1138 = vpack.c.b16 %v894, %v890
  %v1139 = vpack.c.b16 %v895, %v891
  %v1140 = vpack.c.b16 %v900, %v896
  %v1141 = vpack.c.b16 %v901, %v897
  %v1142 = vpack.c.b16 %v902, %v898
  %v1143 = vpack.c.b16 %v903, %v899
  %v1144 = vpack.c.b16 %v908, %v904
  %v1145 = vpack.c.b16 %v909, %v905
  %v1146 = vpack.c.b16 %v910, %v906
  %v1147 = vpack.c.b16 %v911, %v907
  %v1148 = vpack.c.b16 %v916, %v912
  %v1149 = vpack.c.b16 %v917, %v913
  %v1150 = vpack.c.b16 %v918, %v914
  %v1151 = vpack.c.b16 %v919, %v915
  %v1152 = vpack.c.b16 %v924, %v920
  %v1153 = vpack.c.b16 %v925, %v921
  %v1154 = vpack.c.b16 %v926, %v922
  %v1155 = vpack.c.b16 %v927, %v923
  %v1156 = vpack.c.b16 %v932, %v928
  %v1157 = vpack.c.b16 %v933, %v929
  %v1158 = vpack.c.b16 %v934, %v930
  %v1159 = vpack.c.b16 %v935, %v931
  %v1160 = vpack.c.b16 %v940, %v936
  %v1161 = vpack.c.b16 %v941, %v937
  %v1162 = vpack.c.b16 %v942, %v938
  %v1163 = vpack.c.b16 %v943, %v939
  %v1164 = vpack.c.b16 %v948, %v944
  %v1165 = vpack.c.b16 %v949, %v945
  %v1166 = vpack.c.b16 %v950, %v946
  %v1167 = vpack.c.b16 %v951, %v947
  %v1168 = vpack.c.b16 %v956, %v952
  %v1169 = vpack.c.b16 %v957, %v953
  %v1170 = vpack.c.b16 %v958, %v954
  %v1171 = vpack.c.b16 %v959, %v955
  %v1172 = vpack.c.b16 %v964, %v960
  %v1173 = vpack.c.b16 %v965, %v961
  %v1174 = vpack.c.b16 %v966, %v962
  %v1175 = vpack.c.b16 %v967, %v963
  %v1176 = vpack.c.b16 %v972, %v968
  %v1177 = vpack.c.b16 %v973, %v969
  %v1178 = vpack.c.b16 %v974, %v970
  %v1179 = vpack.c.b16 %v975, %v971
  %v1180 = vpack.c.b16 %v980, %v976
  %v1181 = vpack.c.b16 %v981, %v977
  %v1182 = vpack.c.b16 %v982, %v978
  %v1183 = vpack.c.b16 %v983, %v979
  %vm1384 = vcmask 261120
  %v1386 = vsel %vm1384, %v338, 0
  %v1389 = vsel %vm1384, %v345, 0
  %v1392 = vsel %vm1384, %v352, 0
  %v1395 = vsel %vm1384, %v359, 0
  %1397 = vmatprep.subr.bf16.mxu0 %v1013
  %1398 = vmatpush1.bf16.msra.mxu0 %v1012
  %1399 = vmatprep.subr.bf16.mxu0 %v1009
  %1400 = vmatpush1.bf16.msra.mxu0 %v1008
  %1401 = vmatprep.subr.bf16.mxu0 %v1005
  %1402 = vmatpush1.bf16.msra.mxu0 %v1004
  %1403 = vmatprep.subr.bf16.mxu0 %v1001
  %1404 = vmatpush1.bf16.msra.mxu0 %v1000
  %1405 = vmatprep.subr.bf16.mxu0 %v997
  %1406 = vmatpush1.bf16.msra.mxu0 %v996
  %1407 = vmatprep.subr.bf16.mxu0 %v993
  %1408 = vmatpush1.bf16.msra.mxu0 %v992
  %1409 = vmatprep.subr.bf16.mxu0 %v989
  %1410 = vmatpush1.bf16.msra.mxu0 %v988
  %1411 = vmatprep.subr.bf16.mxu0 %v985
  %1412 = vmatpush1.bf16.msra.mxu0 %v984
  %1413 = vmatprep.subr.bf16.mxu0 %v1045
  %1414 = vmatpush2.bf16.msra.mxu0 %v1044
  %1415 = vmatprep.subr.bf16.mxu0 %v1041
  %1416 = vmatpush2.bf16.msra.mxu0 %v1040
  %1417 = vmatprep.subr.bf16.mxu0 %v1037
  %1418 = vmatpush2.bf16.msra.mxu0 %v1036
  %1419 = vmatprep.subr.bf16.mxu0 %v1033
  %1420 = vmatpush2.bf16.msra.mxu0 %v1032
  %1421 = vmatprep.subr.bf16.mxu0 %v1029
  %1422 = vmatpush2.bf16.msra.mxu0 %v1028
  %1423 = vmatprep.subr.bf16.mxu0 %v1025
  %1424 = vmatpush2.bf16.msra.mxu0 %v1024
  %1425 = vmatprep.subr.bf16.mxu0 %v1021
  %1426 = vmatpush2.bf16.msra.mxu0 %v1020
  %1427 = vmatprep.subr.bf16.mxu0 %v1017
  %1428 = vmatpush2.bf16.msra.mxu0 %v1016
  %1429 = vmatprep.mubr.bf16.mxu0 %v333
  %1430 = vmatmul.mubr.bf16.gmra.mxu0 %v332
  %v1431 = vpop.f32.mrf.mxu0
  %v1432 = vadd.f32 0.0, %v1431
  %v1433 = vpop.f32.mrf.mxu0
  %v1434 = vadd.f32 0.0, %v1433
  %v1435 = vpop.f32.mrf.mxu0
  %v1436 = vadd.f32 0.0, %v1435
  %v1437 = vpop.f32.mrf.mxu0
  %v1438 = vadd.f32 0.0, %v1437
  %1439 = vmatprep.mubr.bf16.mxu0 %v340
  %1440 = vmatmul.mubr.bf16.gmra.mxu0 %v339
  %v1441 = vpop.f32.mrf.mxu0
  %v1442 = vadd.f32 0.0, %v1441
  %v1443 = vpop.f32.mrf.mxu0
  %v1444 = vadd.f32 0.0, %v1443
  %v1445 = vpop.f32.mrf.mxu0
  %v1446 = vadd.f32 0.0, %v1445
  %v1447 = vpop.f32.mrf.mxu0
  %v1448 = vadd.f32 0.0, %v1447
  %1449 = vmatprep.mubr.bf16.mxu0 %v347
  %1450 = vmatmul.mubr.bf16.gmra.mxu0 %v346
  %v1451 = vpop.f32.mrf.mxu0
  %v1452 = vadd.f32 0.0, %v1451
  %v1453 = vpop.f32.mrf.mxu0
  %v1454 = vadd.f32 0.0, %v1453
  %v1455 = vpop.f32.mrf.mxu0
  %v1456 = vadd.f32 0.0, %v1455
  %v1457 = vpop.f32.mrf.mxu0
  %v1458 = vadd.f32 0.0, %v1457
  %1459 = vmatprep.mubr.bf16.mxu0 %v354
  %1460 = vmatmul.mubr.bf16.gmra.mxu0 %v353
  %v1461 = vpop.f32.mrf.mxu0
  %v1462 = vadd.f32 0.0, %v1461
  %v1463 = vpop.f32.mrf.mxu0
  %v1464 = vadd.f32 0.0, %v1463
  %v1465 = vpop.f32.mrf.mxu0
  %v1466 = vadd.f32 0.0, %v1465
  %v1467 = vpop.f32.mrf.mxu0
  %v1468 = vadd.f32 0.0, %v1467
  %1469 = vdwg.mxu0
  %1470 = vmatprep.subr.bf16.mxu0 %v1077
  %1471 = vmatpush1.bf16.msra.mxu0 %v1076
  %1472 = vmatprep.subr.bf16.mxu0 %v1073
  %1473 = vmatpush1.bf16.msra.mxu0 %v1072
  %1474 = vmatprep.subr.bf16.mxu0 %v1069
  %1475 = vmatpush1.bf16.msra.mxu0 %v1068
  %1476 = vmatprep.subr.bf16.mxu0 %v1065
  %1477 = vmatpush1.bf16.msra.mxu0 %v1064
  %1478 = vmatprep.subr.bf16.mxu0 %v1061
  %1479 = vmatpush1.bf16.msra.mxu0 %v1060
  %1480 = vmatprep.subr.bf16.mxu0 %v1057
  %1481 = vmatpush1.bf16.msra.mxu0 %v1056
  %1482 = vmatprep.subr.bf16.mxu0 %v1053
  %1483 = vmatpush1.bf16.msra.mxu0 %v1052
  %1484 = vmatprep.subr.bf16.mxu0 %v1049
  %1485 = vmatpush1.bf16.msra.mxu0 %v1048
  %1486 = vmatprep.subr.bf16.mxu0 %v1109
  %1487 = vmatpush2.bf16.msra.mxu0 %v1108
  %1488 = vmatprep.subr.bf16.mxu0 %v1105
  %1489 = vmatpush2.bf16.msra.mxu0 %v1104
  %1490 = vmatprep.subr.bf16.mxu0 %v1101
  %1491 = vmatpush2.bf16.msra.mxu0 %v1100
  %1492 = vmatprep.subr.bf16.mxu0 %v1097
  %1493 = vmatpush2.bf16.msra.mxu0 %v1096
  %1494 = vmatprep.subr.bf16.mxu0 %v1093
  %1495 = vmatpush2.bf16.msra.mxu0 %v1092
  %1496 = vmatprep.subr.bf16.mxu0 %v1089
  %1497 = vmatpush2.bf16.msra.mxu0 %v1088
  %1498 = vmatprep.subr.bf16.mxu0 %v1085
  %1499 = vmatpush2.bf16.msra.mxu0 %v1084
  %1500 = vmatprep.subr.bf16.mxu0 %v1081
  %1501 = vmatpush2.bf16.msra.mxu0 %v1080
  %1502 = vmatprep.mubr.bf16.mxu0 %v335
  %1503 = vmatmul.mubr.bf16.gmra.mxu0 %v334
  %v1504 = vpop.f32.mrf.mxu0
  %v1505 = vadd.f32 %v1432, %v1504
  %v1506 = vpop.f32.mrf.mxu0
  %v1507 = vadd.f32 %v1434, %v1506
  %v1508 = vpop.f32.mrf.mxu0
  %v1509 = vadd.f32 %v1436, %v1508
  %v1510 = vpop.f32.mrf.mxu0
  %v1511 = vadd.f32 %v1438, %v1510
  %1512 = vmatprep.mubr.bf16.mxu0 %v342
  %1513 = vmatmul.mubr.bf16.gmra.mxu0 %v341
  %v1514 = vpop.f32.mrf.mxu0
  %v1515 = vadd.f32 %v1442, %v1514
  %v1516 = vpop.f32.mrf.mxu0
  %v1517 = vadd.f32 %v1444, %v1516
  %v1518 = vpop.f32.mrf.mxu0
  %v1519 = vadd.f32 %v1446, %v1518
  %v1520 = vpop.f32.mrf.mxu0
  %v1521 = vadd.f32 %v1448, %v1520
  %1522 = vmatprep.mubr.bf16.mxu0 %v349
  %1523 = vmatmul.mubr.bf16.gmra.mxu0 %v348
  %v1524 = vpop.f32.mrf.mxu0
  %v1525 = vadd.f32 %v1452, %v1524
  %v1526 = vpop.f32.mrf.mxu0
  %v1527 = vadd.f32 %v1454, %v1526
  %v1528 = vpop.f32.mrf.mxu0
  %v1529 = vadd.f32 %v1456, %v1528
  %v1530 = vpop.f32.mrf.mxu0
  %v1531 = vadd.f32 %v1458, %v1530
  %1532 = vmatprep.mubr.bf16.mxu0 %v356
  %1533 = vmatmul.mubr.bf16.gmra.mxu0 %v355
  %v1534 = vpop.f32.mrf.mxu0
  %v1535 = vadd.f32 %v1462, %v1534
  %v1536 = vpop.f32.mrf.mxu0
  %v1537 = vadd.f32 %v1464, %v1536
  %v1538 = vpop.f32.mrf.mxu0
  %v1539 = vadd.f32 %v1466, %v1538
  %v1540 = vpop.f32.mrf.mxu0
  %v1541 = vadd.f32 %v1468, %v1540
  %1542 = vdwg.mxu0
  %1543 = vmatprep.subr.bf16.mxu0 %v1141
  %1544 = vmatpush1.bf16.msra.mxu0 %v1140
  %1545 = vmatprep.subr.bf16.mxu0 %v1137
  %1546 = vmatpush1.bf16.msra.mxu0 %v1136
  %1547 = vmatprep.subr.bf16.mxu0 %v1133
  %1548 = vmatpush1.bf16.msra.mxu0 %v1132
  %1549 = vmatprep.subr.bf16.mxu0 %v1129
  %1550 = vmatpush1.bf16.msra.mxu0 %v1128
  %1551 = vmatprep.subr.bf16.mxu0 %v1125
  %1552 = vmatpush1.bf16.msra.mxu0 %v1124
  %1553 = vmatprep.subr.bf16.mxu0 %v1121
  %1554 = vmatpush1.bf16.msra.mxu0 %v1120
  %1555 = vmatprep.subr.bf16.mxu0 %v1117
  %1556 = vmatpush1.bf16.msra.mxu0 %v1116
  %1557 = vmatprep.subr.bf16.mxu0 %v1113
  %1558 = vmatpush1.bf16.msra.mxu0 %v1112
  %1559 = vmatprep.subr.bf16.mxu0 %v1173
  %1560 = vmatpush2.bf16.msra.mxu0 %v1172
  %1561 = vmatprep.subr.bf16.mxu0 %v1169
  %1562 = vmatpush2.bf16.msra.mxu0 %v1168
  %1563 = vmatprep.subr.bf16.mxu0 %v1165
  %1564 = vmatpush2.bf16.msra.mxu0 %v1164
  %1565 = vmatprep.subr.bf16.mxu0 %v1161
  %1566 = vmatpush2.bf16.msra.mxu0 %v1160
  %1567 = vmatprep.subr.bf16.mxu0 %v1157
  %1568 = vmatpush2.bf16.msra.mxu0 %v1156
  %1569 = vmatprep.subr.bf16.mxu0 %v1153
  %1570 = vmatpush2.bf16.msra.mxu0 %v1152
  %1571 = vmatprep.subr.bf16.mxu0 %v1149
  %1572 = vmatpush2.bf16.msra.mxu0 %v1148
  %1573 = vmatprep.subr.bf16.mxu0 %v1145
  %1574 = vmatpush2.bf16.msra.mxu0 %v1144
  %1575 = vmatprep.mubr.bf16.mxu0 %v337
  %1576 = vmatmul.mubr.bf16.gmra.mxu0 %v336
  %v1577 = vpop.f32.mrf.mxu0
  %v1578 = vadd.f32 %v1505, %v1577
  %v1579 = vpop.f32.mrf.mxu0
  %v1580 = vadd.f32 %v1507, %v1579
  %v1581 = vpop.f32.mrf.mxu0
  %v1582 = vadd.f32 %v1509, %v1581
  %v1583 = vpop.f32.mrf.mxu0
  %v1584 = vadd.f32 %v1511, %v1583
  %1585 = vmatprep.mubr.bf16.mxu0 %v344
  %1586 = vmatmul.mubr.bf16.gmra.mxu0 %v343
  %v1587 = vpop.f32.mrf.mxu0
  %v1588 = vadd.f32 %v1515, %v1587
  %v1589 = vpop.f32.mrf.mxu0
  %v1590 = vadd.f32 %v1517, %v1589
  %v1591 = vpop.f32.mrf.mxu0
  %v1592 = vadd.f32 %v1519, %v1591
  %v1593 = vpop.f32.mrf.mxu0
  %v1594 = vadd.f32 %v1521, %v1593
  %1595 = vmatprep.mubr.bf16.mxu0 %v351
  %1596 = vmatmul.mubr.bf16.gmra.mxu0 %v350
  %v1597 = vpop.f32.mrf.mxu0
  %v1598 = vadd.f32 %v1525, %v1597
  %v1599 = vpop.f32.mrf.mxu0
  %v1600 = vadd.f32 %v1527, %v1599
  %v1601 = vpop.f32.mrf.mxu0
  %v1602 = vadd.f32 %v1529, %v1601
  %v1603 = vpop.f32.mrf.mxu0
  %v1604 = vadd.f32 %v1531, %v1603
  %1605 = vmatprep.mubr.bf16.mxu0 %v358
  %1606 = vmatmul.mubr.bf16.gmra.mxu0 %v357
  %v1607 = vpop.f32.mrf.mxu0
  %v1608 = vadd.f32 %v1535, %v1607
  %v1609 = vpop.f32.mrf.mxu0
  %v1610 = vadd.f32 %v1537, %v1609
  %v1611 = vpop.f32.mrf.mxu0
  %v1612 = vadd.f32 %v1539, %v1611
  %v1613 = vpop.f32.mrf.mxu0
  %v1614 = vadd.f32 %v1541, %v1613
  %1615 = vdwg.mxu0
  %1616 = vmatprep.subr.bf16.mxu0 0
  %1617 = vmatpush1.bf16.msra.mxu0 0
  %1618 = vmatprep.subr.bf16.mxu0 0
  %1619 = vmatpush1.bf16.msra.mxu0 0
  %1620 = vmatprep.subr.bf16.mxu0 0
  %1621 = vmatpush1.bf16.msra.mxu0 0
  %1622 = vmatprep.subr.bf16.mxu0 0
  %1623 = vmatpush1.bf16.msra.mxu0 0
  %1624 = vmatprep.subr.bf16.mxu0 0
  %1625 = vmatpush1.bf16.msra.mxu0 0
  %1626 = vmatprep.subr.bf16.mxu0 0
  %1627 = vmatpush1.bf16.msra.mxu0 0
  %1628 = vmatprep.subr.bf16.mxu0 %v1181
  %1629 = vmatpush1.bf16.msra.mxu0 %v1180
  %1630 = vmatprep.subr.bf16.mxu0 %v1177
  %1631 = vmatpush1.bf16.msra.mxu0 %v1176
  %1632 = vmatprep.subr.bf16.mxu0 0
  %1633 = vmatpush2.bf16.msra.mxu0 0
  %1634 = vmatprep.subr.bf16.mxu0 0
  %1635 = vmatpush2.bf16.msra.mxu0 0
  %1636 = vmatprep.subr.bf16.mxu0 0
  %1637 = vmatpush2.bf16.msra.mxu0 0
  %1638 = vmatprep.subr.bf16.mxu0 0
  %1639 = vmatpush2.bf16.msra.mxu0 0
  %1640 = vmatprep.subr.bf16.mxu0 0
  %1641 = vmatpush2.bf16.msra.mxu0 0
  %1642 = vmatprep.subr.bf16.mxu0 0
  %1643 = vmatpush2.bf16.msra.mxu0 0
  %1644 = vmatprep.subr.bf16.mxu0 0
  %1645 = vmatpush2.bf16.msra.mxu0 0
  %1646 = vmatprep.subr.bf16.mxu0 0
  %1647 = vmatpush2.bf16.msra.mxu0 0
  %1648 = vmatprep.mubr.bf16.mxu0 0
  %1649 = vmatmul.mubr.bf16.gmra.mxu0 %v1386
  %v1650 = vpop.f32.mrf.mxu0
  %v1651 = vadd.f32 %v1578, %v1650
  %v1652 = vpop.f32.mrf.mxu0
  %v1653 = vadd.f32 %v1580, %v1652
  %v1654 = vpop.f32.mrf.mxu0
  %v1655 = vadd.f32 %v1582, %v1654
  %v1656 = vpop.f32.mrf.mxu0
  %v1657 = vadd.f32 %v1584, %v1656
  %1658 = vmatprep.mubr.bf16.mxu0 0
  %1659 = vmatmul.mubr.bf16.gmra.mxu0 %v1389
  %v1660 = vpop.f32.mrf.mxu0
  %v1661 = vadd.f32 %v1588, %v1660
  %v1662 = vpop.f32.mrf.mxu0
  %v1663 = vadd.f32 %v1590, %v1662
  %v1664 = vpop.f32.mrf.mxu0
  %v1665 = vadd.f32 %v1592, %v1664
  %v1666 = vpop.f32.mrf.mxu0
  %v1667 = vadd.f32 %v1594, %v1666
  %1668 = vmatprep.mubr.bf16.mxu0 0
  %1669 = vmatmul.mubr.bf16.gmra.mxu0 %v1392
  %v1670 = vpop.f32.mrf.mxu0
  %v1671 = vadd.f32 %v1598, %v1670
  %v1672 = vpop.f32.mrf.mxu0
  %v1673 = vadd.f32 %v1600, %v1672
  %v1674 = vpop.f32.mrf.mxu0
  %v1675 = vadd.f32 %v1602, %v1674
  %v1676 = vpop.f32.mrf.mxu0
  %v1677 = vadd.f32 %v1604, %v1676
  %1678 = vmatprep.mubr.bf16.mxu0 0
  %1679 = vmatmul.mubr.bf16.gmra.mxu0 %v1395
  %v1680 = vpop.f32.mrf.mxu0
  %v1681 = vadd.f32 %v1608, %v1680
  %v1682 = vpop.f32.mrf.mxu0
  %v1683 = vadd.f32 %v1610, %v1682
  %v1684 = vpop.f32.mrf.mxu0
  %v1685 = vadd.f32 %v1612, %v1684
  %v1686 = vpop.f32.mrf.mxu0
  %v1687 = vadd.f32 %v1614, %v1686
  %1688 = vdwg.mxu0
  %1689 = vmatprep.subr.bf16.mxu0 %v1015
  %1690 = vmatpush1.bf16.msra.mxu0 %v1014
  %1691 = vmatprep.subr.bf16.mxu0 %v1011
  %1692 = vmatpush1.bf16.msra.mxu0 %v1010
  %1693 = vmatprep.subr.bf16.mxu0 %v1007
  %1694 = vmatpush1.bf16.msra.mxu0 %v1006
  %1695 = vmatprep.subr.bf16.mxu0 %v1003
  %1696 = vmatpush1.bf16.msra.mxu0 %v1002
  %1697 = vmatprep.subr.bf16.mxu0 %v999
  %1698 = vmatpush1.bf16.msra.mxu0 %v998
  %1699 = vmatprep.subr.bf16.mxu0 %v995
  %1700 = vmatpush1.bf16.msra.mxu0 %v994
  %1701 = vmatprep.subr.bf16.mxu0 %v991
  %1702 = vmatpush1.bf16.msra.mxu0 %v990
  %1703 = vmatprep.subr.bf16.mxu0 %v987
  %1704 = vmatpush1.bf16.msra.mxu0 %v986
  %1705 = vmatprep.subr.bf16.mxu0 %v1047
  %1706 = vmatpush2.bf16.msra.mxu0 %v1046
  %1707 = vmatprep.subr.bf16.mxu0 %v1043
  %1708 = vmatpush2.bf16.msra.mxu0 %v1042
  %1709 = vmatprep.subr.bf16.mxu0 %v1039
  %1710 = vmatpush2.bf16.msra.mxu0 %v1038
  %1711 = vmatprep.subr.bf16.mxu0 %v1035
  %1712 = vmatpush2.bf16.msra.mxu0 %v1034
  %1713 = vmatprep.subr.bf16.mxu0 %v1031
  %1714 = vmatpush2.bf16.msra.mxu0 %v1030
  %1715 = vmatprep.subr.bf16.mxu0 %v1027
  %1716 = vmatpush2.bf16.msra.mxu0 %v1026
  %1717 = vmatprep.subr.bf16.mxu0 %v1023
  %1718 = vmatpush2.bf16.msra.mxu0 %v1022
  %1719 = vmatprep.subr.bf16.mxu0 %v1019
  %1720 = vmatpush2.bf16.msra.mxu0 %v1018
  %1721 = vmatprep.mubr.bf16.mxu0 %v333
  %1722 = vmatmul.mubr.bf16.gmra.mxu0 %v332
  %v1723 = vpop.f32.mrf.mxu0
  %v1724 = vadd.f32 0.0, %v1723
  %v1725 = vpop.f32.mrf.mxu0
  %v1726 = vadd.f32 0.0, %v1725
  %v1727 = vpop.f32.mrf.mxu0
  %v1728 = vadd.f32 0.0, %v1727
  %v1729 = vpop.f32.mrf.mxu0
  %v1730 = vadd.f32 0.0, %v1729
  %1731 = vmatprep.mubr.bf16.mxu0 %v340
  %1732 = vmatmul.mubr.bf16.gmra.mxu0 %v339
  %v1733 = vpop.f32.mrf.mxu0
  %v1734 = vadd.f32 0.0, %v1733
  %v1735 = vpop.f32.mrf.mxu0
  %v1736 = vadd.f32 0.0, %v1735
  %v1737 = vpop.f32.mrf.mxu0
  %v1738 = vadd.f32 0.0, %v1737
  %v1739 = vpop.f32.mrf.mxu0
  %v1740 = vadd.f32 0.0, %v1739
  %1741 = vmatprep.mubr.bf16.mxu0 %v347
  %1742 = vmatmul.mubr.bf16.gmra.mxu0 %v346
  %v1743 = vpop.f32.mrf.mxu0
  %v1744 = vadd.f32 0.0, %v1743
  %v1745 = vpop.f32.mrf.mxu0
  %v1746 = vadd.f32 0.0, %v1745
  %v1747 = vpop.f32.mrf.mxu0
  %v1748 = vadd.f32 0.0, %v1747
  %v1749 = vpop.f32.mrf.mxu0
  %v1750 = vadd.f32 0.0, %v1749
  %1751 = vmatprep.mubr.bf16.mxu0 %v354
  %1752 = vmatmul.mubr.bf16.gmra.mxu0 %v353
  %v1753 = vpop.f32.mrf.mxu0
  %v1754 = vadd.f32 0.0, %v1753
  %v1755 = vpop.f32.mrf.mxu0
  %v1756 = vadd.f32 0.0, %v1755
  %v1757 = vpop.f32.mrf.mxu0
  %v1758 = vadd.f32 0.0, %v1757
  %v1759 = vpop.f32.mrf.mxu0
  %v1760 = vadd.f32 0.0, %v1759
  %1761 = vdwg.mxu0
  %1762 = vmatprep.subr.bf16.mxu0 %v1079
  %1763 = vmatpush1.bf16.msra.mxu0 %v1078
  %1764 = vmatprep.subr.bf16.mxu0 %v1075
  %1765 = vmatpush1.bf16.msra.mxu0 %v1074
  %1766 = vmatprep.subr.bf16.mxu0 %v1071
  %1767 = vmatpush1.bf16.msra.mxu0 %v1070
  %1768 = vmatprep.subr.bf16.mxu0 %v1067
  %1769 = vmatpush1.bf16.msra.mxu0 %v1066
  %1770 = vmatprep.subr.bf16.mxu0 %v1063
  %1771 = vmatpush1.bf16.msra.mxu0 %v1062
  %1772 = vmatprep.subr.bf16.mxu0 %v1059
  %1773 = vmatpush1.bf16.msra.mxu0 %v1058
  %1774 = vmatprep.subr.bf16.mxu0 %v1055
  %1775 = vmatpush1.bf16.msra.mxu0 %v1054
  %1776 = vmatprep.subr.bf16.mxu0 %v1051
  %1777 = vmatpush1.bf16.msra.mxu0 %v1050
  %1778 = vmatprep.subr.bf16.mxu0 %v1111
  %1779 = vmatpush2.bf16.msra.mxu0 %v1110
  %1780 = vmatprep.subr.bf16.mxu0 %v1107
  %1781 = vmatpush2.bf16.msra.mxu0 %v1106
  %1782 = vmatprep.subr.bf16.mxu0 %v1103
  %1783 = vmatpush2.bf16.msra.mxu0 %v1102
  %1784 = vmatprep.subr.bf16.mxu0 %v1099
  %1785 = vmatpush2.bf16.msra.mxu0 %v1098
  %1786 = vmatprep.subr.bf16.mxu0 %v1095
  %1787 = vmatpush2.bf16.msra.mxu0 %v1094
  %1788 = vmatprep.subr.bf16.mxu0 %v1091
  %1789 = vmatpush2.bf16.msra.mxu0 %v1090
  %1790 = vmatprep.subr.bf16.mxu0 %v1087
  %1791 = vmatpush2.bf16.msra.mxu0 %v1086
  %1792 = vmatprep.subr.bf16.mxu0 %v1083
  %1793 = vmatpush2.bf16.msra.mxu0 %v1082
  %1794 = vmatprep.mubr.bf16.mxu0 %v335
  %1795 = vmatmul.mubr.bf16.gmra.mxu0 %v334
  %v1796 = vpop.f32.mrf.mxu0
  %v1797 = vadd.f32 %v1724, %v1796
  %v1798 = vpop.f32.mrf.mxu0
  %v1799 = vadd.f32 %v1726, %v1798
  %v1800 = vpop.f32.mrf.mxu0
  %v1801 = vadd.f32 %v1728, %v1800
  %v1802 = vpop.f32.mrf.mxu0
  %v1803 = vadd.f32 %v1730, %v1802
  %1804 = vmatprep.mubr.bf16.mxu0 %v342
  %1805 = vmatmul.mubr.bf16.gmra.mxu0 %v341
  %v1806 = vpop.f32.mrf.mxu0
  %v1807 = vadd.f32 %v1734, %v1806
  %v1808 = vpop.f32.mrf.mxu0
  %v1809 = vadd.f32 %v1736, %v1808
  %v1810 = vpop.f32.mrf.mxu0
  %v1811 = vadd.f32 %v1738, %v1810
  %v1812 = vpop.f32.mrf.mxu0
  %v1813 = vadd.f32 %v1740, %v1812
  %1814 = vmatprep.mubr.bf16.mxu0 %v349
  %1815 = vmatmul.mubr.bf16.gmra.mxu0 %v348
  %v1816 = vpop.f32.mrf.mxu0
  %v1817 = vadd.f32 %v1744, %v1816
  %v1818 = vpop.f32.mrf.mxu0
  %v1819 = vadd.f32 %v1746, %v1818
  %v1820 = vpop.f32.mrf.mxu0
  %v1821 = vadd.f32 %v1748, %v1820
  %v1822 = vpop.f32.mrf.mxu0
  %v1823 = vadd.f32 %v1750, %v1822
  %1824 = vmatprep.mubr.bf16.mxu0 %v356
  %1825 = vmatmul.mubr.bf16.gmra.mxu0 %v355
  %v1826 = vpop.f32.mrf.mxu0
  %v1827 = vadd.f32 %v1754, %v1826
  %v1828 = vpop.f32.mrf.mxu0
  %v1829 = vadd.f32 %v1756, %v1828
  %v1830 = vpop.f32.mrf.mxu0
  %v1831 = vadd.f32 %v1758, %v1830
  %v1832 = vpop.f32.mrf.mxu0
  %v1833 = vadd.f32 %v1760, %v1832
  %1834 = vdwg.mxu0
  %1835 = vmatprep.subr.bf16.mxu0 %v1143
  %1836 = vmatpush1.bf16.msra.mxu0 %v1142
  %1837 = vmatprep.subr.bf16.mxu0 %v1139
  %1838 = vmatpush1.bf16.msra.mxu0 %v1138
  %1839 = vmatprep.subr.bf16.mxu0 %v1135
  %1840 = vmatpush1.bf16.msra.mxu0 %v1134
  %1841 = vmatprep.subr.bf16.mxu0 %v1131
  %1842 = vmatpush1.bf16.msra.mxu0 %v1130
  %1843 = vmatprep.subr.bf16.mxu0 %v1127
  %1844 = vmatpush1.bf16.msra.mxu0 %v1126
  %1845 = vmatprep.subr.bf16.mxu0 %v1123
  %1846 = vmatpush1.bf16.msra.mxu0 %v1122
  %1847 = vmatprep.subr.bf16.mxu0 %v1119
  %1848 = vmatpush1.bf16.msra.mxu0 %v1118
  %1849 = vmatprep.subr.bf16.mxu0 %v1115
  %1850 = vmatpush1.bf16.msra.mxu0 %v1114
  %1851 = vmatprep.subr.bf16.mxu0 %v1175
  %1852 = vmatpush2.bf16.msra.mxu0 %v1174
  %1853 = vmatprep.subr.bf16.mxu0 %v1171
  %1854 = vmatpush2.bf16.msra.mxu0 %v1170
  %1855 = vmatprep.subr.bf16.mxu0 %v1167
  %1856 = vmatpush2.bf16.msra.mxu0 %v1166
  %1857 = vmatprep.subr.bf16.mxu0 %v1163
  %1858 = vmatpush2.bf16.msra.mxu0 %v1162
  %1859 = vmatprep.subr.bf16.mxu0 %v1159
  %1860 = vmatpush2.bf16.msra.mxu0 %v1158
  %1861 = vmatprep.subr.bf16.mxu0 %v1155
  %1862 = vmatpush2.bf16.msra.mxu0 %v1154
  %1863 = vmatprep.subr.bf16.mxu0 %v1151
  %1864 = vmatpush2.bf16.msra.mxu0 %v1150
  %1865 = vmatprep.subr.bf16.mxu0 %v1147
  %1866 = vmatpush2.bf16.msra.mxu0 %v1146
  %1867 = vmatprep.mubr.bf16.mxu0 %v337
  %1868 = vmatmul.mubr.bf16.gmra.mxu0 %v336
  %v1869 = vpop.f32.mrf.mxu0
  %v1870 = vadd.f32 %v1797, %v1869
  %v1871 = vpop.f32.mrf.mxu0
  %v1872 = vadd.f32 %v1799, %v1871
  %v1873 = vpop.f32.mrf.mxu0
  %v1874 = vadd.f32 %v1801, %v1873
  %v1875 = vpop.f32.mrf.mxu0
  %v1876 = vadd.f32 %v1803, %v1875
  %1877 = vmatprep.mubr.bf16.mxu0 %v344
  %1878 = vmatmul.mubr.bf16.gmra.mxu0 %v343
  %v1879 = vpop.f32.mrf.mxu0
  %v1880 = vadd.f32 %v1807, %v1879
  %v1881 = vpop.f32.mrf.mxu0
  %v1882 = vadd.f32 %v1809, %v1881
  %v1883 = vpop.f32.mrf.mxu0
  %v1884 = vadd.f32 %v1811, %v1883
  %v1885 = vpop.f32.mrf.mxu0
  %v1886 = vadd.f32 %v1813, %v1885
  %1887 = vmatprep.mubr.bf16.mxu0 %v351
  %1888 = vmatmul.mubr.bf16.gmra.mxu0 %v350
  %v1889 = vpop.f32.mrf.mxu0
  %v1890 = vadd.f32 %v1817, %v1889
  %v1891 = vpop.f32.mrf.mxu0
  %v1892 = vadd.f32 %v1819, %v1891
  %v1893 = vpop.f32.mrf.mxu0
  %v1894 = vadd.f32 %v1821, %v1893
  %v1895 = vpop.f32.mrf.mxu0
  %v1896 = vadd.f32 %v1823, %v1895
  %1897 = vmatprep.mubr.bf16.mxu0 %v358
  %1898 = vmatmul.mubr.bf16.gmra.mxu0 %v357
  %v1899 = vpop.f32.mrf.mxu0
  %v1900 = vadd.f32 %v1827, %v1899
  %v1901 = vpop.f32.mrf.mxu0
  %v1902 = vadd.f32 %v1829, %v1901
  %v1903 = vpop.f32.mrf.mxu0
  %v1904 = vadd.f32 %v1831, %v1903
  %v1905 = vpop.f32.mrf.mxu0
  %v1906 = vadd.f32 %v1833, %v1905
  %1907 = vdwg.mxu0
  %1908 = vmatprep.subr.bf16.mxu0 0
  %1909 = vmatpush1.bf16.msra.mxu0 0
  %1910 = vmatprep.subr.bf16.mxu0 0
  %1911 = vmatpush1.bf16.msra.mxu0 0
  %1912 = vmatprep.subr.bf16.mxu0 0
  %1913 = vmatpush1.bf16.msra.mxu0 0
  %1914 = vmatprep.subr.bf16.mxu0 0
  %1915 = vmatpush1.bf16.msra.mxu0 0
  %1916 = vmatprep.subr.bf16.mxu0 0
  %1917 = vmatpush1.bf16.msra.mxu0 0
  %1918 = vmatprep.subr.bf16.mxu0 0
  %1919 = vmatpush1.bf16.msra.mxu0 0
  %1920 = vmatprep.subr.bf16.mxu0 %v1183
  %1921 = vmatpush1.bf16.msra.mxu0 %v1182
  %1922 = vmatprep.subr.bf16.mxu0 %v1179
  %1923 = vmatpush1.bf16.msra.mxu0 %v1178
  %1924 = vmatprep.subr.bf16.mxu0 0
  %1925 = vmatpush2.bf16.msra.mxu0 0
  %1926 = vmatprep.subr.bf16.mxu0 0
  %1927 = vmatpush2.bf16.msra.mxu0 0
  %1928 = vmatprep.subr.bf16.mxu0 0
  %1929 = vmatpush2.bf16.msra.mxu0 0
  %1930 = vmatprep.subr.bf16.mxu0 0
  %1931 = vmatpush2.bf16.msra.mxu0 0
  %1932 = vmatprep.subr.bf16.mxu0 0
  %1933 = vmatpush2.bf16.msra.mxu0 0
  %1934 = vmatprep.subr.bf16.mxu0 0
  %1935 = vmatpush2.bf16.msra.mxu0 0
  %1936 = vmatprep.subr.bf16.mxu0 0
  %1937 = vmatpush2.bf16.msra.mxu0 0
  %1938 = vmatprep.subr.bf16.mxu0 0
  %1939 = vmatpush2.bf16.msra.mxu0 0
  %1940 = vmatprep.mubr.bf16.mxu0 0
  %1941 = vmatmul.mubr.bf16.gmra.mxu0 %v1386
  %v1942 = vpop.f32.mrf.mxu0
  %v1943 = vadd.f32 %v1870, %v1942
  %v1944 = vpop.f32.mrf.mxu0
  %v1945 = vadd.f32 %v1872, %v1944
  %v1946 = vpop.f32.mrf.mxu0
  %v1947 = vadd.f32 %v1874, %v1946
  %v1948 = vpop.f32.mrf.mxu0
  %v1949 = vadd.f32 %v1876, %v1948
  %1950 = vmatprep.mubr.bf16.mxu0 0
  %1951 = vmatmul.mubr.bf16.gmra.mxu0 %v1389
  %v1952 = vpop.f32.mrf.mxu0
  %v1953 = vadd.f32 %v1880, %v1952
  %v1954 = vpop.f32.mrf.mxu0
  %v1955 = vadd.f32 %v1882, %v1954
  %v1956 = vpop.f32.mrf.mxu0
  %v1957 = vadd.f32 %v1884, %v1956
  %v1958 = vpop.f32.mrf.mxu0
  %v1959 = vadd.f32 %v1886, %v1958
  %1960 = vmatprep.mubr.bf16.mxu0 0
  %1961 = vmatmul.mubr.bf16.gmra.mxu0 %v1392
  %v1962 = vpop.f32.mrf.mxu0
  %v1963 = vadd.f32 %v1890, %v1962
  %v1964 = vpop.f32.mrf.mxu0
  %v1965 = vadd.f32 %v1892, %v1964
  %v1966 = vpop.f32.mrf.mxu0
  %v1967 = vadd.f32 %v1894, %v1966
  %v1968 = vpop.f32.mrf.mxu0
  %v1969 = vadd.f32 %v1896, %v1968
  %1970 = vmatprep.mubr.bf16.mxu0 0
  %1971 = vmatmul.mubr.bf16.gmra.mxu0 %v1395
  %v1972 = vpop.f32.mrf.mxu0
  %v1973 = vadd.f32 %v1900, %v1972
  %v1974 = vpop.f32.mrf.mxu0
  %v1975 = vadd.f32 %v1902, %v1974
  %v1976 = vpop.f32.mrf.mxu0
  %v1977 = vadd.f32 %v1904, %v1976
  %v1978 = vpop.f32.mrf.mxu0
  %v1979 = vadd.f32 %v1906, %v1978
  %1980 = vdwg.mxu0
  %v1981 = vmul.f32 %v1651, %v1671
  %v1982 = vmul.f32 %v1653, %v1673
  %v1983 = vmul.f32 %v1943, %v1963
  %v1984 = vmul.f32 %v1945, %v1965
  %v1985 = vmul.f32 %v1655, %v1675
  %v1986 = vmul.f32 %v1657, %v1677
  %v1987 = vmul.f32 %v1947, %v1967
  %v1988 = vmul.f32 %v1949, %v1969
  %v1989 = vmul.f32 %v1661, %v1681
  %v1990 = vmul.f32 %v1663, %v1683
  %v1991 = vmul.f32 %v1953, %v1973
  %v1992 = vmul.f32 %v1955, %v1975
  %v1993 = vmul.f32 %v1665, %v1685
  %v1994 = vmul.f32 %v1667, %v1687
  %v1995 = vmul.f32 %v1957, %v1977
  %v1996 = vmul.f32 %v1959, %v1979
  %1997 = vst [vmem:[%s2] sm:$0xff] %v1981
  %1998 = vst [vmem:[%s2 + $0x8] sm:$0xff] %v1982
  %1999 = vst [vmem:[%s2 + $0x10] sm:$0xff] %v1983
  %2000 = vst [vmem:[%s2 + $0x18] sm:$0xff] %v1984
  %2001 = vst [vmem:[%s2 + $0x20] sm:$0xff] %v1985
  %2002 = vst [vmem:[%s2 + $0x28] sm:$0xff] %v1986
  %2003 = vst [vmem:[%s2 + $0x30] sm:$0xff] %v1987
  %2004 = vst [vmem:[%s2 + $0x38] sm:$0xff] %v1988
  %2005 = vst [vmem:[%s2 + $0x40] sm:$0xff] %v1989
  %2006 = vst [vmem:[%s2 + $0x48] sm:$0xff] %v1990
  %2007 = vst [vmem:[%s2 + $0x50] sm:$0xff] %v1991
  %2008 = vst [vmem:[%s2 + $0x58] sm:$0xff] %v1992
  %2009 = vst [vmem:[%s2 + $0x60] sm:$0xff] %v1993
  %2010 = vst [vmem:[%s2 + $0x68] sm:$0xff] %v1994
  %2011 = vst [vmem:[%s2 + $0x70] sm:$0xff] %v1995
  %2012 = vst [vmem:[%s2 + $0x78] sm:$0xff] %v1996
  // Predicated region
  $region10: #{bilinear_cnn_forward.8} parent=0 // pred_check
    _
  $region11: #{bilinear_cnn_forward.8} parent=0 // pred_check_branch
    %2014 = sbr.rel (0) target = $region13
  $region12: #{bilinear_cnn_forward.8} parent=0 // pred_region
    _
  $region13: #{bilinear_cnn_forward.8} parent=0 // pred_fallthru
    _
  // Predicated region
  $region14: #{bilinear_cnn_forward.8} parent=0 // pred_check
    _
  $region15: #{bilinear_cnn_forward.8} parent=0 // pred_check_branch
    %2016 = sbr.rel (0) target = $region17
  $region16: #{bilinear_cnn_forward.8} parent=0 // pred_region
    _
  $region17: #{bilinear_cnn_forward.8} parent=0 // pred_fallthru
    _

// kernel: bilinear_cnn_forward.9
$region0: #{bilinear_cnn_forward.9}
  #allocation0 [shape = 'u32[]', space=smem, size = 0x4, offset = 0x4, fixed_abs, tag = 'smem constant byte address 0x4 - core index']
  #allocation1 [shape = 'u32[144,128]{1,0:T(1,128)}', space=vmem, size = 0x12000, scoped, tag = 'internal scratch']
  %s0 = inlined_call_operand.vmem [shape: bf16[64,800], index: 0, kind: input, shape index: {}]
  %s1 = inlined_call_operand.vmem [shape: bf16[800,128], index: 1, kind: input, shape index: {}]
  %s2 = inlined_call_operand.vmem [shape: f32[32,128], index: 2, kind: output, shape index: {}]
  %s3 = sld [smem:[#allocation0]]
  $region18: #{bilinear_cnn_forward.9} parent=0
    _
  %s5 = ssub.s32 1, %s3
  %s6 = scalar_select 0, %s5, %s3
  // Predicated region
  $region2: #{bilinear_cnn_forward.9} parent=0 // pred_check
    _
  $region3: #{bilinear_cnn_forward.9} parent=0 // pred_check_branch
    %8 = sbr.rel (0) target = $region5
  $region4: #{bilinear_cnn_forward.9} parent=0 // pred_region
    _
  $region5: #{bilinear_cnn_forward.9} parent=0 // pred_fallthru
    _
  // Predicated region
  $region6: #{bilinear_cnn_forward.9} parent=0 // pred_check
    _
  $region7: #{bilinear_cnn_forward.9} parent=0 // pred_check_branch
    %10 = sbr.rel (0) target = $region9
  $region8: #{bilinear_cnn_forward.9} parent=0 // pred_region
    _
  $region9: #{bilinear_cnn_forward.9} parent=0 // pred_fallthru
    _
  %v12 = vld [vmem:[%s0] sm:$0xff]
  %v13 = vld [vmem:[%s0 + $0x8] sm:$0xff]
  %v14 = vld [vmem:[%s0 + $0x10] sm:$0xff]
  %v15 = vld [vmem:[%s0 + $0x18] sm:$0xf]
  %v16 = vld [vmem:[%s0 + $0x1c] sm:$0xff]
  %v17 = vld [vmem:[%s0 + $0x24] sm:$0xff]
  %v18 = vld [vmem:[%s0 + $0x2c] sm:$0xff]
  %v19 = vld [vmem:[%s0 + $0x34] sm:$0xf]
  %v20 = vld [vmem:[%s0 + $0x38] sm:$0xff]
  %v21 = vld [vmem:[%s0 + $0x40] sm:$0xff]
  %v22 = vld [vmem:[%s0 + $0x48] sm:$0xff]
  %v23 = vld [vmem:[%s0 + $0x50] sm:$0xf]
  %v24 = vld [vmem:[%s0 + $0x54] sm:$0xff]
  %v25 = vld [vmem:[%s0 + $0x5c] sm:$0xff]
  %v26 = vld [vmem:[%s0 + $0x64] sm:$0xff]
  %v27 = vld [vmem:[%s0 + $0x6c] sm:$0xf]
  %v28 = vld [vmem:[%s0 + $0x70] sm:$0xff]
  %v29 = vld [vmem:[%s0 + $0x78] sm:$0xff]
  %v30 = vld [vmem:[%s0 + $0x80] sm:$0xff]
  %v31 = vld [vmem:[%s0 + $0x88] sm:$0xf]
  %v32 = vld [vmem:[%s0 + $0x8c] sm:$0xff]
  %v33 = vld [vmem:[%s0 + $0x94] sm:$0xff]
  %v34 = vld [vmem:[%s0 + $0x9c] sm:$0xff]
  %v35 = vld [vmem:[%s0 + $0xa4] sm:$0xf]
  %v36 = vld [vmem:[%s0 + $0xa8] sm:$0xff]
  %v37 = vld [vmem:[%s0 + $0xb0] sm:$0xff]
  %v38 = vld [vmem:[%s0 + $0xb8] sm:$0xff]
  %v39 = vld [vmem:[%s0 + $0xc0] sm:$0xf]
  %v40 = vld [vmem:[%s0 + $0xc4] sm:$0xff]
  %v41 = vld [vmem:[%s0 + $0xcc] sm:$0xff]
  %v42 = vld [vmem:[%s0 + $0xd4] sm:$0xff]
  %v43 = vld [vmem:[%s0 + $0xdc] sm:$0xf]
  %v44 = vld [vmem:[%s1] sm:$0xf]
  %v45 = vld [vmem:[%s1 + $0x4] sm:$0xf]
  %v46 = vld [vmem:[%s1 + $0x8] sm:$0xf]
  %v47 = vld [vmem:[%s1 + $0xc] sm:$0xf]
  %v48 = vld [vmem:[%s1 + $0x10] sm:$0xf]
  %v49 = vld [vmem:[%s1 + $0x14] sm:$0xf]
  %v50 = vld [vmem:[%s1 + $0x18] sm:$0xf]
  %v51 = vld [vmem:[%s1 + $0x1c] sm:$0xf]
  %v52 = vld [vmem:[%s1 + $0x20] sm:$0xf]
  %v53 = vld [vmem:[%s1 + $0x24] sm:$0xf]
  %v54 = vld [vmem:[%s1 + $0x28] sm:$0xf]
  %v55 = vld [vmem:[%s1 + $0x2c] sm:$0xf]
  %v56 = vld [vmem:[%s1 + $0x30] sm:$0xf]
  %v57 = vld [vmem:[%s1 + $0x34] sm:$0xf]
  %v58 = vld [vmem:[%s1 + $0x38] sm:$0xf]
  %v59 = vld [vmem:[%s1 + $0x3c] sm:$0xf]
  %v60 = vld [vmem:[%s1 + $0x40] sm:$0xf]
  %v61 = vld [vmem:[%s1 + $0x44] sm:$0xf]
  %v62 = vld [vmem:[%s1 + $0x48] sm:$0xf]
  %v63 = vld [vmem:[%s1 + $0x4c] sm:$0xf]
  %v64 = vld [vmem:[%s1 + $0x50] sm:$0xf]
  %v65 = vld [vmem:[%s1 + $0x54] sm:$0xf]
  %v66 = vld [vmem:[%s1 + $0x58] sm:$0xf]
  %v67 = vld [vmem:[%s1 + $0x5c] sm:$0xf]
  %v68 = vld [vmem:[%s1 + $0x60] sm:$0xf]
  %v69 = vld [vmem:[%s1 + $0x64] sm:$0xf]
  %v70 = vld [vmem:[%s1 + $0x68] sm:$0xf]
  %v71 = vld [vmem:[%s1 + $0x6c] sm:$0xf]
  %v72 = vld [vmem:[%s1 + $0x70] sm:$0xf]
  %v73 = vld [vmem:[%s1 + $0x74] sm:$0xf]
  %v74 = vld [vmem:[%s1 + $0x78] sm:$0xf]
  %v75 = vld [vmem:[%s1 + $0x7c] sm:$0xf]
  %v76 = vld [vmem:[%s1 + $0x80] sm:$0xf]
  %v77 = vld [vmem:[%s1 + $0x84] sm:$0xf]
  %v78 = vld [vmem:[%s1 + $0x88] sm:$0xf]
  %v79 = vld [vmem:[%s1 + $0x8c] sm:$0xf]
  %v80 = vld [vmem:[%s1 + $0x90] sm:$0xf]
  %v81 = vld [vmem:[%s1 + $0x94] sm:$0xf]
  %v82 = vld [vmem:[%s1 + $0x98] sm:$0xf]
  %v83 = vld [vmem:[%s1 + $0x9c] sm:$0xf]
  %v84 = vld [vmem:[%s1 + $0xa0] sm:$0xf]
  %v85 = vld [vmem:[%s1 + $0xa4] sm:$0xf]
  %v86 = vld [vmem:[%s1 + $0xa8] sm:$0xf]
  %v87 = vld [vmem:[%s1 + $0xac] sm:$0xf]
  %v88 = vld [vmem:[%s1 + $0xb0] sm:$0xf]
  %v89 = vld [vmem:[%s1 + $0xb4] sm:$0xf]
  %v90 = vld [vmem:[%s1 + $0xb8] sm:$0xf]
  %v91 = vld [vmem:[%s1 + $0xbc] sm:$0xf]
  %v92 = vld [vmem:[%s1 + $0xc0] sm:$0xf]
  %v93 = vld [vmem:[%s1 + $0xc4] sm:$0xf]
  %v94 = vld [vmem:[%s1 + $0xc8] sm:$0xf]
  %v95 = vld [vmem:[%s1 + $0xcc] sm:$0xf]
  %v96 = vld [vmem:[%s1 + $0xd0] sm:$0xf]
  %v97 = vld [vmem:[%s1 + $0xd4] sm:$0xf]
  %v98 = vld [vmem:[%s1 + $0xd8] sm:$0xf]
  %v99 = vld [vmem:[%s1 + $0xdc] sm:$0xf]
  %v100 = vld [vmem:[%s1 + $0xe0] sm:$0xf]
  %v101 = vld [vmem:[%s1 + $0xe4] sm:$0xf]
  %v102 = vld [vmem:[%s1 + $0xe8] sm:$0xf]
  %v103 = vld [vmem:[%s1 + $0xec] sm:$0xf]
  %v104 = vld [vmem:[%s1 + $0xf0] sm:$0xf]
  %v105 = vld [vmem:[%s1 + $0xf4] sm:$0xf]
  %v106 = vld [vmem:[%s1 + $0xf8] sm:$0xf]
  %v107 = vld [vmem:[%s1 + $0xfc] sm:$0xf]
  %v108 = vld [vmem:[%s1 + $0x100] sm:$0xf]
  %v109 = vld [vmem:[%s1 + $0x104] sm:$0xf]
  %v110 = vld [vmem:[%s1 + $0x108] sm:$0xf]
  %v111 = vld [vmem:[%s1 + $0x10c] sm:$0xf]
  %v112 = vld [vmem:[%s1 + $0x110] sm:$0xf]
  %v113 = vld [vmem:[%s1 + $0x114] sm:$0xf]
  %v114 = vld [vmem:[%s1 + $0x118] sm:$0xf]
  %v115 = vld [vmem:[%s1 + $0x11c] sm:$0xf]
  %v116 = vld [vmem:[%s1 + $0x120] sm:$0xf]
  %v117 = vld [vmem:[%s1 + $0x124] sm:$0xf]
  %v118 = vld [vmem:[%s1 + $0x128] sm:$0xf]
  %v119 = vld [vmem:[%s1 + $0x12c] sm:$0xf]
  %v120 = vld [vmem:[%s1 + $0x130] sm:$0xf]
  %v121 = vld [vmem:[%s1 + $0x134] sm:$0xf]
  %v122 = vld [vmem:[%s1 + $0x138] sm:$0xf]
  %v123 = vld [vmem:[%s1 + $0x13c] sm:$0xf]
  %v124 = vld [vmem:[%s1 + $0x140] sm:$0xf]
  %v125 = vld [vmem:[%s1 + $0x144] sm:$0xf]
  %v126 = vld [vmem:[%s1 + $0x148] sm:$0xf]
  %v127 = vld [vmem:[%s1 + $0x14c] sm:$0xf]
  %v128 = vld [vmem:[%s1 + $0x150] sm:$0xf]
  %v129 = vld [vmem:[%s1 + $0x154] sm:$0xf]
  %v130 = vld [vmem:[%s1 + $0x158] sm:$0xf]
  %v131 = vld [vmem:[%s1 + $0x15c] sm:$0xf]
  %v132 = vld [vmem:[%s1 + $0x160] sm:$0xf]
  %v133 = vld [vmem:[%s1 + $0x164] sm:$0xf]
  %v134 = vld [vmem:[%s1 + $0x168] sm:$0xf]
  %v135 = vld [vmem:[%s1 + $0x16c] sm:$0xf]
  %v136 = vld [vmem:[%s1 + $0x170] sm:$0xf]
  %v137 = vld [vmem:[%s1 + $0x174] sm:$0xf]
  %v138 = vld [vmem:[%s1 + $0x178] sm:$0xf]
  %v139 = vld [vmem:[%s1 + $0x17c] sm:$0xf]
  %v140 = vld [vmem:[%s1 + $0x180] sm:$0xf]
  %v141 = vld [vmem:[%s1 + $0x184] sm:$0xf]
  %v142 = vld [vmem:[%s1 + $0x188] sm:$0xf]
  %v143 = vld [vmem:[%s1 + $0x18c] sm:$0xf]
  %v176 = vunpack.c.l.b16 %v12
  %v177 = vunpack.c.h.b16 %v12
  %v178 = vunpack.c.l.b16 %v13
  %v179 = vunpack.c.h.b16 %v13
  %v180 = vunpack.c.l.b16 %v14
  %v181 = vunpack.c.h.b16 %v14
  %v182 = vunpack.c.l.b16 %v15
  %v183 = vunpack.c.l.b16 %v16
  %v184 = vunpack.c.h.b16 %v16
  %v185 = vunpack.c.l.b16 %v17
  %v186 = vunpack.c.h.b16 %v17
  %v187 = vunpack.c.l.b16 %v18
  %v188 = vunpack.c.h.b16 %v18
  %v189 = vunpack.c.l.b16 %v19
  %v190 = vunpack.c.l.b16 %v20
  %v191 = vunpack.c.h.b16 %v20
  %v192 = vunpack.c.l.b16 %v21
  %v193 = vunpack.c.h.b16 %v21
  %v194 = vunpack.c.l.b16 %v22
  %v195 = vunpack.c.h.b16 %v22
  %v196 = vunpack.c.l.b16 %v23
  %v197 = vunpack.c.l.b16 %v24
  %v198 = vunpack.c.h.b16 %v24
  %v199 = vunpack.c.l.b16 %v25
  %v200 = vunpack.c.h.b16 %v25
  %v201 = vunpack.c.l.b16 %v26
  %v202 = vunpack.c.h.b16 %v26
  %v203 = vunpack.c.l.b16 %v27
  %v204 = vunpack.c.l.b16 %v28
  %v205 = vunpack.c.h.b16 %v28
  %v206 = vunpack.c.l.b16 %v29
  %v207 = vunpack.c.h.b16 %v29
  %v208 = vunpack.c.l.b16 %v30
  %v209 = vunpack.c.h.b16 %v30
  %v210 = vunpack.c.l.b16 %v31
  %v211 = vunpack.c.l.b16 %v32
  %v212 = vunpack.c.h.b16 %v32
  %v213 = vunpack.c.l.b16 %v33
  %v214 = vunpack.c.h.b16 %v33
  %v215 = vunpack.c.l.b16 %v34
  %v216 = vunpack.c.h.b16 %v34
  %v217 = vunpack.c.l.b16 %v35
  %v218 = vunpack.c.l.b16 %v36
  %v219 = vunpack.c.h.b16 %v36
  %v220 = vunpack.c.l.b16 %v37
  %v221 = vunpack.c.h.b16 %v37
  %v222 = vunpack.c.l.b16 %v38
  %v223 = vunpack.c.h.b16 %v38
  %v224 = vunpack.c.l.b16 %v39
  %v225 = vunpack.c.l.b16 %v40
  %v226 = vunpack.c.h.b16 %v40
  %v227 = vunpack.c.l.b16 %v41
  %v228 = vunpack.c.h.b16 %v41
  %v229 = vunpack.c.l.b16 %v42
  %v230 = vunpack.c.h.b16 %v42
  %v231 = vunpack.c.l.b16 %v43
  %v232 = vpack.c.b16 %v183, %v176
  %v233 = vpack.c.b16 %v184, %v177
  %v234 = vpack.c.b16 %v185, %v178
  %v235 = vpack.c.b16 %v186, %v179
  %v236 = vpack.c.b16 %v187, %v180
  %v237 = vpack.c.b16 %v188, %v181
  %v238 = vpack.c.b16 %v189, %v182
  %v239 = vpack.c.b16 %v197, %v190
  %v240 = vpack.c.b16 %v198, %v191
  %v241 = vpack.c.b16 %v199, %v192
  %v242 = vpack.c.b16 %v200, %v193
  %v243 = vpack.c.b16 %v201, %v194
  %v244 = vpack.c.b16 %v202, %v195
  %v245 = vpack.c.b16 %v203, %v196
  %v246 = vpack.c.b16 %v211, %v204
  %v247 = vpack.c.b16 %v212, %v205
  %v248 = vpack.c.b16 %v213, %v206
  %v249 = vpack.c.b16 %v214, %v207
  %v250 = vpack.c.b16 %v215, %v208
  %v251 = vpack.c.b16 %v216, %v209
  %v252 = vpack.c.b16 %v217, %v210
  %v253 = vpack.c.b16 %v225, %v218
  %v254 = vpack.c.b16 %v226, %v219
  %v255 = vpack.c.b16 %v227, %v220
  %v256 = vpack.c.b16 %v228, %v221
  %v257 = vpack.c.b16 %v229, %v222
  %v258 = vpack.c.b16 %v230, %v223
  %v259 = vpack.c.b16 %v231, %v224
  %v384 = vunpack.c.l.b16 %v44
  %v385 = vunpack.c.l.b16 %v45
  %v386 = vunpack.c.l.b16 %v46
  %v387 = vunpack.c.l.b16 %v47
  %v388 = vunpack.c.l.b16 %v48
  %v389 = vunpack.c.l.b16 %v49
  %v390 = vunpack.c.l.b16 %v50
  %v391 = vunpack.c.l.b16 %v51
  %v392 = vunpack.c.l.b16 %v52
  %v393 = vunpack.c.l.b16 %v53
  %v394 = vunpack.c.l.b16 %v54
  %v395 = vunpack.c.l.b16 %v55
  %v396 = vunpack.c.l.b16 %v56
  %v397 = vunpack.c.l.b16 %v57
  %v398 = vunpack.c.l.b16 %v58
  %v399 = vunpack.c.l.b16 %v59
  %v400 = vunpack.c.l.b16 %v60
  %v401 = vunpack.c.l.b16 %v61
  %v402 = vunpack.c.l.b16 %v62
  %v403 = vunpack.c.l.b16 %v63
  %v404 = vunpack.c.l.b16 %v64
  %v405 = vunpack.c.l.b16 %v65
  %v406 = vunpack.c.l.b16 %v66
  %v407 = vunpack.c.l.b16 %v67
  %v408 = vunpack.c.l.b16 %v68
  %v409 = vunpack.c.l.b16 %v69
  %v410 = vunpack.c.l.b16 %v70
  %v411 = vunpack.c.l.b16 %v71
  %v412 = vunpack.c.l.b16 %v72
  %v413 = vunpack.c.l.b16 %v73
  %v414 = vunpack.c.l.b16 %v74
  %v415 = vunpack.c.l.b16 %v75
  %v416 = vunpack.c.l.b16 %v76
  %v417 = vunpack.c.l.b16 %v77
  %v418 = vunpack.c.l.b16 %v78
  %v419 = vunpack.c.l.b16 %v79
  %v420 = vunpack.c.l.b16 %v80
  %v421 = vunpack.c.l.b16 %v81
  %v422 = vunpack.c.l.b16 %v82
  %v423 = vunpack.c.l.b16 %v83
  %v424 = vunpack.c.l.b16 %v84
  %v425 = vunpack.c.l.b16 %v85
  %v426 = vunpack.c.l.b16 %v86
  %v427 = vunpack.c.l.b16 %v87
  %v428 = vunpack.c.l.b16 %v88
  %v429 = vunpack.c.l.b16 %v89
  %v430 = vunpack.c.l.b16 %v90
  %v431 = vunpack.c.l.b16 %v91
  %v432 = vunpack.c.l.b16 %v92
  %v433 = vunpack.c.l.b16 %v93
  %v434 = vunpack.c.l.b16 %v94
  %v435 = vunpack.c.l.b16 %v95
  %v436 = vunpack.c.l.b16 %v96
  %v437 = vunpack.c.l.b16 %v97
  %v438 = vunpack.c.l.b16 %v98
  %v439 = vunpack.c.l.b16 %v99
  %v440 = vunpack.c.l.b16 %v100
  %v441 = vunpack.c.l.b16 %v101
  %v442 = vunpack.c.l.b16 %v102
  %v443 = vunpack.c.l.b16 %v103
  %v444 = vunpack.c.l.b16 %v104
  %v445 = vunpack.c.l.b16 %v105
  %v446 = vunpack.c.l.b16 %v106
  %v447 = vunpack.c.l.b16 %v107
  %v448 = vunpack.c.l.b16 %v108
  %v449 = vunpack.c.l.b16 %v109
  %v450 = vunpack.c.l.b16 %v110
  %v451 = vunpack.c.l.b16 %v111
  %v452 = vunpack.c.l.b16 %v112
  %v453 = vunpack.c.l.b16 %v113
  %v454 = vunpack.c.l.b16 %v114
  %v455 = vunpack.c.l.b16 %v115
  %v456 = vunpack.c.l.b16 %v116
  %v457 = vunpack.c.l.b16 %v117
  %v458 = vunpack.c.l.b16 %v118
  %v459 = vunpack.c.l.b16 %v119
  %v460 = vunpack.c.l.b16 %v120
  %v461 = vunpack.c.l.b16 %v121
  %v462 = vunpack.c.l.b16 %v122
  %v463 = vunpack.c.l.b16 %v123
  %v464 = vunpack.c.l.b16 %v124
  %v465 = vunpack.c.l.b16 %v125
  %v466 = vunpack.c.l.b16 %v126
  %v467 = vunpack.c.l.b16 %v127
  %v468 = vunpack.c.l.b16 %v128
  %v469 = vunpack.c.l.b16 %v129
  %v470 = vunpack.c.l.b16 %v130
  %v471 = vunpack.c.l.b16 %v131
  %v472 = vunpack.c.l.b16 %v132
  %v473 = vunpack.c.l.b16 %v133
  %v474 = vunpack.c.l.b16 %v134
  %v475 = vunpack.c.l.b16 %v135
  %v476 = vunpack.c.l.b16 %v136
  %v477 = vunpack.c.l.b16 %v137
  %v478 = vunpack.c.l.b16 %v138
  %v479 = vunpack.c.l.b16 %v139
  %v480 = vunpack.c.l.b16 %v140
  %v481 = vunpack.c.l.b16 %v141
  %v482 = vunpack.c.l.b16 %v142
  %v483 = vunpack.c.l.b16 %v143
  %v484 = vpack.c.b16 %v385, %v384
  %v485 = vpack.c.b16 %v387, %v386
  %v486 = vpack.c.b16 %v389, %v388
  %v487 = vpack.c.b16 %v391, %v390
  %v488 = vpack.c.b16 %v393, %v392
  %v489 = vpack.c.b16 %v395, %v394
  %v490 = vpack.c.b16 %v397, %v396
  %v491 = vpack.c.b16 %v399, %v398
  %v492 = vpack.c.b16 %v401, %v400
  %v493 = vpack.c.b16 %v403, %v402
  %v494 = vpack.c.b16 %v405, %v404
  %v495 = vpack.c.b16 %v407, %v406
  %v496 = vpack.c.b16 %v409, %v408
  %v497 = vpack.c.b16 %v411, %v410
  %v498 = vpack.c.b16 %v413, %v412
  %v499 = vpack.c.b16 %v415, %v414
  %v500 = vpack.c.b16 %v417, %v416
  %v501 = vpack.c.b16 %v419, %v418
  %v502 = vpack.c.b16 %v421, %v420
  %v503 = vpack.c.b16 %v423, %v422
  %v504 = vpack.c.b16 %v425, %v424
  %v505 = vpack.c.b16 %v427, %v426
  %v506 = vpack.c.b16 %v429, %v428
  %v507 = vpack.c.b16 %v431, %v430
  %v508 = vpack.c.b16 %v433, %v432
  %v509 = vpack.c.b16 %v435, %v434
  %v510 = vpack.c.b16 %v437, %v436
  %v511 = vpack.c.b16 %v439, %v438
  %v512 = vpack.c.b16 %v441, %v440
  %v513 = vpack.c.b16 %v443, %v442
  %v514 = vpack.c.b16 %v445, %v444
  %v515 = vpack.c.b16 %v447, %v446
  %v516 = vpack.c.b16 %v449, %v448
  %v517 = vpack.c.b16 %v451, %v450
  %v518 = vpack.c.b16 %v453, %v452
  %v519 = vpack.c.b16 %v455, %v454
  %v520 = vpack.c.b16 %v457, %v456
  %v521 = vpack.c.b16 %v459, %v458
  %v522 = vpack.c.b16 %v461, %v460
  %v523 = vpack.c.b16 %v463, %v462
  %v524 = vpack.c.b16 %v465, %v464
  %v525 = vpack.c.b16 %v467, %v466
  %v526 = vpack.c.b16 %v469, %v468
  %v527 = vpack.c.b16 %v471, %v470
  %v528 = vpack.c.b16 %v473, %v472
  %v529 = vpack.c.b16 %v475, %v474
  %v530 = vpack.c.b16 %v477, %v476
  %v531 = vpack.c.b16 %v479, %v478
  %v532 = vpack.c.b16 %v481, %v480
  %v533 = vpack.c.b16 %v483, %v482
  %vm584 = vcmask 261120
  %v586 = vsel %vm584, %v238, 0
  %v589 = vsel %vm584, %v245, 0
  %v592 = vsel %vm584, %v252, 0
  %v595 = vsel %vm584, %v259, 0
  %597 = vmatprep.subr.bf16.mxu0 0
  %598 = vmatpush1.bf16.msra.mxu0 %v491
  %599 = vmatprep.subr.bf16.mxu0 0
  %600 = vmatpush1.bf16.msra.mxu0 %v490
  %601 = vmatprep.subr.bf16.mxu0 0
  %602 = vmatpush1.bf16.msra.mxu0 %v489
  %603 = vmatprep.subr.bf16.mxu0 0
  %604 = vmatpush1.bf16.msra.mxu0 %v488
  %605 = vmatprep.subr.bf16.mxu0 0
  %606 = vmatpush1.bf16.msra.mxu0 %v487
  %607 = vmatprep.subr.bf16.mxu0 0
  %608 = vmatpush1.bf16.msra.mxu0 %v486
  %609 = vmatprep.subr.bf16.mxu0 0
  %610 = vmatpush1.bf16.msra.mxu0 %v485
  %611 = vmatprep.subr.bf16.mxu0 0
  %612 = vmatpush1.bf16.msra.mxu0 %v484
  %613 = vmatprep.subr.bf16.mxu0 0
  %614 = vmatpush2.bf16.msra.mxu0 %v499
  %615 = vmatprep.subr.bf16.mxu0 0
  %616 = vmatpush2.bf16.msra.mxu0 %v498
  %617 = vmatprep.subr.bf16.mxu0 0
  %618 = vmatpush2.bf16.msra.mxu0 %v497
  %619 = vmatprep.subr.bf16.mxu0 0
  %620 = vmatpush2.bf16.msra.mxu0 %v496
  %621 = vmatprep.subr.bf16.mxu0 0
  %622 = vmatpush2.bf16.msra.mxu0 %v495
  %623 = vmatprep.subr.bf16.mxu0 0
  %624 = vmatpush2.bf16.msra.mxu0 %v494
  %625 = vmatprep.subr.bf16.mxu0 0
  %626 = vmatpush2.bf16.msra.mxu0 %v493
  %627 = vmatprep.subr.bf16.mxu0 0
  %628 = vmatpush2.bf16.msra.mxu0 %v492
  %629 = vmatprep.mubr.bf16.mxu0 %v233
  %630 = vmatmul.mubr.bf16.gmra.mxu0 %v232
  %v631 = vpop.f32.mrf.mxu0
  %v632 = vadd.f32 0.0, %v631
  %v633 = vpop.f32.mrf.mxu0
  %v634 = vpop.f32.mrf.mxu0
  %v635 = vadd.f32 0.0, %v634
  %v636 = vpop.f32.mrf.mxu0
  %637 = vmatprep.mubr.bf16.mxu0 %v240
  %638 = vmatmul.mubr.bf16.gmra.mxu0 %v239
  %v639 = vpop.f32.mrf.mxu0
  %v640 = vadd.f32 0.0, %v639
  %v641 = vpop.f32.mrf.mxu0
  %v642 = vpop.f32.mrf.mxu0
  %v643 = vadd.f32 0.0, %v642
  %v644 = vpop.f32.mrf.mxu0
  %645 = vmatprep.mubr.bf16.mxu0 %v247
  %646 = vmatmul.mubr.bf16.gmra.mxu0 %v246
  %v647 = vpop.f32.mrf.mxu0
  %v648 = vadd.f32 0.0, %v647
  %v649 = vpop.f32.mrf.mxu0
  %v650 = vpop.f32.mrf.mxu0
  %v651 = vadd.f32 0.0, %v650
  %v652 = vpop.f32.mrf.mxu0
  %653 = vmatprep.mubr.bf16.mxu0 %v254
  %654 = vmatmul.mubr.bf16.gmra.mxu0 %v253
  %v655 = vpop.f32.mrf.mxu0
  %v656 = vadd.f32 0.0, %v655
  %v657 = vpop.f32.mrf.mxu0
  %v658 = vpop.f32.mrf.mxu0
  %v659 = vadd.f32 0.0, %v658
  %v660 = vpop.f32.mrf.mxu0
  %661 = vdwg.mxu0
  %662 = vmatprep.subr.bf16.mxu0 0
  %663 = vmatpush1.bf16.msra.mxu0 %v507
  %664 = vmatprep.subr.bf16.mxu0 0
  %665 = vmatpush1.bf16.msra.mxu0 %v506
  %666 = vmatprep.subr.bf16.mxu0 0
  %667 = vmatpush1.bf16.msra.mxu0 %v505
  %668 = vmatprep.subr.bf16.mxu0 0
  %669 = vmatpush1.bf16.msra.mxu0 %v504
  %670 = vmatprep.subr.bf16.mxu0 0
  %671 = vmatpush1.bf16.msra.mxu0 %v503
  %672 = vmatprep.subr.bf16.mxu0 0
  %673 = vmatpush1.bf16.msra.mxu0 %v502
  %674 = vmatprep.subr.bf16.mxu0 0
  %675 = vmatpush1.bf16.msra.mxu0 %v501
  %676 = vmatprep.subr.bf16.mxu0 0
  %677 = vmatpush1.bf16.msra.mxu0 %v500
  %678 = vmatprep.subr.bf16.mxu0 0
  %679 = vmatpush2.bf16.msra.mxu0 %v515
  %680 = vmatprep.subr.bf16.mxu0 0
  %681 = vmatpush2.bf16.msra.mxu0 %v514
  %682 = vmatprep.subr.bf16.mxu0 0
  %683 = vmatpush2.bf16.msra.mxu0 %v513
  %684 = vmatprep.subr.bf16.mxu0 0
  %685 = vmatpush2.bf16.msra.mxu0 %v512
  %686 = vmatprep.subr.bf16.mxu0 0
  %687 = vmatpush2.bf16.msra.mxu0 %v511
  %688 = vmatprep.subr.bf16.mxu0 0
  %689 = vmatpush2.bf16.msra.mxu0 %v510
  %690 = vmatprep.subr.bf16.mxu0 0
  %691 = vmatpush2.bf16.msra.mxu0 %v509
  %692 = vmatprep.subr.bf16.mxu0 0
  %693 = vmatpush2.bf16.msra.mxu0 %v508
  %694 = vmatprep.mubr.bf16.mxu0 %v235
  %695 = vmatmul.mubr.bf16.gmra.mxu0 %v234
  %v696 = vpop.f32.mrf.mxu0
  %v697 = vadd.f32 %v632, %v696
  %v698 = vpop.f32.mrf.mxu0
  %v699 = vpop.f32.mrf.mxu0
  %v700 = vadd.f32 %v635, %v699
  %v701 = vpop.f32.mrf.mxu0
  %702 = vmatprep.mubr.bf16.mxu0 %v242
  %703 = vmatmul.mubr.bf16.gmra.mxu0 %v241
  %v704 = vpop.f32.mrf.mxu0
  %v705 = vadd.f32 %v640, %v704
  %v706 = vpop.f32.mrf.mxu0
  %v707 = vpop.f32.mrf.mxu0
  %v708 = vadd.f32 %v643, %v707
  %v709 = vpop.f32.mrf.mxu0
  %710 = vmatprep.mubr.bf16.mxu0 %v249
  %711 = vmatmul.mubr.bf16.gmra.mxu0 %v248
  %v712 = vpop.f32.mrf.mxu0
  %v713 = vadd.f32 %v648, %v712
  %v714 = vpop.f32.mrf.mxu0
  %v715 = vpop.f32.mrf.mxu0
  %v716 = vadd.f32 %v651, %v715
  %v717 = vpop.f32.mrf.mxu0
  %718 = vmatprep.mubr.bf16.mxu0 %v256
  %719 = vmatmul.mubr.bf16.gmra.mxu0 %v255
  %v720 = vpop.f32.mrf.mxu0
  %v721 = vadd.f32 %v656, %v720
  %v722 = vpop.f32.mrf.mxu0
  %v723 = vpop.f32.mrf.mxu0
  %v724 = vadd.f32 %v659, %v723
  %v725 = vpop.f32.mrf.mxu0
  %726 = vdwg.mxu0
  %727 = vmatprep.subr.bf16.mxu0 0
  %728 = vmatpush1.bf16.msra.mxu0 %v523
  %729 = vmatprep.subr.bf16.mxu0 0
  %730 = vmatpush1.bf16.msra.mxu0 %v522
  %731 = vmatprep.subr.bf16.mxu0 0
  %732 = vmatpush1.bf16.msra.mxu0 %v521
  %733 = vmatprep.subr.bf16.mxu0 0
  %734 = vmatpush1.bf16.msra.mxu0 %v520
  %735 = vmatprep.subr.bf16.mxu0 0
  %736 = vmatpush1.bf16.msra.mxu0 %v519
  %737 = vmatprep.subr.bf16.mxu0 0
  %738 = vmatpush1.bf16.msra.mxu0 %v518
  %739 = vmatprep.subr.bf16.mxu0 0
  %740 = vmatpush1.bf16.msra.mxu0 %v517
  %741 = vmatprep.subr.bf16.mxu0 0
  %742 = vmatpush1.bf16.msra.mxu0 %v516
  %743 = vmatprep.subr.bf16.mxu0 0
  %744 = vmatpush2.bf16.msra.mxu0 %v531
  %745 = vmatprep.subr.bf16.mxu0 0
  %746 = vmatpush2.bf16.msra.mxu0 %v530
  %747 = vmatprep.subr.bf16.mxu0 0
  %748 = vmatpush2.bf16.msra.mxu0 %v529
  %749 = vmatprep.subr.bf16.mxu0 0
  %750 = vmatpush2.bf16.msra.mxu0 %v528
  %751 = vmatprep.subr.bf16.mxu0 0
  %752 = vmatpush2.bf16.msra.mxu0 %v527
  %753 = vmatprep.subr.bf16.mxu0 0
  %754 = vmatpush2.bf16.msra.mxu0 %v526
  %755 = vmatprep.subr.bf16.mxu0 0
  %756 = vmatpush2.bf16.msra.mxu0 %v525
  %757 = vmatprep.subr.bf16.mxu0 0
  %758 = vmatpush2.bf16.msra.mxu0 %v524
  %759 = vmatprep.mubr.bf16.mxu0 %v237
  %760 = vmatmul.mubr.bf16.gmra.mxu0 %v236
  %v761 = vpop.f32.mrf.mxu0
  %v762 = vadd.f32 %v697, %v761
  %v763 = vpop.f32.mrf.mxu0
  %v764 = vpop.f32.mrf.mxu0
  %v765 = vadd.f32 %v700, %v764
  %v766 = vpop.f32.mrf.mxu0
  %767 = vmatprep.mubr.bf16.mxu0 %v244
  %768 = vmatmul.mubr.bf16.gmra.mxu0 %v243
  %v769 = vpop.f32.mrf.mxu0
  %v770 = vadd.f32 %v705, %v769
  %v771 = vpop.f32.mrf.mxu0
  %v772 = vpop.f32.mrf.mxu0
  %v773 = vadd.f32 %v708, %v772
  %v774 = vpop.f32.mrf.mxu0
  %775 = vmatprep.mubr.bf16.mxu0 %v251
  %776 = vmatmul.mubr.bf16.gmra.mxu0 %v250
  %v777 = vpop.f32.mrf.mxu0
  %v778 = vadd.f32 %v713, %v777
  %v779 = vpop.f32.mrf.mxu0
  %v780 = vpop.f32.mrf.mxu0
  %v781 = vadd.f32 %v716, %v780
  %v782 = vpop.f32.mrf.mxu0
  %783 = vmatprep.mubr.bf16.mxu0 %v258
  %784 = vmatmul.mubr.bf16.gmra.mxu0 %v257
  %v785 = vpop.f32.mrf.mxu0
  %v786 = vadd.f32 %v721, %v785
  %v787 = vpop.f32.mrf.mxu0
  %v788 = vpop.f32.mrf.mxu0
  %v789 = vadd.f32 %v724, %v788
  %v790 = vpop.f32.mrf.mxu0
  %791 = vdwg.mxu0
  %792 = vmatprep.subr.bf16.mxu0 0
  %793 = vmatpush1.bf16.msra.mxu0 0
  %794 = vmatprep.subr.bf16.mxu0 0
  %795 = vmatpush1.bf16.msra.mxu0 0
  %796 = vmatprep.subr.bf16.mxu0 0
  %797 = vmatpush1.bf16.msra.mxu0 0
  %798 = vmatprep.subr.bf16.mxu0 0
  %799 = vmatpush1.bf16.msra.mxu0 0
  %800 = vmatprep.subr.bf16.mxu0 0
  %801 = vmatpush1.bf16.msra.mxu0 0
  %802 = vmatprep.subr.bf16.mxu0 0
  %803 = vmatpush1.bf16.msra.mxu0 0
  %804 = vmatprep.subr.bf16.mxu0 0
  %805 = vmatpush1.bf16.msra.mxu0 %v533
  %806 = vmatprep.subr.bf16.mxu0 0
  %807 = vmatpush1.bf16.msra.mxu0 %v532
  %808 = vmatprep.subr.bf16.mxu0 0
  %809 = vmatpush2.bf16.msra.mxu0 0
  %810 = vmatprep.subr.bf16.mxu0 0
  %811 = vmatpush2.bf16.msra.mxu0 0
  %812 = vmatprep.subr.bf16.mxu0 0
  %813 = vmatpush2.bf16.msra.mxu0 0
  %814 = vmatprep.subr.bf16.mxu0 0
  %815 = vmatpush2.bf16.msra.mxu0 0
  %816 = vmatprep.subr.bf16.mxu0 0
  %817 = vmatpush2.bf16.msra.mxu0 0
  %818 = vmatprep.subr.bf16.mxu0 0
  %819 = vmatpush2.bf16.msra.mxu0 0
  %820 = vmatprep.subr.bf16.mxu0 0
  %821 = vmatpush2.bf16.msra.mxu0 0
  %822 = vmatprep.subr.bf16.mxu0 0
  %823 = vmatpush2.bf16.msra.mxu0 0
  %824 = vmatprep.mubr.bf16.mxu0 0
  %825 = vmatmul.mubr.bf16.gmra.mxu0 %v586
  %v826 = vpop.f32.mrf.mxu0
  %v827 = vadd.f32 %v762, %v826
  %v828 = vpop.f32.mrf.mxu0
  %v829 = vpop.f32.mrf.mxu0
  %v830 = vadd.f32 %v765, %v829
  %v831 = vpop.f32.mrf.mxu0
  %832 = vmatprep.mubr.bf16.mxu0 0
  %833 = vmatmul.mubr.bf16.gmra.mxu0 %v589
  %v834 = vpop.f32.mrf.mxu0
  %v835 = vadd.f32 %v770, %v834
  %v836 = vpop.f32.mrf.mxu0
  %v837 = vpop.f32.mrf.mxu0
  %v838 = vadd.f32 %v773, %v837
  %v839 = vpop.f32.mrf.mxu0
  %840 = vmatprep.mubr.bf16.mxu0 0
  %841 = vmatmul.mubr.bf16.gmra.mxu0 %v592
  %v842 = vpop.f32.mrf.mxu0
  %v843 = vadd.f32 %v778, %v842
  %v844 = vpop.f32.mrf.mxu0
  %v845 = vpop.f32.mrf.mxu0
  %v846 = vadd.f32 %v781, %v845
  %v847 = vpop.f32.mrf.mxu0
  %848 = vmatprep.mubr.bf16.mxu0 0
  %849 = vmatmul.mubr.bf16.gmra.mxu0 %v595
  %v850 = vpop.f32.mrf.mxu0
  %v851 = vadd.f32 %v786, %v850
  %v852 = vpop.f32.mrf.mxu0
  %v853 = vpop.f32.mrf.mxu0
  %v854 = vadd.f32 %v789, %v853
  %v855 = vpop.f32.mrf.mxu0
  %856 = vdwg.mxu0
  %v857 = vmul.f32 %v827, %v843
  %v858 = vmul.f32 %v830, %v846
  %v859 = vmul.f32 %v835, %v851
  %v860 = vmul.f32 %v838, %v854
  %861 = vst [vmem:[%s2] sm:$0xff] %v857
  %862 = vst [vmem:[%s2 + $0x8] sm:$0xff] %v858
  %863 = vst [vmem:[%s2 + $0x10] sm:$0xff] %v859
  %864 = vst [vmem:[%s2 + $0x18] sm:$0xff] %v860
  // Predicated region
  $region10: #{bilinear_cnn_forward.9} parent=0 // pred_check
    _
  $region11: #{bilinear_cnn_forward.9} parent=0 // pred_check_branch
    %866 = sbr.rel (0) target = $region13
  $region12: #{bilinear_cnn_forward.9} parent=0 // pred_region
    _
  $region13: #{bilinear_cnn_forward.9} parent=0 // pred_fallthru
    _
  // Predicated region
  $region14: #{bilinear_cnn_forward.9} parent=0 // pred_check
    _
  $region15: #{bilinear_cnn_forward.9} parent=0 // pred_check_branch
    %868 = sbr.rel (0) target = $region17
  $region16: #{bilinear_cnn_forward.9} parent=0 // pred_region
    _
  $region17: #{bilinear_cnn_forward.9} parent=0 // pred_fallthru
    _

// kernel: bilinear_cnn_forward.11
$region0: #{bilinear_cnn_forward.11}
  #allocation0 [shape = 'u32[]', space=smem, size = 0x4, offset = 0x4, fixed_abs, tag = 'smem constant byte address 0x4 - core index']
  #allocation1 [shape = 'u32[144,128]{1,0:T(1,128)}', space=vmem, size = 0x12000, scoped, tag = 'internal scratch']
  %s0 = inlined_call_operand.vmem [shape: bf16[8,128], index: 0, kind: input, shape index: {}]
  %s1 = inlined_call_operand.vmem [shape: bf16[128,512], index: 1, kind: input, shape index: {}]
  %s2 = inlined_call_operand.vmem [shape: bf16[256,1024], index: 2, kind: input, shape index: {}]
  %s3 = inlined_call_operand.vmem [shape: bf16[512,128], index: 3, kind: input, shape index: {}]
  %s4 = inlined_call_operand.vmem [shape: f32[8,128], index: 4, kind: output, shape index: {}]
  %s5 = sld [smem:[#allocation0]]
  $region26: #{bilinear_cnn_forward.11} parent=0
    _
  %s7 = ssub.s32 1, %s5
  %s8 = scalar_select 0, %s7, %s5
  // Predicated region
  $region2: #{bilinear_cnn_forward.11} parent=0 // pred_check
    _
  $region3: #{bilinear_cnn_forward.11} parent=0 // pred_check_branch
    %10 = sbr.rel (0) target = $region5
  $region4: #{bilinear_cnn_forward.11} parent=0 // pred_region
    _
  $region5: #{bilinear_cnn_forward.11} parent=0 // pred_fallthru
    _
  // Predicated region
  $region6: #{bilinear_cnn_forward.11} parent=0 // pred_check
    _
  $region7: #{bilinear_cnn_forward.11} parent=0 // pred_check_branch
    %12 = sbr.rel (0) target = $region9
  $region8: #{bilinear_cnn_forward.11} parent=0 // pred_region
    _
  $region9: #{bilinear_cnn_forward.11} parent=0 // pred_fallthru
    _
  // Predicated region
  $region10: #{bilinear_cnn_forward.11} parent=0 // pred_check
    _
  $region11: #{bilinear_cnn_forward.11} parent=0 // pred_check_branch
    %14 = sbr.rel (0) target = $region13
  $region12: #{bilinear_cnn_forward.11} parent=0 // pred_region
    _
  $region13: #{bilinear_cnn_forward.11} parent=0 // pred_fallthru
    _
  // Predicated region
  $region14: #{bilinear_cnn_forward.11} parent=0 // pred_check
    _
  $region15: #{bilinear_cnn_forward.11} parent=0 // pred_check_branch
    %16 = sbr.rel (0) target = $region17
  $region16: #{bilinear_cnn_forward.11} parent=0 // pred_region
    _
  $region17: #{bilinear_cnn_forward.11} parent=0 // pred_fallthru
    _
  %v18 = vld [vmem:[%s0] sm:$0xf]
  %v19 = vld [vmem:[%s1] sm:$0xff]
  %v20 = vld [vmem:[%s1 + $0x8] sm:$0xff]
  %v21 = vld [vmem:[%s1 + $0x10] sm:$0xff]
  %v22 = vld [vmem:[%s1 + $0x18] sm:$0xff]
  %v23 = vld [vmem:[%s1 + $0x20] sm:$0xff]
  %v24 = vld [vmem:[%s1 + $0x28] sm:$0xff]
  %v25 = vld [vmem:[%s1 + $0x30] sm:$0xff]
  %v26 = vld [vmem:[%s1 + $0x38] sm:$0xff]
  %v27 = vld [vmem:[%s1 + $0x40] sm:$0xff]
  %v28 = vld [vmem:[%s1 + $0x48] sm:$0xff]
  %v29 = vld [vmem:[%s1 + $0x50] sm:$0xff]
  %v30 = vld [vmem:[%s1 + $0x58] sm:$0xff]
  %v31 = vld [vmem:[%s1 + $0x60] sm:$0xff]
  %v32 = vld [vmem:[%s1 + $0x68] sm:$0xff]
  %v33 = vld [vmem:[%s1 + $0x70] sm:$0xff]
  %v34 = vld [vmem:[%s1 + $0x78] sm:$0xff]
  %v35 = vld [vmem:[%s1 + $0x80] sm:$0xff]
  %v36 = vld [vmem:[%s1 + $0x88] sm:$0xff]
  %v37 = vld [vmem:[%s1 + $0x90] sm:$0xff]
  %v38 = vld [vmem:[%s1 + $0x98] sm:$0xff]
  %v39 = vld [vmem:[%s1 + $0xa0] sm:$0xff]
  %v40 = vld [vmem:[%s1 + $0xa8] sm:$0xff]
  %v41 = vld [vmem:[%s1 + $0xb0] sm:$0xff]
  %v42 = vld [vmem:[%s1 + $0xb8] sm:$0xff]
  %v43 = vld [vmem:[%s1 + $0xc0] sm:$0xff]
  %v44 = vld [vmem:[%s1 + $0xc8] sm:$0xff]
  %v45 = vld [vmem:[%s1 + $0xd0] sm:$0xff]
  %v46 = vld [vmem:[%s1 + $0xd8] sm:$0xff]
  %v47 = vld [vmem:[%s1 + $0xe0] sm:$0xff]
  %v48 = vld [vmem:[%s1 + $0xe8] sm:$0xff]
  %v49 = vld [vmem:[%s1 + $0xf0] sm:$0xff]
  %v50 = vld [vmem:[%s1 + $0xf8] sm:$0xff]
  %v83 = vunpack.c.l.b16 %v19
  %v84 = vunpack.c.h.b16 %v19
  %v85 = vunpack.c.l.b16 %v20
  %v86 = vunpack.c.h.b16 %v20
  %v87 = vunpack.c.l.b16 %v21
  %v88 = vunpack.c.h.b16 %v21
  %v89 = vunpack.c.l.b16 %v22
  %v90 = vunpack.c.h.b16 %v22
  %v91 = vunpack.c.l.b16 %v23
  %v92 = vunpack.c.h.b16 %v23
  %v93 = vunpack.c.l.b16 %v24
  %v94 = vunpack.c.h.b16 %v24
  %v95 = vunpack.c.l.b16 %v25
  %v96 = vunpack.c.h.b16 %v25
  %v97 = vunpack.c.l.b16 %v26
  %v98 = vunpack.c.h.b16 %v26
  %v99 = vunpack.c.l.b16 %v27
  %v100 = vunpack.c.h.b16 %v27
  %v101 = vunpack.c.l.b16 %v28
  %v102 = vunpack.c.h.b16 %v28
  %v103 = vunpack.c.l.b16 %v29
  %v104 = vunpack.c.h.b16 %v29
  %v105 = vunpack.c.l.b16 %v30
  %v106 = vunpack.c.h.b16 %v30
  %v107 = vunpack.c.l.b16 %v31
  %v108 = vunpack.c.h.b16 %v31
  %v109 = vunpack.c.l.b16 %v32
  %v110 = vunpack.c.h.b16 %v32
  %v111 = vunpack.c.l.b16 %v33
  %v112 = vunpack.c.h.b16 %v33
  %v113 = vunpack.c.l.b16 %v34
  %v114 = vunpack.c.h.b16 %v34
  %v115 = vunpack.c.l.b16 %v35
  %v116 = vunpack.c.h.b16 %v35
  %v117 = vunpack.c.l.b16 %v36
  %v118 = vunpack.c.h.b16 %v36
  %v119 = vunpack.c.l.b16 %v37
  %v120 = vunpack.c.h.b16 %v37
  %v121 = vunpack.c.l.b16 %v38
  %v122 = vunpack.c.h.b16 %v38
  %v123 = vunpack.c.l.b16 %v39
  %v124 = vunpack.c.h.b16 %v39
  %v125 = vunpack.c.l.b16 %v40
  %v126 = vunpack.c.h.b16 %v40
  %v127 = vunpack.c.l.b16 %v41
  %v128 = vunpack.c.h.b16 %v41
  %v129 = vunpack.c.l.b16 %v42
  %v130 = vunpack.c.h.b16 %v42
  %v131 = vunpack.c.l.b16 %v43
  %v132 = vunpack.c.h.b16 %v43
  %v133 = vunpack.c.l.b16 %v44
  %v134 = vunpack.c.h.b16 %v44
  %v135 = vunpack.c.l.b16 %v45
  %v136 = vunpack.c.h.b16 %v45
  %v137 = vunpack.c.l.b16 %v46
  %v138 = vunpack.c.h.b16 %v46
  %v139 = vunpack.c.l.b16 %v47
  %v140 = vunpack.c.h.b16 %v47
  %v141 = vunpack.c.l.b16 %v48
  %v142 = vunpack.c.h.b16 %v48
  %v143 = vunpack.c.l.b16 %v49
  %v144 = vunpack.c.h.b16 %v49
  %v145 = vunpack.c.l.b16 %v50
  %v146 = vunpack.c.h.b16 %v50
  %v147 = vpack.c.b16 %v87, %v83
  %v148 = vpack.c.b16 %v88, %v84
  %v149 = vpack.c.b16 %v89, %v85
  %v150 = vpack.c.b16 %v90, %v86
  %v151 = vpack.c.b16 %v95, %v91
  %v152 = vpack.c.b16 %v96, %v92
  %v153 = vpack.c.b16 %v97, %v93
  %v154 = vpack.c.b16 %v98, %v94
  %v155 = vpack.c.b16 %v103, %v99
  %v156 = vpack.c.b16 %v104, %v100
  %v157 = vpack.c.b16 %v105, %v101
  %v158 = vpack.c.b16 %v106, %v102
  %v159 = vpack.c.b16 %v111, %v107
  %v160 = vpack.c.b16 %v112, %v108
  %v161 = vpack.c.b16 %v113, %v109
  %v162 = vpack.c.b16 %v114, %v110
  %v163 = vpack.c.b16 %v119, %v115
  %v164 = vpack.c.b16 %v120, %v116
  %v165 = vpack.c.b16 %v121, %v117
  %v166 = vpack.c.b16 %v122, %v118
  %v167 = vpack.c.b16 %v127, %v123
  %v168 = vpack.c.b16 %v128, %v124
  %v169 = vpack.c.b16 %v129, %v125
  %v170 = vpack.c.b16 %v130, %v126
  %v171 = vpack.c.b16 %v135, %v131
  %v172 = vpack.c.b16 %v136, %v132
  %v173 = vpack.c.b16 %v137, %v133
  %v174 = vpack.c.b16 %v138, %v134
  %v175 = vpack.c.b16 %v143, %v139
  %v176 = vpack.c.b16 %v144, %v140
  %v177 = vpack.c.b16 %v145, %v141
  %v178 = vpack.c.b16 %v146, %v142
  %211 = vmatprep.subr.bf16.mxu0 %v176
  %212 = vmatpush1.bf16.msra.mxu0 %v175
  %213 = vmatprep.subr.bf16.mxu0 %v172
  %214 = vmatpush1.bf16.msra.mxu0 %v171
  %215 = vmatprep.subr.bf16.mxu0 %v168
  %216 = vmatpush1.bf16.msra.mxu0 %v167
  %217 = vmatprep.subr.bf16.mxu0 %v164
  %218 = vmatpush1.bf16.msra.mxu0 %v163
  %219 = vmatprep.subr.bf16.mxu0 %v160
  %220 = vmatpush1.bf16.msra.mxu0 %v159
  %221 = vmatprep.subr.bf16.mxu0 %v156
  %222 = vmatpush1.bf16.msra.mxu0 %v155
  %223 = vmatprep.subr.bf16.mxu0 %v152
  %224 = vmatpush1.bf16.msra.mxu0 %v151
  %225 = vmatprep.subr.bf16.mxu0 %v148
  %226 = vmatpush1.bf16.msra.mxu0 %v147
  %227 = vmatprep.subr.bf16.mxu0 0
  %228 = vmatpush2.bf16.msra.mxu0 0
  %229 = vmatprep.subr.bf16.mxu0 0
  %230 = vmatpush2.bf16.msra.mxu0 0
  %231 = vmatprep.subr.bf16.mxu0 0
  %232 = vmatpush2.bf16.msra.mxu0 0
  %233 = vmatprep.subr.bf16.mxu0 0
  %234 = vmatpush2.bf16.msra.mxu0 0
  %235 = vmatprep.subr.bf16.mxu0 0
  %236 = vmatpush2.bf16.msra.mxu0 0
  %237 = vmatprep.subr.bf16.mxu0 0
  %238 = vmatpush2.bf16.msra.mxu0 0
  %239 = vmatprep.subr.bf16.mxu0 0
  %240 = vmatpush2.bf16.msra.mxu0 0
  %241 = vmatprep.subr.bf16.mxu0 0
  %242 = vmatpush2.bf16.msra.mxu0 0
  %243 = vmatprep.mubr.bf16.mxu0 0
  %244 = vmatmul.mubr.bf16.gmra.mxu0 %v18
  %v245 = vpop.f32.mrf.mxu0
  %v246 = vadd.f32 0.0, %v245
  %v247 = vpop.f32.mrf.mxu0
  %v248 = vadd.f32 0.0, %v247
  %v249 = vpop.f32.mrf.mxu0
  %v250 = vpop.f32.mrf.mxu0
  %251 = vdwg.mxu0
  %252 = vmatprep.subr.bf16.mxu0 %v178
  %253 = vmatpush1.bf16.msra.mxu0 %v177
  %254 = vmatprep.subr.bf16.mxu0 %v174
  %255 = vmatpush1.bf16.msra.mxu0 %v173
  %256 = vmatprep.subr.bf16.mxu0 %v170
  %257 = vmatpush1.bf16.msra.mxu0 %v169
  %258 = vmatprep.subr.bf16.mxu0 %v166
  %259 = vmatpush1.bf16.msra.mxu0 %v165
  %260 = vmatprep.subr.bf16.mxu0 %v162
  %261 = vmatpush1.bf16.msra.mxu0 %v161
  %262 = vmatprep.subr.bf16.mxu0 %v158
  %263 = vmatpush1.bf16.msra.mxu0 %v157
  %264 = vmatprep.subr.bf16.mxu0 %v154
  %265 = vmatpush1.bf16.msra.mxu0 %v153
  %266 = vmatprep.subr.bf16.mxu0 %v150
  %267 = vmatpush1.bf16.msra.mxu0 %v149
  %268 = vmatprep.subr.bf16.mxu0 0
  %269 = vmatpush2.bf16.msra.mxu0 0
  %270 = vmatprep.subr.bf16.mxu0 0
  %271 = vmatpush2.bf16.msra.mxu0 0
  %272 = vmatprep.subr.bf16.mxu0 0
  %273 = vmatpush2.bf16.msra.mxu0 0
  %274 = vmatprep.subr.bf16.mxu0 0
  %275 = vmatpush2.bf16.msra.mxu0 0
  %276 = vmatprep.subr.bf16.mxu0 0
  %277 = vmatpush2.bf16.msra.mxu0 0
  %278 = vmatprep.subr.bf16.mxu0 0
  %279 = vmatpush2.bf16.msra.mxu0 0
  %280 = vmatprep.subr.bf16.mxu0 0
  %281 = vmatpush2.bf16.msra.mxu0 0
  %282 = vmatprep.subr.bf16.mxu0 0
  %283 = vmatpush2.bf16.msra.mxu0 0
  %284 = vmatprep.mubr.bf16.mxu0 0
  %285 = vmatmul.mubr.bf16.gmra.mxu0 %v18
  %v286 = vpop.f32.mrf.mxu0
  %v287 = vadd.f32 0.0, %v286
  %v288 = vpop.f32.mrf.mxu0
  %v289 = vadd.f32 0.0, %v288
  %v290 = vpop.f32.mrf.mxu0
  %v291 = vpop.f32.mrf.mxu0
  %292 = vdwg.mxu0
  %v293 = vmul.f32 %v246, %v287
  %v294 = vmul.f32 %v248, %v289
  %v295 = vpack.c.bf16 %v293, %v293
  %v296 = vpack.c.bf16 %v294, %v294
  %v297 = vld [vmem:[%s2] sm:$0xff]
  %v298 = vld [vmem:[%s2 + $0x8] sm:$0xff]
  %v299 = vld [vmem:[%s2 + $0x10] sm:$0xff]
  %v300 = vld [vmem:[%s2 + $0x18] sm:$0xff]
  %v301 = vld [vmem:[%s2 + $0x20] sm:$0xff]
  %v302 = vld [vmem:[%s2 + $0x28] sm:$0xff]
  %v303 = vld [vmem:[%s2 + $0x30] sm:$0xff]
  %v304 = vld [vmem:[%s2 + $0x38] sm:$0xff]
  %v305 = vld [vmem:[%s2 + $0x40] sm:$0xff]
  %v306 = vld [vmem:[%s2 + $0x48] sm:$0xff]
  %v307 = vld [vmem:[%s2 + $0x50] sm:$0xff]
  %v308 = vld [vmem:[%s2 + $0x58] sm:$0xff]
  %v309 = vld [vmem:[%s2 + $0x60] sm:$0xff]
  %v310 = vld [vmem:[%s2 + $0x68] sm:$0xff]
  %v311 = vld [vmem:[%s2 + $0x70] sm:$0xff]
  %v312 = vld [vmem:[%s2 + $0x78] sm:$0xff]
  %v313 = vld [vmem:[%s2 + $0x80] sm:$0xff]
  %v314 = vld [vmem:[%s2 + $0x88] sm:$0xff]
  %v315 = vld [vmem:[%s2 + $0x90] sm:$0xff]
  %v316 = vld [vmem:[%s2 + $0x98] sm:$0xff]
  %v317 = vld [vmem:[%s2 + $0xa0] sm:$0xff]
  %v318 = vld [vmem:[%s2 + $0xa8] sm:$0xff]
  %v319 = vld [vmem:[%s2 + $0xb0] sm:$0xff]
  %v320 = vld [vmem:[%s2 + $0xb8] sm:$0xff]
  %v321 = vld [vmem:[%s2 + $0xc0] sm:$0xff]
  %v322 = vld [vmem:[%s2 + $0xc8] sm:$0xff]
  %v323 = vld [vmem:[%s2 + $0xd0] sm:$0xff]
  %v324 = vld [vmem:[%s2 + $0xd8] sm:$0xff]
  %v325 = vld [vmem:[%s2 + $0xe0] sm:$0xff]
  %v326 = vld [vmem:[%s2 + $0xe8] sm:$0xff]
  %v327 = vld [vmem:[%s2 + $0xf0] sm:$0xff]
  %v328 = vld [vmem:[%s2 + $0xf8] sm:$0xff]
  %v329 = vld [vmem:[%s2 + $0x100] sm:$0xff]
  %v330 = vld [vmem:[%s2 + $0x108] sm:$0xff]
  %v331 = vld [vmem:[%s2 + $0x110] sm:$0xff]
  %v332 = vld [vmem:[%s2 + $0x118] sm:$0xff]
  %v333 = vld [vmem:[%s2 + $0x120] sm:$0xff]
  %v334 = vld [vmem:[%s2 + $0x128] sm:$0xff]
  %v335 = vld [vmem:[%s2 + $0x130] sm:$0xff]
  %v336 = vld [vmem:[%s2 + $0x138] sm:$0xff]
  %v337 = vld [vmem:[%s2 + $0x140] sm:$0xff]
  %v338 = vld [vmem:[%s2 + $0x148] sm:$0xff]
  %v339 = vld [vmem:[%s2 + $0x150] sm:$0xff]
  %v340 = vld [vmem:[%s2 + $0x158] sm:$0xff]
  %v341 = vld [vmem:[%s2 + $0x160] sm:$0xff]
  %v342 = vld [vmem:[%s2 + $0x168] sm:$0xff]
  %v343 = vld [vmem:[%s2 + $0x170] sm:$0xff]
  %v344 = vld [vmem:[%s2 + $0x178] sm:$0xff]
  %v345 = vld [vmem:[%s2 + $0x180] sm:$0xff]
  %v346 = vld [vmem:[%s2 + $0x188] sm:$0xff]
  %v347 = vld [vmem:[%s2 + $0x190] sm:$0xff]
  %v348 = vld [vmem:[%s2 + $0x198] sm:$0xff]
  %v349 = vld [vmem:[%s2 + $0x1a0] sm:$0xff]
  %v350 = vld [vmem:[%s2 + $0x1a8] sm:$0xff]
  %v351 = vld [vmem:[%s2 + $0x1b0] sm:$0xff]
  %v352 = vld [vmem:[%s2 + $0x1b8] sm:$0xff]
  %v353 = vld [vmem:[%s2 + $0x1c0] sm:$0xff]
  %v354 = vld [vmem:[%s2 + $0x1c8] sm:$0xff]
  %v355 = vld [vmem:[%s2 + $0x1d0] sm:$0xff]
  %v356 = vld [vmem:[%s2 + $0x1d8] sm:$0xff]
  %v357 = vld [vmem:[%s2 + $0x1e0] sm:$0xff]
  %v358 = vld [vmem:[%s2 + $0x1e8] sm:$0xff]
  %v359 = vld [vmem:[%s2 + $0x1f0] sm:$0xff]
  %v360 = vld [vmem:[%s2 + $0x1f8] sm:$0xff]
  %v361 = vld [vmem:[%s2 + $0x200] sm:$0xff]
  %v362 = vld [vmem:[%s2 + $0x208] sm:$0xff]
  %v363 = vld [vmem:[%s2 + $0x210] sm:$0xff]
  %v364 = vld [vmem:[%s2 + $0x218] sm:$0xff]
  %v365 = vld [vmem:[%s2 + $0x220] sm:$0xff]
  %v366 = vld [vmem:[%s2 + $0x228] sm:$0xff]
  %v367 = vld [vmem:[%s2 + $0x230] sm:$0xff]
  %v368 = vld [vmem:[%s2 + $0x238] sm:$0xff]
  %v369 = vld [vmem:[%s2 + $0x240] sm:$0xff]
  %v370 = vld [vmem:[%s2 + $0x248] sm:$0xff]
  %v371 = vld [vmem:[%s2 + $0x250] sm:$0xff]
  %v372 = vld [vmem:[%s2 + $0x258] sm:$0xff]
  %v373 = vld [vmem:[%s2 + $0x260] sm:$0xff]
  %v374 = vld [vmem:[%s2 + $0x268] sm:$0xff]
  %v375 = vld [vmem:[%s2 + $0x270] sm:$0xff]
  %v376 = vld [vmem:[%s2 + $0x278] sm:$0xff]
  %v377 = vld [vmem:[%s2 + $0x280] sm:$0xff]
  %v378 = vld [vmem:[%s2 + $0x288] sm:$0xff]
  %v379 = vld [vmem:[%s2 + $0x290] sm:$0xff]
  %v380 = vld [vmem:[%s2 + $0x298] sm:$0xff]
  %v381 = vld [vmem:[%s2 + $0x2a0] sm:$0xff]
  %v382 = vld [vmem:[%s2 + $0x2a8] sm:$0xff]
  %v383 = vld [vmem:[%s2 + $0x2b0] sm:$0xff]
  %v384 = vld [vmem:[%s2 + $0x2b8] sm:$0xff]
  %v385 = vld [vmem:[%s2 + $0x2c0] sm:$0xff]
  %v386 = vld [vmem:[%s2 + $0x2c8] sm:$0xff]
  %v387 = vld [vmem:[%s2 + $0x2d0] sm:$0xff]
  %v388 = vld [vmem:[%s2 + $0x2d8] sm:$0xff]
  %v389 = vld [vmem:[%s2 + $0x2e0] sm:$0xff]
  %v390 = vld [vmem:[%s2 + $0x2e8] sm:$0xff]
  %v391 = vld [vmem:[%s2 + $0x2f0] sm:$0xff]
  %v392 = vld [vmem:[%s2 + $0x2f8] sm:$0xff]
  %v393 = vld [vmem:[%s2 + $0x300] sm:$0xff]
  %v394 = vld [vmem:[%s2 + $0x308] sm:$0xff]
  %v395 = vld [vmem:[%s2 + $0x310] sm:$0xff]
  %v396 = vld [vmem:[%s2 + $0x318] sm:$0xff]
  %v397 = vld [vmem:[%s2 + $0x320] sm:$0xff]
  %v398 = vld [vmem:[%s2 + $0x328] sm:$0xff]
  %v399 = vld [vmem:[%s2 + $0x330] sm:$0xff]
  %v400 = vld [vmem:[%s2 + $0x338] sm:$0xff]
  %v401 = vld [vmem:[%s2 + $0x340] sm:$0xff]
  %v402 = vld [vmem:[%s2 + $0x348] sm:$0xff]
  %v403 = vld [vmem:[%s2 + $0x350] sm:$0xff]
  %v404 = vld [vmem:[%s2 + $0x358] sm:$0xff]
  %v405 = vld [vmem:[%s2 + $0x360] sm:$0xff]
  %v406 = vld [vmem:[%s2 + $0x368] sm:$0xff]
  %v407 = vld [vmem:[%s2 + $0x370] sm:$0xff]
  %v408 = vld [vmem:[%s2 + $0x378] sm:$0xff]
  %v409 = vld [vmem:[%s2 + $0x380] sm:$0xff]
  %v410 = vld [vmem:[%s2 + $0x388] sm:$0xff]
  %v411 = vld [vmem:[%s2 + $0x390] sm:$0xff]
  %v412 = vld [vmem:[%s2 + $0x398] sm:$0xff]
  %v413 = vld [vmem:[%s2 + $0x3a0] sm:$0xff]
  %v414 = vld [vmem:[%s2 + $0x3a8] sm:$0xff]
  %v415 = vld [vmem:[%s2 + $0x3b0] sm:$0xff]
  %v416 = vld [vmem:[%s2 + $0x3b8] sm:$0xff]
  %v417 = vld [vmem:[%s2 + $0x3c0] sm:$0xff]
  %v418 = vld [vmem:[%s2 + $0x3c8] sm:$0xff]
  %v419 = vld [vmem:[%s2 + $0x3d0] sm:$0xff]
  %v420 = vld [vmem:[%s2 + $0x3d8] sm:$0xff]
  %v421 = vld [vmem:[%s2 + $0x3e0] sm:$0xff]
  %v422 = vld [vmem:[%s2 + $0x3e8] sm:$0xff]
  %v423 = vld [vmem:[%s2 + $0x3f0] sm:$0xff]
  %v424 = vld [vmem:[%s2 + $0x3f8] sm:$0xff]
  %v553 = vunpack.c.l.b16 %v297
  %v554 = vunpack.c.h.b16 %v297
  %v555 = vunpack.c.l.b16 %v298
  %v556 = vunpack.c.h.b16 %v298
  %v557 = vunpack.c.l.b16 %v299
  %v558 = vunpack.c.h.b16 %v299
  %v559 = vunpack.c.l.b16 %v300
  %v560 = vunpack.c.h.b16 %v300
  %v561 = vunpack.c.l.b16 %v301
  %v562 = vunpack.c.h.b16 %v301
  %v563 = vunpack.c.l.b16 %v302
  %v564 = vunpack.c.h.b16 %v302
  %v565 = vunpack.c.l.b16 %v303
  %v566 = vunpack.c.h.b16 %v303
  %v567 = vunpack.c.l.b16 %v304
  %v568 = vunpack.c.h.b16 %v304
  %v569 = vunpack.c.l.b16 %v305
  %v570 = vunpack.c.h.b16 %v305
  %v571 = vunpack.c.l.b16 %v306
  %v572 = vunpack.c.h.b16 %v306
  %v573 = vunpack.c.l.b16 %v307
  %v574 = vunpack.c.h.b16 %v307
  %v575 = vunpack.c.l.b16 %v308
  %v576 = vunpack.c.h.b16 %v308
  %v577 = vunpack.c.l.b16 %v309
  %v578 = vunpack.c.h.b16 %v309
  %v579 = vunpack.c.l.b16 %v310
  %v580 = vunpack.c.h.b16 %v310
  %v581 = vunpack.c.l.b16 %v311
  %v582 = vunpack.c.h.b16 %v311
  %v583 = vunpack.c.l.b16 %v312
  %v584 = vunpack.c.h.b16 %v312
  %v585 = vunpack.c.l.b16 %v313
  %v586 = vunpack.c.h.b16 %v313
  %v587 = vunpack.c.l.b16 %v314
  %v588 = vunpack.c.h.b16 %v314
  %v589 = vunpack.c.l.b16 %v315
  %v590 = vunpack.c.h.b16 %v315
  %v591 = vunpack.c.l.b16 %v316
  %v592 = vunpack.c.h.b16 %v316
  %v593 = vunpack.c.l.b16 %v317
  %v594 = vunpack.c.h.b16 %v317
  %v595 = vunpack.c.l.b16 %v318
  %v596 = vunpack.c.h.b16 %v318
  %v597 = vunpack.c.l.b16 %v319
  %v598 = vunpack.c.h.b16 %v319
  %v599 = vunpack.c.l.b16 %v320
  %v600 = vunpack.c.h.b16 %v320
  %v601 = vunpack.c.l.b16 %v321
  %v602 = vunpack.c.h.b16 %v321
  %v603 = vunpack.c.l.b16 %v322
  %v604 = vunpack.c.h.b16 %v322
  %v605 = vunpack.c.l.b16 %v323
  %v606 = vunpack.c.h.b16 %v323
  %v607 = vunpack.c.l.b16 %v324
  %v608 = vunpack.c.h.b16 %v324
  %v609 = vunpack.c.l.b16 %v325
  %v610 = vunpack.c.h.b16 %v325
  %v611 = vunpack.c.l.b16 %v326
  %v612 = vunpack.c.h.b16 %v326
  %v613 = vunpack.c.l.b16 %v327
  %v614 = vunpack.c.h.b16 %v327
  %v615 = vunpack.c.l.b16 %v328
  %v616 = vunpack.c.h.b16 %v328
  %v617 = vunpack.c.l.b16 %v329
  %v618 = vunpack.c.h.b16 %v329
  %v619 = vunpack.c.l.b16 %v330
  %v620 = vunpack.c.h.b16 %v330
  %v621 = vunpack.c.l.b16 %v331
  %v622 = vunpack.c.h.b16 %v331
  %v623 = vunpack.c.l.b16 %v332
  %v624 = vunpack.c.h.b16 %v332
  %v625 = vunpack.c.l.b16 %v333
  %v626 = vunpack.c.h.b16 %v333
  %v627 = vunpack.c.l.b16 %v334
  %v628 = vunpack.c.h.b16 %v334
  %v629 = vunpack.c.l.b16 %v335
  %v630 = vunpack.c.h.b16 %v335
  %v631 = vunpack.c.l.b16 %v336
  %v632 = vunpack.c.h.b16 %v336
  %v633 = vunpack.c.l.b16 %v337
  %v634 = vunpack.c.h.b16 %v337
  %v635 = vunpack.c.l.b16 %v338
  %v636 = vunpack.c.h.b16 %v338
  %v637 = vunpack.c.l.b16 %v339
  %v638 = vunpack.c.h.b16 %v339
  %v639 = vunpack.c.l.b16 %v340
  %v640 = vunpack.c.h.b16 %v340
  %v641 = vunpack.c.l.b16 %v341
  %v642 = vunpack.c.h.b16 %v341
  %v643 = vunpack.c.l.b16 %v342
  %v644 = vunpack.c.h.b16 %v342
  %v645 = vunpack.c.l.b16 %v343
  %v646 = vunpack.c.h.b16 %v343
  %v647 = vunpack.c.l.b16 %v344
  %v648 = vunpack.c.h.b16 %v344
  %v649 = vunpack.c.l.b16 %v345
  %v650 = vunpack.c.h.b16 %v345
  %v651 = vunpack.c.l.b16 %v346
  %v652 = vunpack.c.h.b16 %v346
  %v653 = vunpack.c.l.b16 %v347
  %v654 = vunpack.c.h.b16 %v347
  %v655 = vunpack.c.l.b16 %v348
  %v656 = vunpack.c.h.b16 %v348
  %v657 = vunpack.c.l.b16 %v349
  %v658 = vunpack.c.h.b16 %v349
  %v659 = vunpack.c.l.b16 %v350
  %v660 = vunpack.c.h.b16 %v350
  %v661 = vunpack.c.l.b16 %v351
  %v662 = vunpack.c.h.b16 %v351
  %v663 = vunpack.c.l.b16 %v352
  %v664 = vunpack.c.h.b16 %v352
  %v665 = vunpack.c.l.b16 %v353
  %v666 = vunpack.c.h.b16 %v353
  %v667 = vunpack.c.l.b16 %v354
  %v668 = vunpack.c.h.b16 %v354
  %v669 = vunpack.c.l.b16 %v355
  %v670 = vunpack.c.h.b16 %v355
  %v671 = vunpack.c.l.b16 %v356
  %v672 = vunpack.c.h.b16 %v356
  %v673 = vunpack.c.l.b16 %v357
  %v674 = vunpack.c.h.b16 %v357
  %v675 = vunpack.c.l.b16 %v358
  %v676 = vunpack.c.h.b16 %v358
  %v677 = vunpack.c.l.b16 %v359
  %v678 = vunpack.c.h.b16 %v359
  %v679 = vunpack.c.l.b16 %v360
  %v680 = vunpack.c.h.b16 %v360
  %v681 = vunpack.c.l.b16 %v361
  %v682 = vunpack.c.h.b16 %v361
  %v683 = vunpack.c.l.b16 %v362
  %v684 = vunpack.c.h.b16 %v362
  %v685 = vunpack.c.l.b16 %v363
  %v686 = vunpack.c.h.b16 %v363
  %v687 = vunpack.c.l.b16 %v364
  %v688 = vunpack.c.h.b16 %v364
  %v689 = vunpack.c.l.b16 %v365
  %v690 = vunpack.c.h.b16 %v365
  %v691 = vunpack.c.l.b16 %v366
  %v692 = vunpack.c.h.b16 %v366
  %v693 = vunpack.c.l.b16 %v367
  %v694 = vunpack.c.h.b16 %v367
  %v695 = vunpack.c.l.b16 %v368
  %v696 = vunpack.c.h.b16 %v368
  %v697 = vunpack.c.l.b16 %v369
  %v698 = vunpack.c.h.b16 %v369
  %v699 = vunpack.c.l.b16 %v370
  %v700 = vunpack.c.h.b16 %v370
  %v701 = vunpack.c.l.b16 %v371
  %v702 = vunpack.c.h.b16 %v371
  %v703 = vunpack.c.l.b16 %v372
  %v704 = vunpack.c.h.b16 %v372
  %v705 = vunpack.c.l.b16 %v373
  %v706 = vunpack.c.h.b16 %v373
  %v707 = vunpack.c.l.b16 %v374
  %v708 = vunpack.c.h.b16 %v374
  %v709 = vunpack.c.l.b16 %v375
  %v710 = vunpack.c.h.b16 %v375
  %v711 = vunpack.c.l.b16 %v376
  %v712 = vunpack.c.h.b16 %v376
  %v713 = vunpack.c.l.b16 %v377
  %v714 = vunpack.c.h.b16 %v377
  %v715 = vunpack.c.l.b16 %v378
  %v716 = vunpack.c.h.b16 %v378
  %v717 = vunpack.c.l.b16 %v379
  %v718 = vunpack.c.h.b16 %v379
  %v719 = vunpack.c.l.b16 %v380
  %v720 = vunpack.c.h.b16 %v380
  %v721 = vunpack.c.l.b16 %v381
  %v722 = vunpack.c.h.b16 %v381
  %v723 = vunpack.c.l.b16 %v382
  %v724 = vunpack.c.h.b16 %v382
  %v725 = vunpack.c.l.b16 %v383
  %v726 = vunpack.c.h.b16 %v383
  %v727 = vunpack.c.l.b16 %v384
  %v728 = vunpack.c.h.b16 %v384
  %v729 = vunpack.c.l.b16 %v385
  %v730 = vunpack.c.h.b16 %v385
  %v731 = vunpack.c.l.b16 %v386
  %v732 = vunpack.c.h.b16 %v386
  %v733 = vunpack.c.l.b16 %v387
  %v734 = vunpack.c.h.b16 %v387
  %v735 = vunpack.c.l.b16 %v388
  %v736 = vunpack.c.h.b16 %v388
  %v737 = vunpack.c.l.b16 %v389
  %v738 = vunpack.c.h.b16 %v389
  %v739 = vunpack.c.l.b16 %v390
  %v740 = vunpack.c.h.b16 %v390
  %v741 = vunpack.c.l.b16 %v391
  %v742 = vunpack.c.h.b16 %v391
  %v743 = vunpack.c.l.b16 %v392
  %v744 = vunpack.c.h.b16 %v392
  %v745 = vunpack.c.l.b16 %v393
  %v746 = vunpack.c.h.b16 %v393
  %v747 = vunpack.c.l.b16 %v394
  %v748 = vunpack.c.h.b16 %v394
  %v749 = vunpack.c.l.b16 %v395
  %v750 = vunpack.c.h.b16 %v395
  %v751 = vunpack.c.l.b16 %v396
  %v752 = vunpack.c.h.b16 %v396
  %v753 = vunpack.c.l.b16 %v397
  %v754 = vunpack.c.h.b16 %v397
  %v755 = vunpack.c.l.b16 %v398
  %v756 = vunpack.c.h.b16 %v398
  %v757 = vunpack.c.l.b16 %v399
  %v758 = vunpack.c.h.b16 %v399
  %v759 = vunpack.c.l.b16 %v400
  %v760 = vunpack.c.h.b16 %v400
  %v761 = vunpack.c.l.b16 %v401
  %v762 = vunpack.c.h.b16 %v401
  %v763 = vunpack.c.l.b16 %v402
  %v764 = vunpack.c.h.b16 %v402
  %v765 = vunpack.c.l.b16 %v403
  %v766 = vunpack.c.h.b16 %v403
  %v767 = vunpack.c.l.b16 %v404
  %v768 = vunpack.c.h.b16 %v404
  %v769 = vunpack.c.l.b16 %v405
  %v770 = vunpack.c.h.b16 %v405
  %v771 = vunpack.c.l.b16 %v406
  %v772 = vunpack.c.h.b16 %v406
  %v773 = vunpack.c.l.b16 %v407
  %v774 = vunpack.c.h.b16 %v407
  %v775 = vunpack.c.l.b16 %v408
  %v776 = vunpack.c.h.b16 %v408
  %v777 = vunpack.c.l.b16 %v409
  %v778 = vunpack.c.h.b16 %v409
  %v779 = vunpack.c.l.b16 %v410
  %v780 = vunpack.c.h.b16 %v410
  %v781 = vunpack.c.l.b16 %v411
  %v782 = vunpack.c.h.b16 %v411
  %v783 = vunpack.c.l.b16 %v412
  %v784 = vunpack.c.h.b16 %v412
  %v785 = vunpack.c.l.b16 %v413
  %v786 = vunpack.c.h.b16 %v413
  %v787 = vunpack.c.l.b16 %v414
  %v788 = vunpack.c.h.b16 %v414
  %v789 = vunpack.c.l.b16 %v415
  %v790 = vunpack.c.h.b16 %v415
  %v791 = vunpack.c.l.b16 %v416
  %v792 = vunpack.c.h.b16 %v416
  %v793 = vunpack.c.l.b16 %v417
  %v794 = vunpack.c.h.b16 %v417
  %v795 = vunpack.c.l.b16 %v418
  %v796 = vunpack.c.h.b16 %v418
  %v797 = vunpack.c.l.b16 %v419
  %v798 = vunpack.c.h.b16 %v419
  %v799 = vunpack.c.l.b16 %v420
  %v800 = vunpack.c.h.b16 %v420
  %v801 = vunpack.c.l.b16 %v421
  %v802 = vunpack.c.h.b16 %v421
  %v803 = vunpack.c.l.b16 %v422
  %v804 = vunpack.c.h.b16 %v422
  %v805 = vunpack.c.l.b16 %v423
  %v806 = vunpack.c.h.b16 %v423
  %v807 = vunpack.c.l.b16 %v424
  %v808 = vunpack.c.h.b16 %v424
  %v809 = vpack.c.b16 %v561, %v553
  %v810 = vpack.c.b16 %v562, %v554
  %v811 = vpack.c.b16 %v563, %v555
  %v812 = vpack.c.b16 %v564, %v556
  %v813 = vpack.c.b16 %v565, %v557
  %v814 = vpack.c.b16 %v566, %v558
  %v815 = vpack.c.b16 %v567, %v559
  %v816 = vpack.c.b16 %v568, %v560
  %v817 = vpack.c.b16 %v577, %v569
  %v818 = vpack.c.b16 %v578, %v570
  %v819 = vpack.c.b16 %v579, %v571
  %v820 = vpack.c.b16 %v580, %v572
  %v821 = vpack.c.b16 %v581, %v573
  %v822 = vpack.c.b16 %v582, %v574
  %v823 = vpack.c.b16 %v583, %v575
  %v824 = vpack.c.b16 %v584, %v576
  %v825 = vpack.c.b16 %v593, %v585
  %v826 = vpack.c.b16 %v594, %v586
  %v827 = vpack.c.b16 %v595, %v587
  %v828 = vpack.c.b16 %v596, %v588
  %v829 = vpack.c.b16 %v597, %v589
  %v830 = vpack.c.b16 %v598, %v590
  %v831 = vpack.c.b16 %v599, %v591
  %v832 = vpack.c.b16 %v600, %v592
  %v833 = vpack.c.b16 %v609, %v601
  %v834 = vpack.c.b16 %v610, %v602
  %v835 = vpack.c.b16 %v611, %v603
  %v836 = vpack.c.b16 %v612, %v604
  %v837 = vpack.c.b16 %v613, %v605
  %v838 = vpack.c.b16 %v614, %v606
  %v839 = vpack.c.b16 %v615, %v607
  %v840 = vpack.c.b16 %v616, %v608
  %v841 = vpack.c.b16 %v625, %v617
  %v842 = vpack.c.b16 %v626, %v618
  %v843 = vpack.c.b16 %v627, %v619
  %v844 = vpack.c.b16 %v628, %v620
  %v845 = vpack.c.b16 %v629, %v621
  %v846 = vpack.c.b16 %v630, %v622
  %v847 = vpack.c.b16 %v631, %v623
  %v848 = vpack.c.b16 %v632, %v624
  %v849 = vpack.c.b16 %v641, %v633
  %v850 = vpack.c.b16 %v642, %v634
  %v851 = vpack.c.b16 %v643, %v635
  %v852 = vpack.c.b16 %v644, %v636
  %v853 = vpack.c.b16 %v645, %v637
  %v854 = vpack.c.b16 %v646, %v638
  %v855 = vpack.c.b16 %v647, %v639
  %v856 = vpack.c.b16 %v648, %v640
  %v857 = vpack.c.b16 %v657, %v649
  %v858 = vpack.c.b16 %v658, %v650
  %v859 = vpack.c.b16 %v659, %v651
  %v860 = vpack.c.b16 %v660, %v652
  %v861 = vpack.c.b16 %v661, %v653
  %v862 = vpack.c.b16 %v662, %v654
  %v863 = vpack.c.b16 %v663, %v655
  %v864 = vpack.c.b16 %v664, %v656
  %v865 = vpack.c.b16 %v673, %v665
  %v866 = vpack.c.b16 %v674, %v666
  %v867 = vpack.c.b16 %v675, %v667
  %v868 = vpack.c.b16 %v676, %v668
  %v869 = vpack.c.b16 %v677, %v669
  %v870 = vpack.c.b16 %v678, %v670
  %v871 = vpack.c.b16 %v679, %v671
  %v872 = vpack.c.b16 %v680, %v672
  %v873 = vpack.c.b16 %v689, %v681
  %v874 = vpack.c.b16 %v690, %v682
  %v875 = vpack.c.b16 %v691, %v683
  %v876 = vpack.c.b16 %v692, %v684
  %v877 = vpack.c.b16 %v693, %v685
  %v878 = vpack.c.b16 %v694, %v686
  %v879 = vpack.c.b16 %v695, %v687
  %v880 = vpack.c.b16 %v696, %v688
  %v881 = vpack.c.b16 %v705, %v697
  %v882 = vpack.c.b16 %v706, %v698
  %v883 = vpack.c.b16 %v707, %v699
  %v884 = vpack.c.b16 %v708, %v700
  %v885 = vpack.c.b16 %v709, %v701
  %v886 = vpack.c.b16 %v710, %v702
  %v887 = vpack.c.b16 %v711, %v703
  %v888 = vpack.c.b16 %v712, %v704
  %v889 = vpack.c.b16 %v721, %v713
  %v890 = vpack.c.b16 %v722, %v714
  %v891 = vpack.c.b16 %v723, %v715
  %v892 = vpack.c.b16 %v724, %v716
  %v893 = vpack.c.b16 %v725, %v717
  %v894 = vpack.c.b16 %v726, %v718
  %v895 = vpack.c.b16 %v727, %v719
  %v896 = vpack.c.b16 %v728, %v720
  %v897 = vpack.c.b16 %v737, %v729
  %v898 = vpack.c.b16 %v738, %v730
  %v899 = vpack.c.b16 %v739, %v731
  %v900 = vpack.c.b16 %v740, %v732
  %v901 = vpack.c.b16 %v741, %v733
  %v902 = vpack.c.b16 %v742, %v734
  %v903 = vpack.c.b16 %v743, %v735
  %v904 = vpack.c.b16 %v744, %v736
  %v905 = vpack.c.b16 %v753, %v745
  %v906 = vpack.c.b16 %v754, %v746
  %v907 = vpack.c.b16 %v755, %v747
  %v908 = vpack.c.b16 %v756, %v748
  %v909 = vpack.c.b16 %v757, %v749
  %v910 = vpack.c.b16 %v758, %v750
  %v911 = vpack.c.b16 %v759, %v751
  %v912 = vpack.c.b16 %v760, %v752
  %v913 = vpack.c.b16 %v769, %v761
  %v914 = vpack.c.b16 %v770, %v762
  %v915 = vpack.c.b16 %v771, %v763
  %v916 = vpack.c.b16 %v772, %v764
  %v917 = vpack.c.b16 %v773, %v765
  %v918 = vpack.c.b16 %v774, %v766
  %v919 = vpack.c.b16 %v775, %v767
  %v920 = vpack.c.b16 %v776, %v768
  %v921 = vpack.c.b16 %v785, %v777
  %v922 = vpack.c.b16 %v786, %v778
  %v923 = vpack.c.b16 %v787, %v779
  %v924 = vpack.c.b16 %v788, %v780
  %v925 = vpack.c.b16 %v789, %v781
  %v926 = vpack.c.b16 %v790, %v782
  %v927 = vpack.c.b16 %v791, %v783
  %v928 = vpack.c.b16 %v792, %v784
  %v929 = vpack.c.b16 %v801, %v793
  %v930 = vpack.c.b16 %v802, %v794
  %v931 = vpack.c.b16 %v803, %v795
  %v932 = vpack.c.b16 %v804, %v796
  %v933 = vpack.c.b16 %v805, %v797
  %v934 = vpack.c.b16 %v806, %v798
  %v935 = vpack.c.b16 %v807, %v799
  %v936 = vpack.c.b16 %v808, %v800
  %1065 = vmatprep.subr.bf16.mxu0 %v866
  %1066 = vmatpush1.bf16.msra.mxu0 %v865
  %1067 = vmatprep.subr.bf16.mxu0 %v858
  %1068 = vmatpush1.bf16.msra.mxu0 %v857
  %1069 = vmatprep.subr.bf16.mxu0 %v850
  %1070 = vmatpush1.bf16.msra.mxu0 %v849
  %1071 = vmatprep.subr.bf16.mxu0 %v842
  %1072 = vmatpush1.bf16.msra.mxu0 %v841
  %1073 = vmatprep.subr.bf16.mxu0 %v834
  %1074 = vmatpush1.bf16.msra.mxu0 %v833
  %1075 = vmatprep.subr.bf16.mxu0 %v826
  %1076 = vmatpush1.bf16.msra.mxu0 %v825
  %1077 = vmatprep.subr.bf16.mxu0 %v818
  %1078 = vmatpush1.bf16.msra.mxu0 %v817
  %1079 = vmatprep.subr.bf16.mxu0 %v810
  %1080 = vmatpush1.bf16.msra.mxu0 %v809
  %1081 = vmatprep.subr.bf16.mxu0 %v930
  %1082 = vmatpush2.bf16.msra.mxu0 %v929
  %1083 = vmatprep.subr.bf16.mxu0 %v922
  %1084 = vmatpush2.bf16.msra.mxu0 %v921
  %1085 = vmatprep.subr.bf16.mxu0 %v914
  %1086 = vmatpush2.bf16.msra.mxu0 %v913
  %1087 = vmatprep.subr.bf16.mxu0 %v906
  %1088 = vmatpush2.bf16.msra.mxu0 %v905
  %1089 = vmatprep.subr.bf16.mxu0 %v898
  %1090 = vmatpush2.bf16.msra.mxu0 %v897
  %1091 = vmatprep.subr.bf16.mxu0 %v890
  %1092 = vmatpush2.bf16.msra.mxu0 %v889
  %1093 = vmatprep.subr.bf16.mxu0 %v882
  %1094 = vmatpush2.bf16.msra.mxu0 %v881
  %1095 = vmatprep.subr.bf16.mxu0 %v874
  %1096 = vmatpush2.bf16.msra.mxu0 %v873
  %1097 = vmatprep.mubr.bf16.mxu0 %v296
  %1098 = vmatmul.mubr.bf16.gmra.mxu0 %v295
  %v1099 = vpop.f32.mrf.mxu0
  %v1100 = vadd.f32 0.0, %v1099
  %v1101 = vpop.f32.mrf.mxu0
  %v1102 = vadd.f32 0.0, %v1101
  %v1103 = vpop.f32.mrf.mxu0
  %v1104 = vpop.f32.mrf.mxu0
  %1105 = vdwg.mxu0
  %1106 = vmatprep.subr.bf16.mxu0 %v868
  %1107 = vmatpush1.bf16.msra.mxu0 %v867
  %1108 = vmatprep.subr.bf16.mxu0 %v860
  %1109 = vmatpush1.bf16.msra.mxu0 %v859
  %1110 = vmatprep.subr.bf16.mxu0 %v852
  %1111 = vmatpush1.bf16.msra.mxu0 %v851
  %1112 = vmatprep.subr.bf16.mxu0 %v844
  %1113 = vmatpush1.bf16.msra.mxu0 %v843
  %1114 = vmatprep.subr.bf16.mxu0 %v836
  %1115 = vmatpush1.bf16.msra.mxu0 %v835
  %1116 = vmatprep.subr.bf16.mxu0 %v828
  %1117 = vmatpush1.bf16.msra.mxu0 %v827
  %1118 = vmatprep.subr.bf16.mxu0 %v820
  %1119 = vmatpush1.bf16.msra.mxu0 %v819
  %1120 = vmatprep.subr.bf16.mxu0 %v812
  %1121 = vmatpush1.bf16.msra.mxu0 %v811
  %1122 = vmatprep.subr.bf16.mxu0 %v932
  %1123 = vmatpush2.bf16.msra.mxu0 %v931
  %1124 = vmatprep.subr.bf16.mxu0 %v924
  %1125 = vmatpush2.bf16.msra.mxu0 %v923
  %1126 = vmatprep.subr.bf16.mxu0 %v916
  %1127 = vmatpush2.bf16.msra.mxu0 %v915
  %1128 = vmatprep.subr.bf16.mxu0 %v908
  %1129 = vmatpush2.bf16.msra.mxu0 %v907
  %1130 = vmatprep.subr.bf16.mxu0 %v900
  %1131 = vmatpush2.bf16.msra.mxu0 %v899
  %1132 = vmatprep.subr.bf16.mxu0 %v892
  %1133 = vmatpush2.bf16.msra.mxu0 %v891
  %1134 = vmatprep.subr.bf16.mxu0 %v884
  %1135 = vmatpush2.bf16.msra.mxu0 %v883
  %1136 = vmatprep.subr.bf16.mxu0 %v876
  %1137 = vmatpush2.bf16.msra.mxu0 %v875
  %1138 = vmatprep.mubr.bf16.mxu0 %v296
  %1139 = vmatmul.mubr.bf16.gmra.mxu0 %v295
  %v1140 = vpop.f32.mrf.mxu0
  %v1141 = vadd.f32 0.0, %v1140
  %v1142 = vpop.f32.mrf.mxu0
  %v1143 = vadd.f32 0.0, %v1142
  %v1144 = vpop.f32.mrf.mxu0
  %v1145 = vpop.f32.mrf.mxu0
  %1146 = vdwg.mxu0
  %1147 = vmatprep.subr.bf16.mxu0 %v870
  %1148 = vmatpush1.bf16.msra.mxu0 %v869
  %1149 = vmatprep.subr.bf16.mxu0 %v862
  %1150 = vmatpush1.bf16.msra.mxu0 %v861
  %1151 = vmatprep.subr.bf16.mxu0 %v854
  %1152 = vmatpush1.bf16.msra.mxu0 %v853
  %1153 = vmatprep.subr.bf16.mxu0 %v846
  %1154 = vmatpush1.bf16.msra.mxu0 %v845
  %1155 = vmatprep.subr.bf16.mxu0 %v838
  %1156 = vmatpush1.bf16.msra.mxu0 %v837
  %1157 = vmatprep.subr.bf16.mxu0 %v830
  %1158 = vmatpush1.bf16.msra.mxu0 %v829
  %1159 = vmatprep.subr.bf16.mxu0 %v822
  %1160 = vmatpush1.bf16.msra.mxu0 %v821
  %1161 = vmatprep.subr.bf16.mxu0 %v814
  %1162 = vmatpush1.bf16.msra.mxu0 %v813
  %1163 = vmatprep.subr.bf16.mxu0 %v934
  %1164 = vmatpush2.bf16.msra.mxu0 %v933
  %1165 = vmatprep.subr.bf16.mxu0 %v926
  %1166 = vmatpush2.bf16.msra.mxu0 %v925
  %1167 = vmatprep.subr.bf16.mxu0 %v918
  %1168 = vmatpush2.bf16.msra.mxu0 %v917
  %1169 = vmatprep.subr.bf16.mxu0 %v910
  %1170 = vmatpush2.bf16.msra.mxu0 %v909
  %1171 = vmatprep.subr.bf16.mxu0 %v902
  %1172 = vmatpush2.bf16.msra.mxu0 %v901
  %1173 = vmatprep.subr.bf16.mxu0 %v894
  %1174 = vmatpush2.bf16.msra.mxu0 %v893
  %1175 = vmatprep.subr.bf16.mxu0 %v886
  %1176 = vmatpush2.bf16.msra.mxu0 %v885
  %1177 = vmatprep.subr.bf16.mxu0 %v878
  %1178 = vmatpush2.bf16.msra.mxu0 %v877
  %1179 = vmatprep.mubr.bf16.mxu0 %v296
  %1180 = vmatmul.mubr.bf16.gmra.mxu0 %v295
  %v1181 = vpop.f32.mrf.mxu0
  %v1182 = vadd.f32 0.0, %v1181
  %v1183 = vpop.f32.mrf.mxu0
  %v1184 = vadd.f32 0.0, %v1183
  %v1185 = vpop.f32.mrf.mxu0
  %v1186 = vpop.f32.mrf.mxu0
  %1187 = vdwg.mxu0
  %1188 = vmatprep.subr.bf16.mxu0 %v872
  %1189 = vmatpush1.bf16.msra.mxu0 %v871
  %1190 = vmatprep.subr.bf16.mxu0 %v864
  %1191 = vmatpush1.bf16.msra.mxu0 %v863
  %1192 = vmatprep.subr.bf16.mxu0 %v856
  %1193 = vmatpush1.bf16.msra.mxu0 %v855
  %1194 = vmatprep.subr.bf16.mxu0 %v848
  %1195 = vmatpush1.bf16.msra.mxu0 %v847
  %1196 = vmatprep.subr.bf16.mxu0 %v840
  %1197 = vmatpush1.bf16.msra.mxu0 %v839
  %1198 = vmatprep.subr.bf16.mxu0 %v832
  %1199 = vmatpush1.bf16.msra.mxu0 %v831
  %1200 = vmatprep.subr.bf16.mxu0 %v824
  %1201 = vmatpush1.bf16.msra.mxu0 %v823
  %1202 = vmatprep.subr.bf16.mxu0 %v816
  %1203 = vmatpush1.bf16.msra.mxu0 %v815
  %1204 = vmatprep.subr.bf16.mxu0 %v936
  %1205 = vmatpush2.bf16.msra.mxu0 %v935
  %1206 = vmatprep.subr.bf16.mxu0 %v928
  %1207 = vmatpush2.bf16.msra.mxu0 %v927
  %1208 = vmatprep.subr.bf16.mxu0 %v920
  %1209 = vmatpush2.bf16.msra.mxu0 %v919
  %1210 = vmatprep.subr.bf16.mxu0 %v912
  %1211 = vmatpush2.bf16.msra.mxu0 %v911
  %1212 = vmatprep.subr.bf16.mxu0 %v904
  %1213 = vmatpush2.bf16.msra.mxu0 %v903
  %1214 = vmatprep.subr.bf16.mxu0 %v896
  %1215 = vmatpush2.bf16.msra.mxu0 %v895
  %1216 = vmatprep.subr.bf16.mxu0 %v888
  %1217 = vmatpush2.bf16.msra.mxu0 %v887
  %1218 = vmatprep.subr.bf16.mxu0 %v880
  %1219 = vmatpush2.bf16.msra.mxu0 %v879
  %1220 = vmatprep.mubr.bf16.mxu0 %v296
  %1221 = vmatmul.mubr.bf16.gmra.mxu0 %v295
  %v1222 = vpop.f32.mrf.mxu0
  %v1223 = vadd.f32 0.0, %v1222
  %v1224 = vpop.f32.mrf.mxu0
  %v1225 = vadd.f32 0.0, %v1224
  %v1226 = vpop.f32.mrf.mxu0
  %v1227 = vpop.f32.mrf.mxu0
  %1228 = vdwg.mxu0
  %v1229 = vmul.f32 %v1100, %v1182
  %v1230 = vmul.f32 %v1102, %v1184
  %v1231 = vmul.f32 %v1141, %v1223
  %v1232 = vmul.f32 %v1143, %v1225
  %v1233 = vpack.c.bf16 %v1229, %v1229
  %v1234 = vpack.c.bf16 %v1230, %v1230
  %v1235 = vpack.c.bf16 %v1231, %v1231
  %v1236 = vpack.c.bf16 %v1232, %v1232
  %v1237 = vld [vmem:[%s3] sm:$0xf]
  %v1238 = vld [vmem:[%s3 + $0x4] sm:$0xf]
  %v1239 = vld [vmem:[%s3 + $0x8] sm:$0xf]
  %v1240 = vld [vmem:[%s3 + $0xc] sm:$0xf]
  %v1241 = vld [vmem:[%s3 + $0x10] sm:$0xf]
  %v1242 = vld [vmem:[%s3 + $0x14] sm:$0xf]
  %v1243 = vld [vmem:[%s3 + $0x18] sm:$0xf]
  %v1244 = vld [vmem:[%s3 + $0x1c] sm:$0xf]
  %v1245 = vld [vmem:[%s3 + $0x20] sm:$0xf]
  %v1246 = vld [vmem:[%s3 + $0x24] sm:$0xf]
  %v1247 = vld [vmem:[%s3 + $0x28] sm:$0xf]
  %v1248 = vld [vmem:[%s3 + $0x2c] sm:$0xf]
  %v1249 = vld [vmem:[%s3 + $0x30] sm:$0xf]
  %v1250 = vld [vmem:[%s3 + $0x34] sm:$0xf]
  %v1251 = vld [vmem:[%s3 + $0x38] sm:$0xf]
  %v1252 = vld [vmem:[%s3 + $0x3c] sm:$0xf]
  %v1253 = vld [vmem:[%s3 + $0x40] sm:$0xf]
  %v1254 = vld [vmem:[%s3 + $0x44] sm:$0xf]
  %v1255 = vld [vmem:[%s3 + $0x48] sm:$0xf]
  %v1256 = vld [vmem:[%s3 + $0x4c] sm:$0xf]
  %v1257 = vld [vmem:[%s3 + $0x50] sm:$0xf]
  %v1258 = vld [vmem:[%s3 + $0x54] sm:$0xf]
  %v1259 = vld [vmem:[%s3 + $0x58] sm:$0xf]
  %v1260 = vld [vmem:[%s3 + $0x5c] sm:$0xf]
  %v1261 = vld [vmem:[%s3 + $0x60] sm:$0xf]
  %v1262 = vld [vmem:[%s3 + $0x64] sm:$0xf]
  %v1263 = vld [vmem:[%s3 + $0x68] sm:$0xf]
  %v1264 = vld [vmem:[%s3 + $0x6c] sm:$0xf]
  %v1265 = vld [vmem:[%s3 + $0x70] sm:$0xf]
  %v1266 = vld [vmem:[%s3 + $0x74] sm:$0xf]
  %v1267 = vld [vmem:[%s3 + $0x78] sm:$0xf]
  %v1268 = vld [vmem:[%s3 + $0x7c] sm:$0xf]
  %v1269 = vld [vmem:[%s3 + $0x80] sm:$0xf]
  %v1270 = vld [vmem:[%s3 + $0x84] sm:$0xf]
  %v1271 = vld [vmem:[%s3 + $0x88] sm:$0xf]
  %v1272 = vld [vmem:[%s3 + $0x8c] sm:$0xf]
  %v1273 = vld [vmem:[%s3 + $0x90] sm:$0xf]
  %v1274 = vld [vmem:[%s3 + $0x94] sm:$0xf]
  %v1275 = vld [vmem:[%s3 + $0x98] sm:$0xf]
  %v1276 = vld [vmem:[%s3 + $0x9c] sm:$0xf]
  %v1277 = vld [vmem:[%s3 + $0xa0] sm:$0xf]
  %v1278 = vld [vmem:[%s3 + $0xa4] sm:$0xf]
  %v1279 = vld [vmem:[%s3 + $0xa8] sm:$0xf]
  %v1280 = vld [vmem:[%s3 + $0xac] sm:$0xf]
  %v1281 = vld [vmem:[%s3 + $0xb0] sm:$0xf]
  %v1282 = vld [vmem:[%s3 + $0xb4] sm:$0xf]
  %v1283 = vld [vmem:[%s3 + $0xb8] sm:$0xf]
  %v1284 = vld [vmem:[%s3 + $0xbc] sm:$0xf]
  %v1285 = vld [vmem:[%s3 + $0xc0] sm:$0xf]
  %v1286 = vld [vmem:[%s3 + $0xc4] sm:$0xf]
  %v1287 = vld [vmem:[%s3 + $0xc8] sm:$0xf]
  %v1288 = vld [vmem:[%s3 + $0xcc] sm:$0xf]
  %v1289 = vld [vmem:[%s3 + $0xd0] sm:$0xf]
  %v1290 = vld [vmem:[%s3 + $0xd4] sm:$0xf]
  %v1291 = vld [vmem:[%s3 + $0xd8] sm:$0xf]
  %v1292 = vld [vmem:[%s3 + $0xdc] sm:$0xf]
  %v1293 = vld [vmem:[%s3 + $0xe0] sm:$0xf]
  %v1294 = vld [vmem:[%s3 + $0xe4] sm:$0xf]
  %v1295 = vld [vmem:[%s3 + $0xe8] sm:$0xf]
  %v1296 = vld [vmem:[%s3 + $0xec] sm:$0xf]
  %v1297 = vld [vmem:[%s3 + $0xf0] sm:$0xf]
  %v1298 = vld [vmem:[%s3 + $0xf4] sm:$0xf]
  %v1299 = vld [vmem:[%s3 + $0xf8] sm:$0xf]
  %v1300 = vld [vmem:[%s3 + $0xfc] sm:$0xf]
  %v1365 = vunpack.c.l.b16 %v1237
  %v1366 = vunpack.c.l.b16 %v1238
  %v1367 = vunpack.c.l.b16 %v1239
  %v1368 = vunpack.c.l.b16 %v1240
  %v1369 = vunpack.c.l.b16 %v1241
  %v1370 = vunpack.c.l.b16 %v1242
  %v1371 = vunpack.c.l.b16 %v1243
  %v1372 = vunpack.c.l.b16 %v1244
  %v1373 = vunpack.c.l.b16 %v1245
  %v1374 = vunpack.c.l.b16 %v1246
  %v1375 = vunpack.c.l.b16 %v1247
  %v1376 = vunpack.c.l.b16 %v1248
  %v1377 = vunpack.c.l.b16 %v1249
  %v1378 = vunpack.c.l.b16 %v1250
  %v1379 = vunpack.c.l.b16 %v1251
  %v1380 = vunpack.c.l.b16 %v1252
  %v1381 = vunpack.c.l.b16 %v1253
  %v1382 = vunpack.c.l.b16 %v1254
  %v1383 = vunpack.c.l.b16 %v1255
  %v1384 = vunpack.c.l.b16 %v1256
  %v1385 = vunpack.c.l.b16 %v1257
  %v1386 = vunpack.c.l.b16 %v1258
  %v1387 = vunpack.c.l.b16 %v1259
  %v1388 = vunpack.c.l.b16 %v1260
  %v1389 = vunpack.c.l.b16 %v1261
  %v1390 = vunpack.c.l.b16 %v1262
  %v1391 = vunpack.c.l.b16 %v1263
  %v1392 = vunpack.c.l.b16 %v1264
  %v1393 = vunpack.c.l.b16 %v1265
  %v1394 = vunpack.c.l.b16 %v1266
  %v1395 = vunpack.c.l.b16 %v1267
  %v1396 = vunpack.c.l.b16 %v1268
  %v1397 = vunpack.c.l.b16 %v1269
  %v1398 = vunpack.c.l.b16 %v1270
  %v1399 = vunpack.c.l.b16 %v1271
  %v1400 = vunpack.c.l.b16 %v1272
  %v1401 = vunpack.c.l.b16 %v1273
  %v1402 = vunpack.c.l.b16 %v1274
  %v1403 = vunpack.c.l.b16 %v1275
  %v1404 = vunpack.c.l.b16 %v1276
  %v1405 = vunpack.c.l.b16 %v1277
  %v1406 = vunpack.c.l.b16 %v1278
  %v1407 = vunpack.c.l.b16 %v1279
  %v1408 = vunpack.c.l.b16 %v1280
  %v1409 = vunpack.c.l.b16 %v1281
  %v1410 = vunpack.c.l.b16 %v1282
  %v1411 = vunpack.c.l.b16 %v1283
  %v1412 = vunpack.c.l.b16 %v1284
  %v1413 = vunpack.c.l.b16 %v1285
  %v1414 = vunpack.c.l.b16 %v1286
  %v1415 = vunpack.c.l.b16 %v1287
  %v1416 = vunpack.c.l.b16 %v1288
  %v1417 = vunpack.c.l.b16 %v1289
  %v1418 = vunpack.c.l.b16 %v1290
  %v1419 = vunpack.c.l.b16 %v1291
  %v1420 = vunpack.c.l.b16 %v1292
  %v1421 = vunpack.c.l.b16 %v1293
  %v1422 = vunpack.c.l.b16 %v1294
  %v1423 = vunpack.c.l.b16 %v1295
  %v1424 = vunpack.c.l.b16 %v1296
  %v1425 = vunpack.c.l.b16 %v1297
  %v1426 = vunpack.c.l.b16 %v1298
  %v1427 = vunpack.c.l.b16 %v1299
  %v1428 = vunpack.c.l.b16 %v1300
  %v1429 = vpack.c.b16 %v1366, %v1365
  %v1430 = vpack.c.b16 %v1368, %v1367
  %v1431 = vpack.c.b16 %v1370, %v1369
  %v1432 = vpack.c.b16 %v1372, %v1371
  %v1433 = vpack.c.b16 %v1374, %v1373
  %v1434 = vpack.c.b16 %v1376, %v1375
  %v1435 = vpack.c.b16 %v1378, %v1377
  %v1436 = vpack.c.b16 %v1380, %v1379
  %v1437 = vpack.c.b16 %v1382, %v1381
  %v1438 = vpack.c.b16 %v1384, %v1383
  %v1439 = vpack.c.b16 %v1386, %v1385
  %v1440 = vpack.c.b16 %v1388, %v1387
  %v1441 = vpack.c.b16 %v1390, %v1389
  %v1442 = vpack.c.b16 %v1392, %v1391
  %v1443 = vpack.c.b16 %v1394, %v1393
  %v1444 = vpack.c.b16 %v1396, %v1395
  %v1445 = vpack.c.b16 %v1398, %v1397
  %v1446 = vpack.c.b16 %v1400, %v1399
  %v1447 = vpack.c.b16 %v1402, %v1401
  %v1448 = vpack.c.b16 %v1404, %v1403
  %v1449 = vpack.c.b16 %v1406, %v1405
  %v1450 = vpack.c.b16 %v1408, %v1407
  %v1451 = vpack.c.b16 %v1410, %v1409
  %v1452 = vpack.c.b16 %v1412, %v1411
  %v1453 = vpack.c.b16 %v1414, %v1413
  %v1454 = vpack.c.b16 %v1416, %v1415
  %v1455 = vpack.c.b16 %v1418, %v1417
  %v1456 = vpack.c.b16 %v1420, %v1419
  %v1457 = vpack.c.b16 %v1422, %v1421
  %v1458 = vpack.c.b16 %v1424, %v1423
  %v1459 = vpack.c.b16 %v1426, %v1425
  %v1460 = vpack.c.b16 %v1428, %v1427
  %1493 = vmatprep.subr.bf16.mxu0 0
  %1494 = vmatpush1.bf16.msra.mxu0 %v1436
  %1495 = vmatprep.subr.bf16.mxu0 0
  %1496 = vmatpush1.bf16.msra.mxu0 %v1435
  %1497 = vmatprep.subr.bf16.mxu0 0
  %1498 = vmatpush1.bf16.msra.mxu0 %v1434
  %1499 = vmatprep.subr.bf16.mxu0 0
  %1500 = vmatpush1.bf16.msra.mxu0 %v1433
  %1501 = vmatprep.subr.bf16.mxu0 0
  %1502 = vmatpush1.bf16.msra.mxu0 %v1432
  %1503 = vmatprep.subr.bf16.mxu0 0
  %1504 = vmatpush1.bf16.msra.mxu0 %v1431
  %1505 = vmatprep.subr.bf16.mxu0 0
  %1506 = vmatpush1.bf16.msra.mxu0 %v1430
  %1507 = vmatprep.subr.bf16.mxu0 0
  %1508 = vmatpush1.bf16.msra.mxu0 %v1429
  %1509 = vmatprep.subr.bf16.mxu0 0
  %1510 = vmatpush2.bf16.msra.mxu0 %v1444
  %1511 = vmatprep.subr.bf16.mxu0 0
  %1512 = vmatpush2.bf16.msra.mxu0 %v1443
  %1513 = vmatprep.subr.bf16.mxu0 0
  %1514 = vmatpush2.bf16.msra.mxu0 %v1442
  %1515 = vmatprep.subr.bf16.mxu0 0
  %1516 = vmatpush2.bf16.msra.mxu0 %v1441
  %1517 = vmatprep.subr.bf16.mxu0 0
  %1518 = vmatpush2.bf16.msra.mxu0 %v1440
  %1519 = vmatprep.subr.bf16.mxu0 0
  %1520 = vmatpush2.bf16.msra.mxu0 %v1439
  %1521 = vmatprep.subr.bf16.mxu0 0
  %1522 = vmatpush2.bf16.msra.mxu0 %v1438
  %1523 = vmatprep.subr.bf16.mxu0 0
  %1524 = vmatpush2.bf16.msra.mxu0 %v1437
  %1525 = vmatprep.mubr.bf16.mxu0 %v1234
  %1526 = vmatmul.mubr.bf16.gmra.mxu0 %v1233
  %v1527 = vpop.f32.mrf.mxu0
  %v1528 = vadd.f32 0.0, %v1527
  %v1529 = vpop.f32.mrf.mxu0
  %v1530 = vpop.f32.mrf.mxu0
  %v1531 = vpop.f32.mrf.mxu0
  %1532 = vdwg.mxu0
  %1533 = vmatprep.subr.bf16.mxu0 0
  %1534 = vmatpush1.bf16.msra.mxu0 %v1452
  %1535 = vmatprep.subr.bf16.mxu0 0
  %1536 = vmatpush1.bf16.msra.mxu0 %v1451
  %1537 = vmatprep.subr.bf16.mxu0 0
  %1538 = vmatpush1.bf16.msra.mxu0 %v1450
  %1539 = vmatprep.subr.bf16.mxu0 0
  %1540 = vmatpush1.bf16.msra.mxu0 %v1449
  %1541 = vmatprep.subr.bf16.mxu0 0
  %1542 = vmatpush1.bf16.msra.mxu0 %v1448
  %1543 = vmatprep.subr.bf16.mxu0 0
  %1544 = vmatpush1.bf16.msra.mxu0 %v1447
  %1545 = vmatprep.subr.bf16.mxu0 0
  %1546 = vmatpush1.bf16.msra.mxu0 %v1446
  %1547 = vmatprep.subr.bf16.mxu0 0
  %1548 = vmatpush1.bf16.msra.mxu0 %v1445
  %1549 = vmatprep.subr.bf16.mxu0 0
  %1550 = vmatpush2.bf16.msra.mxu0 %v1460
  %1551 = vmatprep.subr.bf16.mxu0 0
  %1552 = vmatpush2.bf16.msra.mxu0 %v1459
  %1553 = vmatprep.subr.bf16.mxu0 0
  %1554 = vmatpush2.bf16.msra.mxu0 %v1458
  %1555 = vmatprep.subr.bf16.mxu0 0
  %1556 = vmatpush2.bf16.msra.mxu0 %v1457
  %1557 = vmatprep.subr.bf16.mxu0 0
  %1558 = vmatpush2.bf16.msra.mxu0 %v1456
  %1559 = vmatprep.subr.bf16.mxu0 0
  %1560 = vmatpush2.bf16.msra.mxu0 %v1455
  %1561 = vmatprep.subr.bf16.mxu0 0
  %1562 = vmatpush2.bf16.msra.mxu0 %v1454
  %1563 = vmatprep.subr.bf16.mxu0 0
  %1564 = vmatpush2.bf16.msra.mxu0 %v1453
  %1565 = vmatprep.mubr.bf16.mxu0 %v1236
  %1566 = vmatmul.mubr.bf16.gmra.mxu0 %v1235
  %v1567 = vpop.f32.mrf.mxu0
  %v1568 = vadd.f32 %v1528, %v1567
  %v1569 = vpop.f32.mrf.mxu0
  %v1570 = vpop.f32.mrf.mxu0
  %v1571 = vpop.f32.mrf.mxu0
  %1572 = vdwg.mxu0
  %1573 = vst [vmem:[%s4] sm:$0xff] %v1568
  // Predicated region
  $region18: #{bilinear_cnn_forward.11} parent=0 // pred_check
    _
  $region19: #{bilinear_cnn_forward.11} parent=0 // pred_check_branch
    %1575 = sbr.rel (0) target = $region21
  $region20: #{bilinear_cnn_forward.11} parent=0 // pred_region
    _
  $region21: #{bilinear_cnn_forward.11} parent=0 // pred_fallthru
    _
  // Predicated region
  $region22: #{bilinear_cnn_forward.11} parent=0 // pred_check
    _
  $region23: #{bilinear_cnn_forward.11} parent=0 // pred_check_branch
    %1577 = sbr.rel (0) target = $region25
  $region24: #{bilinear_cnn_forward.11} parent=0 // pred_region
    _
  $region25: #{bilinear_cnn_forward.11} parent=0 // pred_fallthru
    _

</llo_original>
